<compile_context>
chip_gen: v6e
topology: v6e:2x2x1
jax: 0.10.0
libtpu: 0.0.40
codegen_flags: <defaults>
</compile_context>

<pallas_src>
import functools

import jax
import jax.numpy as jnp
import numpy as np
from jax.experimental import pallas as pl
from jax.experimental.pallas import tpu as pltpu

_VMEM_LIMIT = 32 * 1024 * 1024   # safe on every generation (v7x physical VMEM is 64 MiB)


def _ru(x, m):
    return (x + m - 1) // m * m


def _pick_tile(total, cap, unit=128):
    """Largest multiple of `unit` that divides `total` and is <= cap (total % unit == 0)."""
    best = unit
    d = unit
    lim = min(total, cap)
    while d <= lim:
        if total % d == 0:
            best = d
        d += unit
    return best


# --------------------------------------------------------------------------------------
# Pallas kernels
# --------------------------------------------------------------------------------------

def _mm_stats_kernel(x_ref, w_ref, y_ref, sum_ref, sq_ref):
    """One (n, m) block: y = x @ w (bf16 in, f32 acc) + per-column partial sum / sum-of-sq.

    K and N fit in a single block per layer, so the full dot happens here (no K loop) and the
    weight block stays VMEM-resident across the whole M grid axis.  Partial statistics are
    written exactly once per block (row 0 of an (8, tn) slab, rows 1..7 zero), so there is no
    read-modify-write on any output and both grid axes can be 'parallel' (v7x dual-TC).
    """
    acc = jnp.dot(x_ref[...], w_ref[...], preferred_element_type=jnp.float32)
    y_ref[...] = acc.astype(y_ref.dtype)
    ps = jnp.sum(acc, axis=0, keepdims=True)
    pq = jnp.sum(acc * acc, axis=0, keepdims=True)
    row0 = jax.lax.broadcasted_iota(jnp.int32, sum_ref.shape, 0) == 0
    sum_ref[...] = jnp.where(row0, jnp.broadcast_to(ps, sum_ref.shape), 0.0)
    sq_ref[...] = jnp.where(row0, jnp.broadcast_to(pq, sq_ref.shape), 0.0)


def matmul_stats(x, w_pad, *, tm_cap=256, tn_cap=256):
    """x:[M,K] @ w_pad:[Kp,Np](bf16) -> (y bf16 [M,Np], colsum f32 [Np], colsumsq f32 [Np])."""
    M, K = x.shape
    Kp, Np = w_pad.shape
    tm = min(tm_cap, _ru(M, 8))
    Mp = _ru(M, tm)
    tn = _pick_tile(Np, tn_cap)
    nm, nn = Mp // tm, Np // tn
    xp = jnp.pad(x, ((0, Mp - M), (0, Kp - K))).astype(jnp.bfloat16)

    cost = pl.CostEstimate(
        flops=2 * Mp * Kp * Np,
        transcendentals=0,
        bytes_accessed=2 * (Mp * Kp + Kp * Np + Mp * Np) + 2 * 4 * 8 * nm * Np,
    )
    y, s1, s2 = pl.pallas_call(
        _mm_stats_kernel,
        out_shape=(jax.ShapeDtypeStruct((Mp, Np), jnp.bfloat16),
                   jax.ShapeDtypeStruct((8 * nm, Np), jnp.float32),
                   jax.ShapeDtypeStruct((8 * nm, Np), jnp.float32)),
        grid_spec=pltpu.PrefetchScalarGridSpec(
            num_scalar_prefetch=0,
            grid=(nn, nm),
            in_specs=[
                pl.BlockSpec((tm, Kp), lambda n, m: (m, 0)),
                pl.BlockSpec((Kp, tn), lambda n, m: (0, n)),   # weight resident across m
            ],
            out_specs=[
                pl.BlockSpec((tm, tn), lambda n, m: (m, n)),
                pl.BlockSpec((8, tn), lambda n, m: (m, n)),    # per-M-block partial stats
                pl.BlockSpec((8, tn), lambda n, m: (m, n)),
            ],
        ),
        compiler_params=pltpu.CompilerParams(
            dimension_semantics=("parallel", "parallel"),
            vmem_limit_bytes=_VMEM_LIMIT,
        ),
        cost_estimate=cost,
    )(xp, w_pad)
    # Tiny cross-block reduction of the partial statistics (rows 1..7 of each slab are zero).
    return y[:M], jnp.sum(s1, axis=0), jnp.sum(s2, axis=0)


def _mm_bias_tanh_kernel(x_ref, w_ref, b_ref, o_ref):
    acc = jnp.dot(x_ref[...], w_ref[...], preferred_element_type=jnp.float32)
    o_ref[...] = jnp.tanh(acc + b_ref[...])


def matmul_bias_tanh(x, w_pad, b_pad, *, tm_cap=256, tn_cap=256):
    """Final layer: x @ w + b with tanh fused in the epilogue; f32 output."""
    M, K = x.shape
    Kp, Np = w_pad.shape
    tm = min(tm_cap, _ru(M, 8))
    Mp = _ru(M, tm)
    tn = _pick_tile(Np, tn_cap)
    nm, nn = Mp // tm, Np // tn
    xp = jnp.pad(x, ((0, Mp - M), (0, Kp - K))).astype(jnp.bfloat16)

    cost = pl.CostEstimate(
        flops=2 * Mp * Kp * Np,
        transcendentals=Mp * Np,
        bytes_accessed=2 * (Mp * Kp + Kp * Np) + 4 * (Np + Mp * Np),
    )
    out = pl.pallas_call(
        _mm_bias_tanh_kernel,
        out_shape=jax.ShapeDtypeStruct((Mp, Np), jnp.float32),
        grid_spec=pltpu.PrefetchScalarGridSpec(
            num_scalar_prefetch=0,
            grid=(nn, nm),
            in_specs=[
                pl.BlockSpec((tm, Kp), lambda n, m: (m, 0)),
                pl.BlockSpec((Kp, tn), lambda n, m: (0, n)),   # weight resident across m
                pl.BlockSpec((1, tn), lambda n, m: (0, n)),    # bias resident across m
            ],
            out_specs=pl.BlockSpec((tm, tn), lambda n, m: (m, n)),
        ),
        compiler_params=pltpu.CompilerParams(
            dimension_semantics=("parallel", "parallel"),
            vmem_limit_bytes=_VMEM_LIMIT,
        ),
        cost_estimate=cost,
    )(xp, w_pad, b_pad)
    return out[:M]


def _affine_relu_kernel(y_ref, s_ref, t_ref, o_ref):
    y = y_ref[...].astype(jnp.float32)
    o_ref[...] = jnp.maximum(y * s_ref[...] + t_ref[...], 0.0).astype(o_ref.dtype)


def affine_relu(y, scale_cols, shift_cols, *, tm_cap=512):
    """Column-wise y*scale+shift then ReLU on the pre-shuffle [M, Np] slab (Np mult of 128)."""
    M, C = y.shape
    tm = min(tm_cap, _ru(M, 8))
    Mp = _ru(M, tm)
    yp = jnp.pad(y, ((0, Mp - M), (0, 0)))
    cost = pl.CostEstimate(flops=2 * Mp * C, transcendentals=0,
                           bytes_accessed=2 * 2 * Mp * C + 2 * 4 * C)
    out = pl.pallas_call(
        _affine_relu_kernel,
        out_shape=jax.ShapeDtypeStruct((Mp, C), jnp.bfloat16),
        grid_spec=pltpu.PrefetchScalarGridSpec(
            num_scalar_prefetch=0,
            grid=(Mp // tm,),
            in_specs=[
                pl.BlockSpec((tm, C), lambda i: (i, 0)),
                pl.BlockSpec((1, C), lambda i: (0, 0)),
                pl.BlockSpec((1, C), lambda i: (0, 0)),
            ],
            out_specs=pl.BlockSpec((tm, C), lambda i: (i, 0)),
        ),
        compiler_params=pltpu.CompilerParams(
            dimension_semantics=("parallel",),
            vmem_limit_bytes=_VMEM_LIMIT,
        ),
        cost_estimate=cost,
    )(yp, scale_cols.reshape(1, C).astype(jnp.float32),
      shift_cols.reshape(1, C).astype(jnp.float32))
    return out[:M]


# --------------------------------------------------------------------------------------
# Phase-stacked ConvTranspose2d decomposition (layout glue, done in XLA / at prep time)
# --------------------------------------------------------------------------------------

def _phase_pairs(k, s, p, q):
    """(input offset d, kernel index j) pairs contributing to output phase q (o = s*t + q)."""
    return [((q + p - j) // s, j) for j in range(k) if (q + p - j) % s == 0]


def _stacked_weight(w_t, k, s, p):
    """ConvTranspose2d weight [Cin,Cout,k,k] -> (padded bf16 [Kp,Np] matmul matrix, D).

    K axis = (dy, dx, cin) over the union input-offset window D (shared by all phases);
    N axis = (qy, qx, cout), i.e. the s^2 output phases concatenated along N so the matmul
    output is already in depth-to-space order.  Taps a phase does not use are zero.
    """
    cin, cout = int(w_t.shape[0]), int(w_t.shape[1])
    D = sorted({d for q in range(s) for d, _ in _phase_pairs(k, s, p, q)})
    nd = len(D)
    dpos = {d: i for i, d in enumerate(D)}
    w_np = np.asarray(w_t, np.float32)
    wm = np.zeros((nd, nd, cin, s, s, cout), np.float32)
    for qy in range(s):
        for dy, jy in _phase_pairs(k, s, p, qy):
            for qx in range(s):
                for dx, jx in _phase_pairs(k, s, p, qx):
                    wm[dpos[dy], dpos[dx], :, qy, qx, :] = w_np[:, :, jy, jx]
    K, N = nd * nd * cin, s * s * cout
    wm = wm.reshape(K, N)
    Kp, Np = _ru(K, 128), _ru(N, 128)
    wpad = np.zeros((Kp, Np), np.float32)
    wpad[:K, :N] = wm
    return jnp.asarray(wpad, dtype=jnp.bfloat16), tuple(D)


def _union_patches(x, D):
    """im2col over the union offset window: x [B,H,W,C] (bf16) -> [B*H*W, |D|^2*C] (bf16)."""
    B, H, W, C = x.shape
    plo = max(0, -min(D))
    phi = max(0, max(D))
    xp = jnp.pad(x, ((0, 0), (plo, phi), (plo, phi), (0, 0)))
    taps = [xp[:, plo + dy:plo + dy + H, plo + dx:plo + dx + W, :] for dy in D for dx in D]
    patches = jnp.stack(taps, axis=3)                         # [B, H, W, |D|^2, C]
    return patches.reshape(B * H * W, len(D) * len(D) * C)


# --------------------------------------------------------------------------------------
# Parameters
# --------------------------------------------------------------------------------------

def init_params(key, h_dim, basec, outc):
    """PyTorch-layout parameters of ConvGenerP (ConvTranspose2d weights [Cin,Cout,k,k])."""
    layer_defs = [
        (h_dim,     basec * 8, 4, 1, 0),
        (basec * 8, basec * 8, 4, 2, 1),
        (basec * 8, basec * 4, 4, 2, 1),
        (basec * 4, basec * 2, 4, 2, 1),
    ]
    blocks = []
    for (cin, cout, k, s, p) in layer_defs:
        key, k1, k2, k3 = jax.random.split(key, 4)
        w = 0.02 * jax.random.normal(k1, (cin, cout, k, k), jnp.float32)
        gamma = 1.0 + 0.1 * jax.random.normal(k2, (cout,), jnp.float32)
        beta = 0.1 * jax.random.normal(k3, (cout,), jnp.float32)
        blocks.append((w, gamma, beta, s, p))
    key, k1, k2 = jax.random.split(key, 3)
    w5 = 0.02 * jax.random.normal(k1, (basec * 2, outc, 3, 3), jnp.float32)
    b5 = 0.02 * jax.random.normal(k2, (outc,), jnp.float32)
    return {"blocks": blocks, "final": (w5, b5, 1, 1)}


def prepare_params(params):
    """Hoist all weight restructuring (phase stacking / pad / bf16 cast) out of the forward."""
    cfgs, arrs = [], []

    # Layer 1: 1x1 spatial input -> dense matmul, executed in plain XLA (perf review: a
    # pallas_call for a 2x16 @ 16x512 matmul is pure dispatch overhead).
    w_t, gamma, beta, s, p = params["blocks"][0]
    cin, cout, k, _ = map(int, w_t.shape)
    cfgs.append(dict(kind="dense_bn", k=k, cout=cout))
    arrs.append(dict(
        w=jnp.transpose(w_t, (0, 2, 3, 1)).reshape(cin, k * k * cout).astype(jnp.float32),
        gamma=gamma.astype(jnp.float32),
        beta=beta.astype(jnp.float32),
    ))

    # Strided layers 2..4: one phase-stacked matmul each.
    for (w_t, gamma, beta, s, p) in params["blocks"][1:]:
        cin, cout, k, _ = map(int, w_t.shape)
        assert k == s + 2 * p, "phase-stacked path assumes Ho == s*H"
        wpad, D = _stacked_weight(w_t, k, s, p)
        cfgs.append(dict(kind="bn", s=s, nphase=s * s, cout=cout,
                         Np=int(wpad.shape[1]), D=D))
        arrs.append(dict(w=wpad, gamma=gamma.astype(jnp.float32),
                         beta=beta.astype(jnp.float32)))

    # Final layer: 3x3 / stride-1 conv-transpose with bias + tanh.
    w_t, bias, s, p = params["final"]
    cin, cout, k, _ = map(int, w_t.shape)
    assert k == s + 2 * p
    wpad, D = _stacked_weight(w_t, k, s, p)
    Np = int(wpad.shape[1])
    cfgs.append(dict(kind="tanh", s=s, nphase=s * s, cout=cout, Np=Np, D=D))
    arrs.append(dict(
        w=wpad,
        bias=jnp.pad(bias.astype(jnp.float32), (0, Np - cout)).reshape(1, Np),
    ))
    return tuple(cfgs), arrs


# --------------------------------------------------------------------------------------
# Forward
# --------------------------------------------------------------------------------------

def _bn_relu_cols(y, s1, s2, gamma, beta, nphase, cout, count, Np, eps=1e-5):
    """Train-mode BN (biased var) from fused column sums; affine+ReLU per phase-column."""
    s1c = s1[:nphase * cout].reshape(nphase, cout).sum(axis=0)
    s2c = s2[:nphase * cout].reshape(nphase, cout).sum(axis=0)
    mean = s1c / count
    var = jnp.maximum(s2c / count - mean * mean, 0.0)
    scale = gamma * jax.lax.rsqrt(var + eps)
    shift = beta - mean * scale
    scale_cols = jnp.pad(jnp.tile(scale, nphase), (0, Np - nphase * cout))
    shift_cols = jnp.pad(jnp.tile(shift, nphase), (0, Np - nphase * cout))
    return affine_relu(y, scale_cols, shift_cols)


def _first_layer_dense(h2d, cfg, arr, eps=1e-5):
    """ConvTranspose2d(k,1,0) on a 1x1 input == dense matmul; left to XLA (tiny)."""
    B = h2d.shape[0]
    k, cout = cfg["k"], cfg["cout"]
    y = jnp.dot(h2d.astype(jnp.float32), arr["w"]).reshape(B, k, k, cout)
    mean = y.mean(axis=(0, 1, 2))
    var = jnp.maximum(((y - mean) ** 2).mean(axis=(0, 1, 2)), 0.0)
    y = (y - mean) * jax.lax.rsqrt(var + eps) * arr["gamma"] + arr["beta"]
    return jnp.maximum(y, 0.0).astype(jnp.bfloat16)           # [B, k, k, cout] NHWC bf16


def _deconv_bn_relu(x, cfg, arr):
    B, H, W, _ = x.shape
    s, nphase, cout, Np = cfg["s"], cfg["nphase"], cfg["cout"], cfg["Np"]
    patches = _union_patches(x, cfg["D"])                     # [B*H*W, |D|^2*Cin] bf16
    y, s1, s2 = matmul_stats(patches, arr["w"])               # 1 pallas_call for all phases
    yr = _bn_relu_cols(y, s1, s2, arr["gamma"], arr["beta"], nphase, cout,
                       count=float(B * H * W * nphase), Np=Np)
    # Depth-to-space: the matmul's N axis is already (qy, qx, cout)-ordered.
    out = yr[:, :nphase * cout].reshape(B, H, W, s, s, cout)
    return jnp.transpose(out, (0, 1, 3, 2, 4, 5)).reshape(B, s * H, s * W, cout)


def _deconv_bias_tanh(x, cfg, arr):
    B, H, W, _ = x.shape
    cout = cfg["cout"]
    patches = _union_patches(x, cfg["D"])
    y = matmul_bias_tanh(patches, arr["w"], arr["bias"])      # [B*H*W, Np] f32
    return y[:, :cout].reshape(B, H, W, cout)                 # s == 1 -> no shuffle needed


def conv_gener_p_forward(h_nchw, arrs, cfgs):
    """Pallas forward: h [B, h_dim, 1, 1] (NCHW) -> image [B, outc, Hout, Wout] (NCHW)."""
    B = h_nchw.shape[0]
    x = _first_layer_dense(h_nchw.reshape(B, -1), cfgs[0], arrs[0])
    for cfg, arr in zip(cfgs[1:], arrs[1:]):
        if cfg["kind"] == "bn":
            x = _deconv_bn_relu(x, cfg, arr)
        else:
            x = _deconv_bias_tanh(x, cfg, arr)
    return jnp.transpose(x, (0, 3, 1, 2))


# --------------------------------------------------------------------------------------
# Independent plain-JAX reference (XLA convs, f32)
# --------------------------------------------------------------------------------------

def _ref_conv_transpose(x, w_t, s, p):
    k = w_t.shape[2]
    w_conv = jnp.transpose(jnp.flip(w_t, (2, 3)), (1, 0, 2, 3))       # [Cout, Cin, k, k]
    pad = k - 1 - p
    return jax.lax.conv_general_dilated(
        x, w_conv, window_strides=(1, 1), padding=[(pad, pad), (pad, pad)],
        lhs_dilation=(s, s), rhs_dilation=(1, 1),
        dimension_numbers=("NCHW", "OIHW", "NCHW"))


def conv_gener_p_reference(h, params, eps=1e-5):
    x = h.astype(jnp.float32)
    for (w_t, gamma, beta, s, p) in params["blocks"]:
        x = _ref_conv_transpose(x, w_t, s, p)
        mean = x.mean(axis=(0, 2, 3), keepdims=True)
        var = ((x - mean) ** 2).mean(axis=(0, 2, 3), keepdims=True)   # biased (train-mode BN)
        x = (x - mean) * jax.lax.rsqrt(var + eps)
        x = x * gamma.reshape(1, -1, 1, 1) + beta.reshape(1, -1, 1, 1)
        x = jnp.maximum(x, 0.0)
    w_t, bias, s, p = params["final"]
    x = _ref_conv_transpose(x, w_t, s, p) + bias.reshape(1, -1, 1, 1)
    return jnp.tanh(x)


# --------------------------------------------------------------------------------------

if __name__ == "__main__":
    B, outc = 2, 3
    h_dim, basec = 16, 4
    v_shape = (B, outc, 32, 32)        # v_shape = [b, c, h, w]; 1x1 latent -> 32x32 image

    key = jax.random.PRNGKey(0)
    key, kh = jax.random.split(key)
    h = jax.random.normal(kh, (B, h_dim, 1, 1), jnp.float32)
    params = init_params(jax.random.PRNGKey(1), h_dim, basec, outc)

    cfgs, arrs = prepare_params(params)
    fwd = jax.jit(functools.partial(conv_gener_p_forward, cfgs=cfgs))

    v = fwd(h, arrs)
    v = jax.block_until_ready(v)
    assert v.shape == v_shape, (v.shape, v_shape)

    v_ref = conv_gener_p_reference(h, params)
    np.testing.assert_allclose(np.asarray(v), np.asarray(v_ref), atol=3e-2, rtol=3e-2)

    print("KERNEL_OK")
</pallas_src>

<mosaic_0001>
module attributes {stable_mosaic.version = 11 : i64} {
  func.func @_mm_stats_kernel(%arg0: i32, %arg1: i32, %arg2: memref<32x384xbf16, #tpu.memory_space<vmem>>, %arg3: memref<384x128xbf16, #tpu.memory_space<vmem>>, %arg4: memref<32x128xbf16, #tpu.memory_space<vmem>>, %arg5: memref<8x128xf32, #tpu.memory_space<vmem>>, %arg6: memref<8x128xf32, #tpu.memory_space<vmem>>) attributes {dimension_semantics = [#tpu.dimension_semantics<parallel>, #tpu.dimension_semantics<parallel>], iteration_bounds = array<i64: 1, 1>, scalar_prefetch = 0 : i64, scratch_operands = 0 : i64, tpu.core_type = #tpu.core_type<tc>, window_params = [{transform_indices = @transform_0, window_bounds = array<i64: 32, 384>}, {transform_indices = @transform_1, window_bounds = array<i64: 384, 128>}, {transform_indices = @transform_2, window_bounds = array<i64: 32, 128>}, {transform_indices = @transform_3, window_bounds = array<i64: 8, 128>}, {transform_indices = @transform_4, window_bounds = array<i64: 8, 128>}]} {
    %c0 = arith.constant 0 : index
    %c0_0 = arith.constant 0 : index
    %0 = vector.load %arg2[%c0, %c0_0] : memref<32x384xbf16, #tpu.memory_space<vmem>>, vector<32x384xbf16>
    %c0_1 = arith.constant 0 : index
    %c0_2 = arith.constant 0 : index
    %1 = vector.load %arg3[%c0_1, %c0_2] : memref<384x128xbf16, #tpu.memory_space<vmem>>, vector<384x128xbf16>
    %cst = arith.constant dense<0.000000e+00> : vector<32x128xf32>
    %2 = tpu.matmul %0, %1, %cst {dimension_numbers = #tpu.dot_dimension_numbers<[1], [0], [0], [1], [0, 0, 1, 1], [], []>} : vector<32x384xbf16>, vector<384x128xbf16>, vector<32x128xf32> -> vector<32x128xf32>
    %3 = arith.truncf %2 : vector<32x128xf32> to vector<32x128xbf16>
    %c0_3 = arith.constant 0 : index
    %c0_4 = arith.constant 0 : index
    %4 = vector.load %arg4[%c0_3, %c0_4] : memref<32x128xbf16, #tpu.memory_space<vmem>>, vector<32x128xbf16>
    tpu.vector_store %arg4[%c0_3, %c0_4], %3 {strides = array<i32>} : memref<32x128xbf16, #tpu.memory_space<vmem>>, vector<32x128xbf16>,
    %cst_5 = arith.constant dense<0.000000e+00> : vector<128xf32>
    %5 = vector.multi_reduction <add>, %2, %cst_5 [0] : vector<32x128xf32> to vector<128xf32>
    %6 = vector.shape_cast %5 : vector<128xf32> to vector<1x128xf32>
    %7 = arith.mulf %2, %2 : vector<32x128xf32>
    %cst_6 = arith.constant dense<0.000000e+00> : vector<128xf32>
    %8 = vector.multi_reduction <add>, %7, %cst_6 [0] : vector<32x128xf32> to vector<128xf32>
    %9 = vector.shape_cast %8 : vector<128xf32> to vector<1x128xf32>
    %10 = tpu.iota {dimensions = array<i32: 0>} : vector<8x128xi32>
    %c0_i32 = arith.constant 0 : i32
    %11 = vector.broadcast %c0_i32 : i32 to vector<8x128xi32>
    %12 = arith.cmpi eq, %10, %11 : vector<8x128xi32>
    %13 = vector.shape_cast %6 : vector<1x128xf32> to vector<1x128xf32>
    %14 = vector.broadcast %13 : vector<1x128xf32> to vector<8x128xf32>
    %cst_7 = arith.constant 0.000000e+00 : f32
    %15 = vector.broadcast %cst_7 : f32 to vector<8x128xf32>
    %16 = arith.select %12, %14, %15 : vector<8x128xi1>, vector<8x128xf32>
    %c0_8 = arith.constant 0 : index
    %c0_9 = arith.constant 0 : index
    %17 = vector.load %arg5[%c0_8, %c0_9] : memref<8x128xf32, #tpu.memory_space<vmem>>, vector<8x128xf32>
    tpu.vector_store %arg5[%c0_8, %c0_9], %16 {strides = array<i32>} : memref<8x128xf32, #tpu.memory_space<vmem>>, vector<8x128xf32>,
    %18 = vector.shape_cast %9 : vector<1x128xf32> to vector<1x128xf32>
    %19 = vector.broadcast %18 : vector<1x128xf32> to vector<8x128xf32>
    %cst_10 = arith.constant 0.000000e+00 : f32
    %20 = vector.broadcast %cst_10 : f32 to vector<8x128xf32>
    %21 = arith.select %12, %19, %20 : vector<8x128xi1>, vector<8x128xf32>
    %c0_11 = arith.constant 0 : index
    %c0_12 = arith.constant 0 : index
    %22 = vector.load %arg6[%c0_11, %c0_12] : memref<8x128xf32, #tpu.memory_space<vmem>>, vector<8x128xf32>
    tpu.vector_store %arg6[%c0_11, %c0_12], %21 {strides = array<i32>} : memref<8x128xf32, #tpu.memory_space<vmem>>, vector<8x128xf32>,
    return
  }
  func.func @transform_0(%arg0: i32, %arg1: i32) -> (i32, i32) {
    %c0_i32 = arith.constant 0 : i32
    %c0_i32_0 = arith.constant 0 : i32
    return %arg1, %c0_i32 : i32, i32
  }
  func.func @transform_1(%arg0: i32, %arg1: i32) -> (i32, i32) {
    %c0_i32 = arith.constant 0 : i32
    %c0_i32_0 = arith.constant 0 : i32
    return %c0_i32, %arg0 : i32, i32
  }
  func.func @transform_2(%arg0: i32, %arg1: i32) -> (i32, i32) {
    %c0_i32 = arith.constant 0 : i32
    return %arg1, %arg0 : i32, i32
  }
  func.func @transform_3(%arg0: i32, %arg1: i32) -> (i32, i32) {
    %c0_i32 = arith.constant 0 : i32
    return %arg1, %arg0 : i32, i32
  }
  func.func @transform_4(%arg0: i32, %arg1: i32) -> (i32, i32) {
    %c0_i32 = arith.constant 0 : i32
    return %arg1, %arg0 : i32, i32
  }
}

module attributes {stable_mosaic.version = 11 : i64} {
  func.func @_affine_relu_kernel(%arg0: i32, %arg1: memref<32x128xbf16, #tpu.memory_space<vmem>>, %arg2: memref<1x128xf32, #tpu.memory_space<vmem>>, %arg3: memref<1x128xf32, #tpu.memory_space<vmem>>, %arg4: memref<32x128xbf16, #tpu.memory_space<vmem>>) attributes {dimension_semantics = [#tpu.dimension_semantics<parallel>], iteration_bounds = array<i64: 1>, scalar_prefetch = 0 : i64, scratch_operands = 0 : i64, tpu.core_type = #tpu.core_type<tc>, window_params = [{transform_indices = @transform_0, window_bounds = array<i64: 32, 128>}, {pipeline_mode = #tpu.pipeline_mode<synchronous>, transform_indices = @transform_1, window_bounds = array<i64: 1, 128>}, {pipeline_mode = #tpu.pipeline_mode<synchronous>, transform_indices = @transform_2, window_bounds = array<i64: 1, 128>}, {transform_indices = @transform_3, window_bounds = array<i64: 32, 128>}]} {
    %c0 = arith.constant 0 : index
    %c0_0 = arith.constant 0 : index
    %0 = vector.load %arg1[%c0, %c0_0] : memref<32x128xbf16, #tpu.memory_space<vmem>>, vector<32x128xbf16>
    %1 = arith.extf %0 : vector<32x128xbf16> to vector<32x128xf32>
    %c0_1 = arith.constant 0 : index
    %c0_2 = arith.constant 0 : index
    %2 = vector.load %arg2[%c0_1, %c0_2] : memref<1x128xf32, #tpu.memory_space<vmem>>, vector<1x128xf32>
    %3 = vector.broadcast %2 : vector<1x128xf32> to vector<32x128xf32>
    %4 = arith.mulf %1, %3 : vector<32x128xf32>
    %c0_3 = arith.constant 0 : index
    %c0_4 = arith.constant 0 : index
    %5 = vector.load %arg3[%c0_3, %c0_4] : memref<1x128xf32, #tpu.memory_space<vmem>>, vector<1x128xf32>
    %6 = vector.broadcast %5 : vector<1x128xf32> to vector<32x128xf32>
    %7 = arith.addf %4, %6 : vector<32x128xf32>
    %cst = arith.constant 0.000000e+00 : f32
    %8 = vector.broadcast %cst : f32 to vector<32x128xf32>
    %9 = arith.maximumf %7, %8 : vector<32x128xf32>
    %10 = arith.truncf %9 : vector<32x128xf32> to vector<32x128xbf16>
    %c0_5 = arith.constant 0 : index
    %c0_6 = arith.constant 0 : index
    %11 = vector.load %arg4[%c0_5, %c0_6] : memref<32x128xbf16, #tpu.memory_space<vmem>>, vector<32x128xbf16>
    tpu.vector_store %arg4[%c0_5, %c0_6], %10 {strides = array<i32>} : memref<32x128xbf16, #tpu.memory_space<vmem>>, vector<32x128xbf16>,
    return
  }
  func.func @transform_0(%arg0: i32) -> (i32, i32) {
    %c0_i32 = arith.constant 0 : i32
    %c0_i32_0 = arith.constant 0 : i32
    return %arg0, %c0_i32 : i32, i32
  }
  func.func @transform_1(%arg0: i32) -> (i32, i32) {
    %c0_i32 = arith.constant 0 : i32
    %c0_i32_0 = arith.constant 0 : i32
    %c0_i32_1 = arith.constant 0 : i32
    return %c0_i32, %c0_i32_0 : i32, i32
  }
  func.func @transform_2(%arg0: i32) -> (i32, i32) {
    %c0_i32 = arith.constant 0 : i32
    %c0_i32_0 = arith.constant 0 : i32
    %c0_i32_1 = arith.constant 0 : i32
    return %c0_i32, %c0_i32_0 : i32, i32
  }
  func.func @transform_3(%arg0: i32) -> (i32, i32) {
    %c0_i32 = arith.constant 0 : i32
    %c0_i32_0 = arith.constant 0 : i32
    return %arg0, %c0_i32 : i32, i32
  }
}

module attributes {stable_mosaic.version = 11 : i64} {
  func.func @_mm_stats_kernel(%arg0: i32, %arg1: i32, %arg2: memref<128x384xbf16, #tpu.memory_space<vmem>>, %arg3: memref<384x128xbf16, #tpu.memory_space<vmem>>, %arg4: memref<128x128xbf16, #tpu.memory_space<vmem>>, %arg5: memref<8x128xf32, #tpu.memory_space<vmem>>, %arg6: memref<8x128xf32, #tpu.memory_space<vmem>>) attributes {dimension_semantics = [#tpu.dimension_semantics<parallel>, #tpu.dimension_semantics<parallel>], iteration_bounds = array<i64: 1, 1>, scalar_prefetch = 0 : i64, scratch_operands = 0 : i64, tpu.core_type = #tpu.core_type<tc>, window_params = [{transform_indices = @transform_0, window_bounds = array<i64: 128, 384>}, {transform_indices = @transform_1, window_bounds = array<i64: 384, 128>}, {transform_indices = @transform_2, window_bounds = array<i64: 128, 128>}, {transform_indices = @transform_3, window_bounds = array<i64: 8, 128>}, {transform_indices = @transform_4, window_bounds = array<i64: 8, 128>}]} {
    %c0 = arith.constant 0 : index
    %c0_0 = arith.constant 0 : index
    %0 = vector.load %arg2[%c0, %c0_0] : memref<128x384xbf16, #tpu.memory_space<vmem>>, vector<128x384xbf16>
    %c0_1 = arith.constant 0 : index
    %c0_2 = arith.constant 0 : index
    %1 = vector.load %arg3[%c0_1, %c0_2] : memref<384x128xbf16, #tpu.memory_space<vmem>>, vector<384x128xbf16>
    %cst = arith.constant dense<0.000000e+00> : vector<128x128xf32>
    %2 = tpu.matmul %0, %1, %cst {dimension_numbers = #tpu.dot_dimension_numbers<[1], [0], [0], [1], [0, 0, 1, 1], [], []>} : vector<128x384xbf16>, vector<384x128xbf16>, vector<128x128xf32> -> vector<128x128xf32>
    %3 = arith.truncf %2 : vector<128x128xf32> to vector<128x128xbf16>
    %c0_3 = arith.constant 0 : index
    %c0_4 = arith.constant 0 : index
    %4 = vector.load %arg4[%c0_3, %c0_4] : memref<128x128xbf16, #tpu.memory_space<vmem>>, vector<128x128xbf16>
    tpu.vector_store %arg4[%c0_3, %c0_4], %3 {strides = array<i32>} : memref<128x128xbf16, #tpu.memory_space<vmem>>, vector<128x128xbf16>,
    %cst_5 = arith.constant dense<0.000000e+00> : vector<128xf32>
    %5 = vector.multi_reduction <add>, %2, %cst_5 [0] : vector<128x128xf32> to vector<128xf32>
    %6 = vector.shape_cast %5 : vector<128xf32> to vector<1x128xf32>
    %7 = arith.mulf %2, %2 : vector<128x128xf32>
    %cst_6 = arith.constant dense<0.000000e+00> : vector<128xf32>
    %8 = vector.multi_reduction <add>, %7, %cst_6 [0] : vector<128x128xf32> to vector<128xf32>
    %9 = vector.shape_cast %8 : vector<128xf32> to vector<1x128xf32>
    %10 = tpu.iota {dimensions = array<i32: 0>} : vector<8x128xi32>
    %c0_i32 = arith.constant 0 : i32
    %11 = vector.broadcast %c0_i32 : i32 to vector<8x128xi32>
    %12 = arith.cmpi eq, %10, %11 : vector<8x128xi32>
    %13 = vector.shape_cast %6 : vector<1x128xf32> to vector<1x128xf32>
    %14 = vector.broadcast %13 : vector<1x128xf32> to vector<8x128xf32>
    %cst_7 = arith.constant 0.000000e+00 : f32
    %15 = vector.broadcast %cst_7 : f32 to vector<8x128xf32>
    %16 = arith.select %12, %14, %15 : vector<8x128xi1>, vector<8x128xf32>
    %c0_8 = arith.constant 0 : index
    %c0_9 = arith.constant 0 : index
    %17 = vector.load %arg5[%c0_8, %c0_9] : memref<8x128xf32, #tpu.memory_space<vmem>>, vector<8x128xf32>
    tpu.vector_store %arg5[%c0_8, %c0_9], %16 {strides = array<i32>} : memref<8x128xf32, #tpu.memory_space<vmem>>, vector<8x128xf32>,
    %18 = vector.shape_cast %9 : vector<1x128xf32> to vector<1x128xf32>
    %19 = vector.broadcast %18 : vector<1x128xf32> to vector<8x128xf32>
    %cst_10 = arith.constant 0.000000e+00 : f32
    %20 = vector.broadcast %cst_10 : f32 to vector<8x128xf32>
    %21 = arith.select %12, %19, %20 : vector<8x128xi1>, vector<8x128xf32>
    %c0_11 = arith.constant 0 : index
    %c0_12 = arith.constant 0 : index
    %22 = vector.load %arg6[%c0_11, %c0_12] : memref<8x128xf32, #tpu.memory_space<vmem>>, vector<8x128xf32>
    tpu.vector_store %arg6[%c0_11, %c0_12], %21 {strides = array<i32>} : memref<8x128xf32, #tpu.memory_space<vmem>>, vector<8x128xf32>,
    return
  }
  func.func @transform_0(%arg0: i32, %arg1: i32) -> (i32, i32) {
    %c0_i32 = arith.constant 0 : i32
    %c0_i32_0 = arith.constant 0 : i32
    return %arg1, %c0_i32 : i32, i32
  }
  func.func @transform_1(%arg0: i32, %arg1: i32) -> (i32, i32) {
    %c0_i32 = arith.constant 0 : i32
    %c0_i32_0 = arith.constant 0 : i32
    return %c0_i32, %arg0 : i32, i32
  }
  func.func @transform_2(%arg0: i32, %arg1: i32) -> (i32, i32) {
    %c0_i32 = arith.constant 0 : i32
    return %arg1, %arg0 : i32, i32
  }
  func.func @transform_3(%arg0: i32, %arg1: i32) -> (i32, i32) {
    %c0_i32 = arith.constant 0 : i32
    return %arg1, %arg0 : i32, i32
  }
  func.func @transform_4(%arg0: i32, %arg1: i32) -> (i32, i32) {
    %c0_i32 = arith.constant 0 : i32
    return %arg1, %arg0 : i32, i32
  }
}

module attributes {stable_mosaic.version = 11 : i64} {
  func.func @_affine_relu_kernel(%arg0: i32, %arg1: memref<128x128xbf16, #tpu.memory_space<vmem>>, %arg2: memref<1x128xf32, #tpu.memory_space<vmem>>, %arg3: memref<1x128xf32, #tpu.memory_space<vmem>>, %arg4: memref<128x128xbf16, #tpu.memory_space<vmem>>) attributes {dimension_semantics = [#tpu.dimension_semantics<parallel>], iteration_bounds = array<i64: 1>, scalar_prefetch = 0 : i64, scratch_operands = 0 : i64, tpu.core_type = #tpu.core_type<tc>, window_params = [{transform_indices = @transform_0, window_bounds = array<i64: 128, 128>}, {pipeline_mode = #tpu.pipeline_mode<synchronous>, transform_indices = @transform_1, window_bounds = array<i64: 1, 128>}, {pipeline_mode = #tpu.pipeline_mode<synchronous>, transform_indices = @transform_2, window_bounds = array<i64: 1, 128>}, {transform_indices = @transform_3, window_bounds = array<i64: 128, 128>}]} {
    %c0 = arith.constant 0 : index
    %c0_0 = arith.constant 0 : index
    %0 = vector.load %arg1[%c0, %c0_0] : memref<128x128xbf16, #tpu.memory_space<vmem>>, vector<128x128xbf16>
    %1 = arith.extf %0 : vector<128x128xbf16> to vector<128x128xf32>
    %c0_1 = arith.constant 0 : index
    %c0_2 = arith.constant 0 : index
    %2 = vector.load %arg2[%c0_1, %c0_2] : memref<1x128xf32, #tpu.memory_space<vmem>>, vector<1x128xf32>
    %3 = vector.broadcast %2 : vector<1x128xf32> to vector<128x128xf32>
    %4 = arith.mulf %1, %3 : vector<128x128xf32>
    %c0_3 = arith.constant 0 : index
    %c0_4 = arith.constant 0 : index
    %5 = vector.load %arg3[%c0_3, %c0_4] : memref<1x128xf32, #tpu.memory_space<vmem>>, vector<1x128xf32>
    %6 = vector.broadcast %5 : vector<1x128xf32> to vector<128x128xf32>
    %7 = arith.addf %4, %6 : vector<128x128xf32>
    %cst = arith.constant 0.000000e+00 : f32
    %8 = vector.broadcast %cst : f32 to vector<128x128xf32>
    %9 = arith.maximumf %7, %8 : vector<128x128xf32>
    %10 = arith.truncf %9 : vector<128x128xf32> to vector<128x128xbf16>
    %c0_5 = arith.constant 0 : index
    %c0_6 = arith.constant 0 : index
    %11 = vector.load %arg4[%c0_5, %c0_6] : memref<128x128xbf16, #tpu.memory_space<vmem>>, vector<128x128xbf16>
    tpu.vector_store %arg4[%c0_5, %c0_6], %10 {strides = array<i32>} : memref<128x128xbf16, #tpu.memory_space<vmem>>, vector<128x128xbf16>,
    return
  }
  func.func @transform_0(%arg0: i32) -> (i32, i32) {
    %c0_i32 = arith.constant 0 : i32
    %c0_i32_0 = arith.constant 0 : i32
    return %arg0, %c0_i32 : i32, i32
  }
  func.func @transform_1(%arg0: i32) -> (i32, i32) {
    %c0_i32 = arith.constant 0 : i32
    %c0_i32_0 = arith.constant 0 : i32
    %c0_i32_1 = arith.constant 0 : i32
    return %c0_i32, %c0_i32_0 : i32, i32
  }
  func.func @transform_2(%arg0: i32) -> (i32, i32) {
    %c0_i32 = arith.constant 0 : i32
    %c0_i32_0 = arith.constant 0 : i32
    %c0_i32_1 = arith.constant 0 : i32
    return %c0_i32, %c0_i32_0 : i32, i32
  }
  func.func @transform_3(%arg0: i32) -> (i32, i32) {
    %c0_i32 = arith.constant 0 : i32
    %c0_i32_0 = arith.constant 0 : i32
    return %arg0, %c0_i32 : i32, i32
  }
}

module attributes {stable_mosaic.version = 11 : i64} {
  func.func @_affine_relu_kernel(%arg0: i32, %arg1: memref<512x128xbf16, #tpu.memory_space<vmem>>, %arg2: memref<1x128xf32, #tpu.memory_space<vmem>>, %arg3: memref<1x128xf32, #tpu.memory_space<vmem>>, %arg4: memref<512x128xbf16, #tpu.memory_space<vmem>>) attributes {dimension_semantics = [#tpu.dimension_semantics<parallel>], iteration_bounds = array<i64: 1>, scalar_prefetch = 0 : i64, scratch_operands = 0 : i64, tpu.core_type = #tpu.core_type<tc>, window_params = [{transform_indices = @transform_0, window_bounds = array<i64: 512, 128>}, {pipeline_mode = #tpu.pipeline_mode<synchronous>, transform_indices = @transform_1, window_bounds = array<i64: 1, 128>}, {pipeline_mode = #tpu.pipeline_mode<synchronous>, transform_indices = @transform_2, window_bounds = array<i64: 1, 128>}, {transform_indices = @transform_3, window_bounds = array<i64: 512, 128>}]} {
    %c0 = arith.constant 0 : index
    %c0_0 = arith.constant 0 : index
    %0 = vector.load %arg1[%c0, %c0_0] : memref<512x128xbf16, #tpu.memory_space<vmem>>, vector<512x128xbf16>
    %1 = arith.extf %0 : vector<512x128xbf16> to vector<512x128xf32>
    %c0_1 = arith.constant 0 : index
    %c0_2 = arith.constant 0 : index
    %2 = vector.load %arg2[%c0_1, %c0_2] : memref<1x128xf32, #tpu.memory_space<vmem>>, vector<1x128xf32>
    %3 = vector.broadcast %2 : vector<1x128xf32> to vector<512x128xf32>
    %4 = arith.mulf %1, %3 : vector<512x128xf32>
    %c0_3 = arith.constant 0 : index
    %c0_4 = arith.constant 0 : index
    %5 = vector.load %arg3[%c0_3, %c0_4] : memref<1x128xf32, #tpu.memory_space<vmem>>, vector<1x128xf32>
    %6 = vector.broadcast %5 : vector<1x128xf32> to vector<512x128xf32>
    %7 = arith.addf %4, %6 : vector<512x128xf32>
    %cst = arith.constant 0.000000e+00 : f32
    %8 = vector.broadcast %cst : f32 to vector<512x128xf32>
    %9 = arith.maximumf %7, %8 : vector<512x128xf32>
    %10 = arith.truncf %9 : vector<512x128xf32> to vector<512x128xbf16>
    %c0_5 = arith.constant 0 : index
    %c0_6 = arith.constant 0 : index
    %11 = vector.load %arg4[%c0_5, %c0_6] : memref<512x128xbf16, #tpu.memory_space<vmem>>, vector<512x128xbf16>
    tpu.vector_store %arg4[%c0_5, %c0_6], %10 {strides = array<i32>} : memref<512x128xbf16, #tpu.memory_space<vmem>>, vector<512x128xbf16>,
    return
  }
  func.func @transform_0(%arg0: i32) -> (i32, i32) {
    %c0_i32 = arith.constant 0 : i32
    %c0_i32_0 = arith.constant 0 : i32
    return %arg0, %c0_i32 : i32, i32
  }
  func.func @transform_1(%arg0: i32) -> (i32, i32) {
    %c0_i32 = arith.constant 0 : i32
    %c0_i32_0 = arith.constant 0 : i32
    %c0_i32_1 = arith.constant 0 : i32
    return %c0_i32, %c0_i32_0 : i32, i32
  }
  func.func @transform_2(%arg0: i32) -> (i32, i32) {
    %c0_i32 = arith.constant 0 : i32
    %c0_i32_0 = arith.constant 0 : i32
    %c0_i32_1 = arith.constant 0 : i32
    return %c0_i32, %c0_i32_0 : i32, i32
  }
  func.func @transform_3(%arg0: i32) -> (i32, i32) {
    %c0_i32 = arith.constant 0 : i32
    %c0_i32_0 = arith.constant 0 : i32
    return %arg0, %c0_i32 : i32, i32
  }
}

module attributes {stable_mosaic.version = 11 : i64} {
  func.func @_mm_stats_kernel(%arg0: i32, %arg1: i32, %arg2: memref<256x256xbf16, #tpu.memory_space<vmem>>, %arg3: memref<256x128xbf16, #tpu.memory_space<vmem>>, %arg4: memref<256x128xbf16, #tpu.memory_space<vmem>>, %arg5: memref<8x128xf32, #tpu.memory_space<vmem>>, %arg6: memref<8x128xf32, #tpu.memory_space<vmem>>) attributes {dimension_semantics = [#tpu.dimension_semantics<parallel>, #tpu.dimension_semantics<parallel>], iteration_bounds = array<i64: 1, 2>, scalar_prefetch = 0 : i64, scratch_operands = 0 : i64, tpu.core_type = #tpu.core_type<tc>, window_params = [{transform_indices = @transform_0, window_bounds = array<i64: 256, 256>}, {transform_indices = @transform_1, window_bounds = array<i64: 256, 128>}, {transform_indices = @transform_2, window_bounds = array<i64: 256, 128>}, {transform_indices = @transform_3, window_bounds = array<i64: 8, 128>}, {transform_indices = @transform_4, window_bounds = array<i64: 8, 128>}]} {
    %c0 = arith.constant 0 : index
    %c0_0 = arith.constant 0 : index
    %0 = vector.load %arg2[%c0, %c0_0] : memref<256x256xbf16, #tpu.memory_space<vmem>>, vector<256x256xbf16>
    %c0_1 = arith.constant 0 : index
    %c0_2 = arith.constant 0 : index
    %1 = vector.load %arg3[%c0_1, %c0_2] : memref<256x128xbf16, #tpu.memory_space<vmem>>, vector<256x128xbf16>
    %cst = arith.constant dense<0.000000e+00> : vector<256x128xf32>
    %2 = tpu.matmul %0, %1, %cst {dimension_numbers = #tpu.dot_dimension_numbers<[1], [0], [0], [1], [0, 0, 1, 1], [], []>} : vector<256x256xbf16>, vector<256x128xbf16>, vector<256x128xf32> -> vector<256x128xf32>
    %3 = arith.truncf %2 : vector<256x128xf32> to vector<256x128xbf16>
    %c0_3 = arith.constant 0 : index
    %c0_4 = arith.constant 0 : index
    %4 = vector.load %arg4[%c0_3, %c0_4] : memref<256x128xbf16, #tpu.memory_space<vmem>>, vector<256x128xbf16>
    tpu.vector_store %arg4[%c0_3, %c0_4], %3 {strides = array<i32>} : memref<256x128xbf16, #tpu.memory_space<vmem>>, vector<256x128xbf16>,
    %cst_5 = arith.constant dense<0.000000e+00> : vector<128xf32>
    %5 = vector.multi_reduction <add>, %2, %cst_5 [0] : vector<256x128xf32> to vector<128xf32>
    %6 = vector.shape_cast %5 : vector<128xf32> to vector<1x128xf32>
    %7 = arith.mulf %2, %2 : vector<256x128xf32>
    %cst_6 = arith.constant dense<0.000000e+00> : vector<128xf32>
    %8 = vector.multi_reduction <add>, %7, %cst_6 [0] : vector<256x128xf32> to vector<128xf32>
    %9 = vector.shape_cast %8 : vector<128xf32> to vector<1x128xf32>
    %10 = tpu.iota {dimensions = array<i32: 0>} : vector<8x128xi32>
    %c0_i32 = arith.constant 0 : i32
    %11 = vector.broadcast %c0_i32 : i32 to vector<8x128xi32>
    %12 = arith.cmpi eq, %10, %11 : vector<8x128xi32>
    %13 = vector.shape_cast %6 : vector<1x128xf32> to vector<1x128xf32>
    %14 = vector.broadcast %13 : vector<1x128xf32> to vector<8x128xf32>
    %cst_7 = arith.constant 0.000000e+00 : f32
    %15 = vector.broadcast %cst_7 : f32 to vector<8x128xf32>
    %16 = arith.select %12, %14, %15 : vector<8x128xi1>, vector<8x128xf32>
    %c0_8 = arith.constant 0 : index
    %c0_9 = arith.constant 0 : index
    %17 = vector.load %arg5[%c0_8, %c0_9] : memref<8x128xf32, #tpu.memory_space<vmem>>, vector<8x128xf32>
    tpu.vector_store %arg5[%c0_8, %c0_9], %16 {strides = array<i32>} : memref<8x128xf32, #tpu.memory_space<vmem>>, vector<8x128xf32>,
    %18 = vector.shape_cast %9 : vector<1x128xf32> to vector<1x128xf32>
    %19 = vector.broadcast %18 : vector<1x128xf32> to vector<8x128xf32>
    %cst_10 = arith.constant 0.000000e+00 : f32
    %20 = vector.broadcast %cst_10 : f32 to vector<8x128xf32>
    %21 = arith.select %12, %19, %20 : vector<8x128xi1>, vector<8x128xf32>
    %c0_11 = arith.constant 0 : index
    %c0_12 = arith.constant 0 : index
    %22 = vector.load %arg6[%c0_11, %c0_12] : memref<8x128xf32, #tpu.memory_space<vmem>>, vector<8x128xf32>
    tpu.vector_store %arg6[%c0_11, %c0_12], %21 {strides = array<i32>} : memref<8x128xf32, #tpu.memory_space<vmem>>, vector<8x128xf32>,
    return
  }
  func.func @transform_0(%arg0: i32, %arg1: i32) -> (i32, i32) {
    %c0_i32 = arith.constant 0 : i32
    %c0_i32_0 = arith.constant 0 : i32
    return %arg1, %c0_i32 : i32, i32
  }
  func.func @transform_1(%arg0: i32, %arg1: i32) -> (i32, i32) {
    %c0_i32 = arith.constant 0 : i32
    %c0_i32_0 = arith.constant 0 : i32
    return %c0_i32, %arg0 : i32, i32
  }
  func.func @transform_2(%arg0: i32, %arg1: i32) -> (i32, i32) {
    %c0_i32 = arith.constant 0 : i32
    return %arg1, %arg0 : i32, i32
  }
  func.func @transform_3(%arg0: i32, %arg1: i32) -> (i32, i32) {
    %c0_i32 = arith.constant 0 : i32
    return %arg1, %arg0 : i32, i32
  }
  func.func @transform_4(%arg0: i32, %arg1: i32) -> (i32, i32) {
    %c0_i32 = arith.constant 0 : i32
    return %arg1, %arg0 : i32, i32
  }
}

module attributes {stable_mosaic.version = 11 : i64} {
  func.func @_mm_bias_tanh_kernel(%arg0: i32, %arg1: i32, %arg2: memref<256x128xbf16, #tpu.memory_space<vmem>>, %arg3: memref<128x128xbf16, #tpu.memory_space<vmem>>, %arg4: memref<1x128xf32, #tpu.memory_space<vmem>>, %arg5: memref<256x128xf32, #tpu.memory_space<vmem>>) attributes {dimension_semantics = [#tpu.dimension_semantics<parallel>, #tpu.dimension_semantics<parallel>], iteration_bounds = array<i64: 1, 8>, scalar_prefetch = 0 : i64, scratch_operands = 0 : i64, tpu.core_type = #tpu.core_type<tc>, window_params = [{transform_indices = @transform_0, window_bounds = array<i64: 256, 128>}, {transform_indices = @transform_1, window_bounds = array<i64: 128, 128>}, {transform_indices = @transform_2, window_bounds = array<i64: 1, 128>}, {transform_indices = @transform_3, window_bounds = array<i64: 256, 128>}]} {
    %c0 = arith.constant 0 : index
    %c0_0 = arith.constant 0 : index
    %0 = vector.load %arg2[%c0, %c0_0] : memref<256x128xbf16, #tpu.memory_space<vmem>>, vector<256x128xbf16>
    %c0_1 = arith.constant 0 : index
    %c0_2 = arith.constant 0 : index
    %1 = vector.load %arg3[%c0_1, %c0_2] : memref<128x128xbf16, #tpu.memory_space<vmem>>, vector<128x128xbf16>
    %cst = arith.constant dense<0.000000e+00> : vector<256x128xf32>
    %2 = tpu.matmul %0, %1, %cst {dimension_numbers = #tpu.dot_dimension_numbers<[1], [0], [0], [1], [0, 0, 1, 1], [], []>} : vector<256x128xbf16>, vector<128x128xbf16>, vector<256x128xf32> -> vector<256x128xf32>
    %c0_3 = arith.constant 0 : index
    %c0_4 = arith.constant 0 : index
    %3 = vector.load %arg4[%c0_3, %c0_4] : memref<1x128xf32, #tpu.memory_space<vmem>>, vector<1x128xf32>
    %4 = vector.broadcast %3 : vector<1x128xf32> to vector<256x128xf32>
    %5 = arith.addf %2, %4 : vector<256x128xf32>
    %6 = math.tanh %5 : vector<256x128xf32>
    %c0_5 = arith.constant 0 : index
    %c0_6 = arith.constant 0 : index
    %7 = vector.load %arg5[%c0_5, %c0_6] : memref<256x128xf32, #tpu.memory_space<vmem>>, vector<256x128xf32>
    tpu.vector_store %arg5[%c0_5, %c0_6], %6 {strides = array<i32>} : memref<256x128xf32, #tpu.memory_space<vmem>>, vector<256x128xf32>,
    return
  }
  func.func @transform_0(%arg0: i32, %arg1: i32) -> (i32, i32) {
    %c0_i32 = arith.constant 0 : i32
    %c0_i32_0 = arith.constant 0 : i32
    return %arg1, %c0_i32 : i32, i32
  }
  func.func @transform_1(%arg0: i32, %arg1: i32) -> (i32, i32) {
    %c0_i32 = arith.constant 0 : i32
    %c0_i32_0 = arith.constant 0 : i32
    return %c0_i32, %arg0 : i32, i32
  }
  func.func @transform_2(%arg0: i32, %arg1: i32) -> (i32, i32) {
    %c0_i32 = arith.constant 0 : i32
    %c0_i32_0 = arith.constant 0 : i32
    return %c0_i32, %arg0 : i32, i32
  }
  func.func @transform_3(%arg0: i32, %arg1: i32) -> (i32, i32) {
    %c0_i32 = arith.constant 0 : i32
    return %arg1, %arg0 : i32, i32
  }
}

</mosaic_0001>

<llo_original>
// kernel: tile.38
$region0: #{tile.38}
  #allocation0 [shape = 's32[1]{0}', space=sflag, size = 0x4, scoped, tag = 'scoped memory for tile.38']
  %s0 = inlined_call_operand.vmem [shape: f32[32], index: 0, kind: input, shape index: {}]
  %s1 = inlined_call_operand.vmem [shape: f32[4,32], index: 1, kind: output, shape index: {}]
  // Predicated region
  $region2: #{tile.38} parent=0 // pred_check
    _
  $region3: #{tile.38} parent=0 // pred_check_branch
    %3 = sbr.rel (0) target = $region5
  $region4: #{tile.38} parent=0 // pred_region
    _
  $region5: #{tile.38} parent=0 // pred_fallthru
    _
  %v4 = vld [vmem:[%s0] ss:$0 sm:$0xff]
  %5 = vst [vmem:[%s1] sm:$0xf] %v4

// kernel: conv_gener_p_forward.8
$region0: #{conv_gener_p_forward.8}
  #allocation0 [shape = 'u32[]', space=smem, size = 0x4, offset = 0x4, fixed_abs, tag = 'smem constant byte address 0x4 - core index']
  #allocation1 [shape = 'u32[144,128]{1,0:T(1,128)}', space=vmem, size = 0x12000, scoped, tag = 'internal scratch']
  %s0 = inlined_call_operand.vmem [shape: bf16[32,128], index: 0, kind: input, shape index: {}]
  %s1 = inlined_call_operand.vmem [shape: f32[1,128], index: 1, kind: input, shape index: {}]
  %s2 = inlined_call_operand.vmem [shape: f32[1,128], index: 2, kind: input, shape index: {}]
  %s3 = inlined_call_operand.vmem [shape: bf16[32,128], index: 3, kind: output, shape index: {}]
  %s4 = sld [smem:[#allocation0]]
  $region22: #{conv_gener_p_forward.8} parent=0
    _
  %s6 = ssub.s32 1, %s4
  %s7 = scalar_select 0, %s6, %s4
  // Predicated region
  $region2: #{conv_gener_p_forward.8} parent=0 // pred_check
    _
  $region3: #{conv_gener_p_forward.8} parent=0 // pred_check_branch
    %9 = sbr.rel (0) target = $region5
  $region4: #{conv_gener_p_forward.8} parent=0 // pred_region
    _
  $region5: #{conv_gener_p_forward.8} parent=0 // pred_fallthru
    _
  // Predicated region
  $region6: #{conv_gener_p_forward.8} parent=0 // pred_check
    _
  $region7: #{conv_gener_p_forward.8} parent=0 // pred_check_branch
    %11 = sbr.rel (0) target = $region9
  $region8: #{conv_gener_p_forward.8} parent=0 // pred_region
    _
  $region9: #{conv_gener_p_forward.8} parent=0 // pred_fallthru
    _
  // Predicated region
  $region10: #{conv_gener_p_forward.8} parent=0 // pred_check
    _
  $region11: #{conv_gener_p_forward.8} parent=0 // pred_check_branch
    %13 = sbr.rel (0) target = $region13
  $region12: #{conv_gener_p_forward.8} parent=0 // pred_region
    _
  $region13: #{conv_gener_p_forward.8} parent=0 // pred_fallthru
    _
  %v14 = vld [vmem:[%s0] sm:$0xf]
  %v15 = vld [vmem:[%s0 + $0x4] sm:$0xf]
  %v16 = vld [vmem:[%s0 + $0x8] sm:$0xf]
  %v17 = vld [vmem:[%s0 + $0xc] sm:$0xf]
  %v18 = vunpack.c.l.bf16 %v14
  %v19 = vunpack.c.l.bf16 %v15
  %v20 = vunpack.c.l.bf16 %v16
  %v21 = vunpack.c.l.bf16 %v17
  %v22 = vld [vmem:[%s1] sm:$0x1]
  %v24 = vlaneseq
  %v25 = vshrl.u32 %v24, 7
  %v26 = vsub.s32 0, %v25
  %v27 = vrot.slane %v22, %v26
  %v29 = vmul.f32 %v18, %v27
  %v30 = vmul.f32 %v19, %v27
  %v31 = vmul.f32 %v20, %v27
  %v32 = vmul.f32 %v21, %v27
  %v33 = vld [vmem:[%s2] sm:$0x1]
  %v35 = vlaneseq
  %v36 = vshrl.u32 %v35, 7
  %v37 = vsub.s32 0, %v36
  %v38 = vrot.slane %v33, %v37
  %v40 = vadd.f32 %v29, %v38
  %v41 = vadd.f32 %v30, %v38
  %v42 = vadd.f32 %v31, %v38
  %v43 = vadd.f32 %v32, %v38
  %v44 = vmax.f32 %v40, 0.0
  %v45 = vmax.f32 %v41, 0.0
  %v46 = vmax.f32 %v42, 0.0
  %v47 = vmax.f32 %v43, 0.0
  %v48 = vpack.c.bf16 %v45, %v44
  %v49 = vpack.c.bf16 %v47, %v46
  %v52 = vunpack.c.l.b16 %v48
  %v53 = vunpack.c.h.b16 %v48
  %v54 = vunpack.c.l.b16 %v49
  %v55 = vunpack.c.h.b16 %v49
  %v56 = vpack.c.b16 %v52, %v52
  %v57 = vpack.c.b16 %v53, %v53
  %v58 = vpack.c.b16 %v54, %v54
  %v59 = vpack.c.b16 %v55, %v55
  %64 = vst [vmem:[%s3] sm:$0xf] %v56
  %65 = vst [vmem:[%s3 + $0x4] sm:$0xf] %v57
  %66 = vst [vmem:[%s3 + $0x8] sm:$0xf] %v58
  %67 = vst [vmem:[%s3 + $0xc] sm:$0xf] %v59
  // Predicated region
  $region14: #{conv_gener_p_forward.8} parent=0 // pred_check
    _
  $region15: #{conv_gener_p_forward.8} parent=0 // pred_check_branch
    %69 = sbr.rel (0) target = $region17
  $region16: #{conv_gener_p_forward.8} parent=0 // pred_region
    _
  $region17: #{conv_gener_p_forward.8} parent=0 // pred_fallthru
    _
  // Predicated region
  $region18: #{conv_gener_p_forward.8} parent=0 // pred_check
    _
  $region19: #{conv_gener_p_forward.8} parent=0 // pred_check_branch
    %71 = sbr.rel (0) target = $region21
  $region20: #{conv_gener_p_forward.8} parent=0 // pred_region
    _
  $region21: #{conv_gener_p_forward.8} parent=0 // pred_fallthru
    _

// kernel: conv_gener_p_forward.7
$region0: #{conv_gener_p_forward.7}
  #allocation0 [shape = 'u32[]', space=smem, size = 0x4, offset = 0x4, fixed_abs, tag = 'smem constant byte address 0x4 - core index']
  #allocation1 [shape = 'u32[144,128]{1,0:T(1,128)}', space=vmem, size = 0x12000, scoped, tag = 'internal scratch']
  %s0 = inlined_call_operand.vmem [shape: bf16[32,384], index: 0, kind: input, shape index: {}]
  %s1 = inlined_call_operand.hbm [shape: bf16[384,128], index: 1, kind: input, shape index: {}]
  %s2 = inlined_call_operand.vmem [shape: bf16[32,128], index: 2, kind: output, shape index: {0}]
  %s3 = inlined_call_operand.vmem [shape: f32[8,128], index: 3, kind: output, shape index: {1}]
  %s4 = inlined_call_operand.vmem [shape: f32[8,128], index: 4, kind: output, shape index: {2}]
  %5 = xla_tuple %s2, %s3, %s4
  %s6 = sld [smem:[#allocation0]]
  $region38: #{conv_gener_p_forward.7} parent=0
    _
  %s8 = ssub.s32 1, %s6
  %s9 = scalar_select 0, %s8, %s6
  $region1: #{conv_gener_p_forward.7} parent=0
    #allocation2 [shape = 'u8[98304]{0}', space=vmem, size = 0x18000, scoped, tag = 'input window, operand 1, single buffered']
    #allocation3 [shape = 's32[1]{0}', space=sflag, size = 0x4, scoped, tag = 'scoped memory for conv_gener_p_forward.7']
    %10 = vsyncpa [#allocation3], 0
    // Predicated region
    $region2: #{conv_gener_p_forward.7} parent=1 // pred_check
      _
    $region3: #{conv_gener_p_forward.7} parent=1 // pred_check_branch
      %12 = sbr.rel (0) target = $region5
    $region4: #{conv_gener_p_forward.7} parent=1 // pred_region
      _
    $region5: #{conv_gener_p_forward.7} parent=1 // pred_fallthru
      _
    // Predicated region
    $region6: #{conv_gener_p_forward.7} parent=1 // pred_check
      _
    $region7: #{conv_gener_p_forward.7} parent=1 // pred_check_branch
      %14 = sbr.rel (0) target = $region9
    $region8: #{conv_gener_p_forward.7} parent=1 // pred_region
      %s16 = ssub.s32 3072, 3072
      %17 = vsyncadd [#allocation3], %s16
      %s18 = sshll.u32 [#allocation2], 4
      %s19 = int_to_ptr.vmem [resolvable:$true] %s18
      %24 = dma.hbm_to_vmem [thread:$0]  %s1, 3072, %s19, [#allocation3], 64, 64, 4
    $region9: #{conv_gener_p_forward.7} parent=1 // pred_fallthru
      _
    // Predicated region
    $region10: #{conv_gener_p_forward.7} parent=1 // pred_check
      _
    $region11: #{conv_gener_p_forward.7} parent=1 // pred_check_branch
      %26 = sbr.rel (0) target = $region13
    $region12: #{conv_gener_p_forward.7} parent=1 // pred_region
      %27 = dma.done [#allocation3], 3072
    $region13: #{conv_gener_p_forward.7} parent=1 // pred_fallthru
      _
    %v29 = vld [vmem:[%s0] sm:$0xff]
    %v30 = vld [vmem:[%s0 + $0x8] sm:$0xf]
    %v31 = vld [vmem:[%s0 + $0xc] sm:$0xff]
    %v32 = vld [vmem:[%s0 + $0x14] sm:$0xf]
    %v33 = vld [vmem:[%s0 + $0x18] sm:$0xff]
    %v34 = vld [vmem:[%s0 + $0x20] sm:$0xf]
    %v35 = vld [vmem:[%s0 + $0x24] sm:$0xff]
    %v36 = vld [vmem:[%s0 + $0x2c] sm:$0xf]
    %v37 = vld [vmem:[#allocation2] sm:$0xf]
    %v38 = vld [vmem:[#allocation2 + $0x4] sm:$0xf]
    %v39 = vld [vmem:[#allocation2 + $0x8] sm:$0xf]
    %v40 = vld [vmem:[#allocation2 + $0xc] sm:$0xf]
    %v41 = vld [vmem:[#allocation2 + $0x10] sm:$0xf]
    %v42 = vld [vmem:[#allocation2 + $0x14] sm:$0xf]
    %v43 = vld [vmem:[#allocation2 + $0x18] sm:$0xf]
    %v44 = vld [vmem:[#allocation2 + $0x1c] sm:$0xf]
    %v45 = vld [vmem:[#allocation2 + $0x20] sm:$0xf]
    %v46 = vld [vmem:[#allocation2 + $0x24] sm:$0xf]
    %v47 = vld [vmem:[#allocation2 + $0x28] sm:$0xf]
    %v48 = vld [vmem:[#allocation2 + $0x2c] sm:$0xf]
    %v49 = vld [vmem:[#allocation2 + $0x30] sm:$0xf]
    %v50 = vld [vmem:[#allocation2 + $0x34] sm:$0xf]
    %v51 = vld [vmem:[#allocation2 + $0x38] sm:$0xf]
    %v52 = vld [vmem:[#allocation2 + $0x3c] sm:$0xf]
    %v53 = vld [vmem:[#allocation2 + $0x40] sm:$0xf]
    %v54 = vld [vmem:[#allocation2 + $0x44] sm:$0xf]
    %v55 = vld [vmem:[#allocation2 + $0x48] sm:$0xf]
    %v56 = vld [vmem:[#allocation2 + $0x4c] sm:$0xf]
    %v57 = vld [vmem:[#allocation2 + $0x50] sm:$0xf]
    %v58 = vld [vmem:[#allocation2 + $0x54] sm:$0xf]
    %v59 = vld [vmem:[#allocation2 + $0x58] sm:$0xf]
    %v60 = vld [vmem:[#allocation2 + $0x5c] sm:$0xf]
    %v61 = vld [vmem:[#allocation2 + $0x60] sm:$0xf]
    %v62 = vld [vmem:[#allocation2 + $0x64] sm:$0xf]
    %v63 = vld [vmem:[#allocation2 + $0x68] sm:$0xf]
    %v64 = vld [vmem:[#allocation2 + $0x6c] sm:$0xf]
    %v65 = vld [vmem:[#allocation2 + $0x70] sm:$0xf]
    %v66 = vld [vmem:[#allocation2 + $0x74] sm:$0xf]
    %v67 = vld [vmem:[#allocation2 + $0x78] sm:$0xf]
    %v68 = vld [vmem:[#allocation2 + $0x7c] sm:$0xf]
    %v69 = vld [vmem:[#allocation2 + $0x80] sm:$0xf]
    %v70 = vld [vmem:[#allocation2 + $0x84] sm:$0xf]
    %v71 = vld [vmem:[#allocation2 + $0x88] sm:$0xf]
    %v72 = vld [vmem:[#allocation2 + $0x8c] sm:$0xf]
    %v73 = vld [vmem:[#allocation2 + $0x90] sm:$0xf]
    %v74 = vld [vmem:[#allocation2 + $0x94] sm:$0xf]
    %v75 = vld [vmem:[#allocation2 + $0x98] sm:$0xf]
    %v76 = vld [vmem:[#allocation2 + $0x9c] sm:$0xf]
    %v77 = vld [vmem:[#allocation2 + $0xa0] sm:$0xf]
    %v78 = vld [vmem:[#allocation2 + $0xa4] sm:$0xf]
    %v79 = vld [vmem:[#allocation2 + $0xa8] sm:$0xf]
    %v80 = vld [vmem:[#allocation2 + $0xac] sm:$0xf]
    %v81 = vld [vmem:[#allocation2 + $0xb0] sm:$0xf]
    %v82 = vld [vmem:[#allocation2 + $0xb4] sm:$0xf]
    %v83 = vld [vmem:[#allocation2 + $0xb8] sm:$0xf]
    %v84 = vld [vmem:[#allocation2 + $0xbc] sm:$0xf]
    %v93 = vunpack.c.l.b16 %v29
    %v94 = vunpack.c.h.b16 %v29
    %v95 = vunpack.c.l.b16 %v30
    %v96 = vunpack.c.l.b16 %v31
    %v97 = vunpack.c.h.b16 %v31
    %v98 = vunpack.c.l.b16 %v32
    %v99 = vunpack.c.l.b16 %v33
    %v100 = vunpack.c.h.b16 %v33
    %v101 = vunpack.c.l.b16 %v34
    %v102 = vunpack.c.l.b16 %v35
    %v103 = vunpack.c.h.b16 %v35
    %v104 = vunpack.c.l.b16 %v36
    %v105 = vpack.c.b16 %v96, %v93
    %v106 = vpack.c.b16 %v97, %v94
    %v107 = vpack.c.b16 %v98, %v95
    %v108 = vpack.c.b16 %v102, %v99
    %v109 = vpack.c.b16 %v103, %v100
    %v110 = vpack.c.b16 %v104, %v101
    %v165 = vunpack.c.l.b16 %v37
    %v166 = vunpack.c.l.b16 %v38
    %v167 = vunpack.c.l.b16 %v39
    %v168 = vunpack.c.l.b16 %v40
    %v169 = vunpack.c.l.b16 %v41
    %v170 = vunpack.c.l.b16 %v42
    %v171 = vunpack.c.l.b16 %v43
    %v172 = vunpack.c.l.b16 %v44
    %v173 = vunpack.c.l.b16 %v45
    %v174 = vunpack.c.l.b16 %v46
    %v175 = vunpack.c.l.b16 %v47
    %v176 = vunpack.c.l.b16 %v48
    %v177 = vunpack.c.l.b16 %v49
    %v178 = vunpack.c.l.b16 %v50
    %v179 = vunpack.c.l.b16 %v51
    %v180 = vunpack.c.l.b16 %v52
    %v181 = vunpack.c.l.b16 %v53
    %v182 = vunpack.c.l.b16 %v54
    %v183 = vunpack.c.l.b16 %v55
    %v184 = vunpack.c.l.b16 %v56
    %v185 = vunpack.c.l.b16 %v57
    %v186 = vunpack.c.l.b16 %v58
    %v187 = vunpack.c.l.b16 %v59
    %v188 = vunpack.c.l.b16 %v60
    %v189 = vunpack.c.l.b16 %v61
    %v190 = vunpack.c.l.b16 %v62
    %v191 = vunpack.c.l.b16 %v63
    %v192 = vunpack.c.l.b16 %v64
    %v193 = vunpack.c.l.b16 %v65
    %v194 = vunpack.c.l.b16 %v66
    %v195 = vunpack.c.l.b16 %v67
    %v196 = vunpack.c.l.b16 %v68
    %v197 = vunpack.c.l.b16 %v69
    %v198 = vunpack.c.l.b16 %v70
    %v199 = vunpack.c.l.b16 %v71
    %v200 = vunpack.c.l.b16 %v72
    %v201 = vunpack.c.l.b16 %v73
    %v202 = vunpack.c.l.b16 %v74
    %v203 = vunpack.c.l.b16 %v75
    %v204 = vunpack.c.l.b16 %v76
    %v205 = vunpack.c.l.b16 %v77
    %v206 = vunpack.c.l.b16 %v78
    %v207 = vunpack.c.l.b16 %v79
    %v208 = vunpack.c.l.b16 %v80
    %v209 = vunpack.c.l.b16 %v81
    %v210 = vunpack.c.l.b16 %v82
    %v211 = vunpack.c.l.b16 %v83
    %v212 = vunpack.c.l.b16 %v84
    %v213 = vpack.c.b16 %v166, %v165
    %v214 = vpack.c.b16 %v168, %v167
    %v215 = vpack.c.b16 %v170, %v169
    %v216 = vpack.c.b16 %v172, %v171
    %v217 = vpack.c.b16 %v174, %v173
    %v218 = vpack.c.b16 %v176, %v175
    %v219 = vpack.c.b16 %v178, %v177
    %v220 = vpack.c.b16 %v180, %v179
    %v221 = vpack.c.b16 %v182, %v181
    %v222 = vpack.c.b16 %v184, %v183
    %v223 = vpack.c.b16 %v186, %v185
    %v224 = vpack.c.b16 %v188, %v187
    %v225 = vpack.c.b16 %v190, %v189
    %v226 = vpack.c.b16 %v192, %v191
    %v227 = vpack.c.b16 %v194, %v193
    %v228 = vpack.c.b16 %v196, %v195
    %v229 = vpack.c.b16 %v198, %v197
    %v230 = vpack.c.b16 %v200, %v199
    %v231 = vpack.c.b16 %v202, %v201
    %v232 = vpack.c.b16 %v204, %v203
    %v233 = vpack.c.b16 %v206, %v205
    %v234 = vpack.c.b16 %v208, %v207
    %v235 = vpack.c.b16 %v210, %v209
    %v236 = vpack.c.b16 %v212, %v211
    %261 = vmatprep.subr.bf16.mxu0 0
    %262 = vmatpush1.bf16.msra.mxu0 %v220
    %263 = vmatprep.subr.bf16.mxu0 0
    %264 = vmatpush1.bf16.msra.mxu0 %v219
    %265 = vmatprep.subr.bf16.mxu0 0
    %266 = vmatpush1.bf16.msra.mxu0 %v218
    %267 = vmatprep.subr.bf16.mxu0 0
    %268 = vmatpush1.bf16.msra.mxu0 %v217
    %269 = vmatprep.subr.bf16.mxu0 0
    %270 = vmatpush1.bf16.msra.mxu0 %v216
    %271 = vmatprep.subr.bf16.mxu0 0
    %272 = vmatpush1.bf16.msra.mxu0 %v215
    %273 = vmatprep.subr.bf16.mxu0 0
    %274 = vmatpush1.bf16.msra.mxu0 %v214
    %275 = vmatprep.subr.bf16.mxu0 0
    %276 = vmatpush1.bf16.msra.mxu0 %v213
    %277 = vmatprep.subr.bf16.mxu0 0
    %278 = vmatpush2.bf16.msra.mxu0 %v228
    %279 = vmatprep.subr.bf16.mxu0 0
    %280 = vmatpush2.bf16.msra.mxu0 %v227
    %281 = vmatprep.subr.bf16.mxu0 0
    %282 = vmatpush2.bf16.msra.mxu0 %v226
    %283 = vmatprep.subr.bf16.mxu0 0
    %284 = vmatpush2.bf16.msra.mxu0 %v225
    %285 = vmatprep.subr.bf16.mxu0 0
    %286 = vmatpush2.bf16.msra.mxu0 %v224
    %287 = vmatprep.subr.bf16.mxu0 0
    %288 = vmatpush2.bf16.msra.mxu0 %v223
    %289 = vmatprep.subr.bf16.mxu0 0
    %290 = vmatpush2.bf16.msra.mxu0 %v222
    %291 = vmatprep.subr.bf16.mxu0 0
    %292 = vmatpush2.bf16.msra.mxu0 %v221
    %293 = vmatprep.mubr.bf16.mxu0 %v106
    %294 = vmatmul.mubr.bf16.gmra.mxu0 %v105
    %v295 = vpop.f32.mrf.mxu0
    %v296 = vadd.f32 0.0, %v295
    %v297 = vpop.f32.mrf.mxu0
    %v298 = vpop.f32.mrf.mxu0
    %v299 = vadd.f32 0.0, %v298
    %v300 = vpop.f32.mrf.mxu0
    %301 = vmatprep.mubr.bf16.mxu0 %v109
    %302 = vmatmul.mubr.bf16.gmra.mxu0 %v108
    %v303 = vpop.f32.mrf.mxu0
    %v304 = vadd.f32 0.0, %v303
    %v305 = vpop.f32.mrf.mxu0
    %v306 = vpop.f32.mrf.mxu0
    %v307 = vadd.f32 0.0, %v306
    %v308 = vpop.f32.mrf.mxu0
    %309 = vdwg.mxu0
    %310 = vmatprep.subr.bf16.mxu0 0
    %311 = vmatpush1.bf16.msra.mxu0 %v236
    %312 = vmatprep.subr.bf16.mxu0 0
    %313 = vmatpush1.bf16.msra.mxu0 %v235
    %314 = vmatprep.subr.bf16.mxu0 0
    %315 = vmatpush1.bf16.msra.mxu0 %v234
    %316 = vmatprep.subr.bf16.mxu0 0
    %317 = vmatpush1.bf16.msra.mxu0 %v233
    %318 = vmatprep.subr.bf16.mxu0 0
    %319 = vmatpush1.bf16.msra.mxu0 %v232
    %320 = vmatprep.subr.bf16.mxu0 0
    %321 = vmatpush1.bf16.msra.mxu0 %v231
    %322 = vmatprep.subr.bf16.mxu0 0
    %323 = vmatpush1.bf16.msra.mxu0 %v230
    %324 = vmatprep.subr.bf16.mxu0 0
    %325 = vmatpush1.bf16.msra.mxu0 %v229
    %326 = vmatprep.subr.bf16.mxu0 0
    %327 = vmatpush2.bf16.msra.mxu0 0
    %328 = vmatprep.subr.bf16.mxu0 0
    %329 = vmatpush2.bf16.msra.mxu0 0
    %330 = vmatprep.subr.bf16.mxu0 0
    %331 = vmatpush2.bf16.msra.mxu0 0
    %332 = vmatprep.subr.bf16.mxu0 0
    %333 = vmatpush2.bf16.msra.mxu0 0
    %334 = vmatprep.subr.bf16.mxu0 0
    %335 = vmatpush2.bf16.msra.mxu0 0
    %336 = vmatprep.subr.bf16.mxu0 0
    %337 = vmatpush2.bf16.msra.mxu0 0
    %338 = vmatprep.subr.bf16.mxu0 0
    %339 = vmatpush2.bf16.msra.mxu0 0
    %340 = vmatprep.subr.bf16.mxu0 0
    %341 = vmatpush2.bf16.msra.mxu0 0
    %342 = vmatprep.mubr.bf16.mxu0 0
    %343 = vmatmul.mubr.bf16.gmra.mxu0 %v107
    %v344 = vpop.f32.mrf.mxu0
    %v345 = vadd.f32 %v296, %v344
    %v346 = vpop.f32.mrf.mxu0
    %v347 = vpop.f32.mrf.mxu0
    %v348 = vadd.f32 %v299, %v347
    %v349 = vpop.f32.mrf.mxu0
    %350 = vmatprep.mubr.bf16.mxu0 0
    %351 = vmatmul.mubr.bf16.gmra.mxu0 %v110
    %v352 = vpop.f32.mrf.mxu0
    %v353 = vadd.f32 %v304, %v352
    %v354 = vpop.f32.mrf.mxu0
    %v355 = vpop.f32.mrf.mxu0
    %v356 = vadd.f32 %v307, %v355
    %v357 = vpop.f32.mrf.mxu0
    %358 = vdwg.mxu0
    %v359 = vpack.c.bf16 %v348, %v345
    %v360 = vpack.c.bf16 %v356, %v353
    %v363 = vunpack.c.l.b16 %v359
    %v364 = vunpack.c.h.b16 %v359
    %v365 = vunpack.c.l.b16 %v360
    %v366 = vunpack.c.h.b16 %v360
    %v367 = vpack.c.b16 %v363, %v363
    %v368 = vpack.c.b16 %v364, %v364
    %v369 = vpack.c.b16 %v365, %v365
    %v370 = vpack.c.b16 %v366, %v366
    %375 = vst [vmem:[%s2] sm:$0xf] %v367
    %376 = vst [vmem:[%s2 + $0x4] sm:$0xf] %v368
    %377 = vst [vmem:[%s2 + $0x8] sm:$0xf] %v369
    %378 = vst [vmem:[%s2 + $0xc] sm:$0xf] %v370
    %v379 = vadd.f32 %v345, %v348
    %v380 = vadd.f32 %v379, %v353
    %v381 = vadd.f32 %v380, %v356
    %v382 = vrot.slane %v381, 4
    %v383 = vadd.f32 %v381, %v382
    %v384 = vrot.slane %v383, 2
    %v385 = vadd.f32 %v383, %v384
    %v386 = vrot.slane %v385, 1
    %v387 = vadd.f32 %v385, %v386
    %v388 = vmul.f32 %v345, %v345
    %v389 = vmul.f32 %v348, %v348
    %v390 = vmul.f32 %v353, %v353
    %v391 = vmul.f32 %v356, %v356
    %v392 = vadd.f32 %v388, %v389
    %v393 = vadd.f32 %v392, %v390
    %v394 = vadd.f32 %v393, %v391
    %v395 = vrot.slane %v394, 4
    %v396 = vadd.f32 %v394, %v395
    %v397 = vrot.slane %v396, 2
    %v398 = vadd.f32 %v396, %v397
    %v399 = vrot.slane %v398, 1
    %v400 = vadd.f32 %v398, %v399
    %v401 = vlaneseq
    %v402 = vshrl.u32 %v401, 7
    %vm403 = vcmp.eq.s32.totalorder %v402, 0
    %v404 = vsel %vm403, %v387, 0.0
    %405 = vst [vmem:[%s3] sm:$0xff] %v404
    %v406 = vsel %vm403, %v400, 0.0
    %407 = vst [vmem:[%s4] sm:$0xff] %v406
    // Predicated region
    $region14: #{conv_gener_p_forward.7} parent=1 // pred_check
      _
    $region15: #{conv_gener_p_forward.7} parent=1 // pred_check_branch
      %409 = sbr.rel (0) target = $region17
    $region16: #{conv_gener_p_forward.7} parent=1 // pred_region
      _
    $region17: #{conv_gener_p_forward.7} parent=1 // pred_fallthru
      _
    // Predicated region
    $region18: #{conv_gener_p_forward.7} parent=1 // pred_check
      _
    $region19: #{conv_gener_p_forward.7} parent=1 // pred_check_branch
      %411 = sbr.rel (0) target = $region21
    $region20: #{conv_gener_p_forward.7} parent=1 // pred_region
      _
    $region21: #{conv_gener_p_forward.7} parent=1 // pred_fallthru
      _
    // Predicated region
    $region22: #{conv_gener_p_forward.7} parent=1 // pred_check
      _
    $region23: #{conv_gener_p_forward.7} parent=1 // pred_check_branch
      %413 = sbr.rel (0) target = $region25
    $region24: #{conv_gener_p_forward.7} parent=1 // pred_region
      _
    $region25: #{conv_gener_p_forward.7} parent=1 // pred_fallthru
      _
    // Predicated region
    $region26: #{conv_gener_p_forward.7} parent=1 // pred_check
      _
    $region27: #{conv_gener_p_forward.7} parent=1 // pred_check_branch
      %415 = sbr.rel (0) target = $region29
    $region28: #{conv_gener_p_forward.7} parent=1 // pred_region
      _
    $region29: #{conv_gener_p_forward.7} parent=1 // pred_fallthru
      _
    // Predicated region
    $region30: #{conv_gener_p_forward.7} parent=1 // pred_check
      _
    $region31: #{conv_gener_p_forward.7} parent=1 // pred_check_branch
      %417 = sbr.rel (0) target = $region33
    $region32: #{conv_gener_p_forward.7} parent=1 // pred_region
      _
    $region33: #{conv_gener_p_forward.7} parent=1 // pred_fallthru
      _
    // Predicated region
    $region34: #{conv_gener_p_forward.7} parent=1 // pred_check
      _
    $region35: #{conv_gener_p_forward.7} parent=1 // pred_check_branch
      %419 = sbr.rel (0) target = $region37
    $region36: #{conv_gener_p_forward.7} parent=1 // pred_region
      _
    $region37: #{conv_gener_p_forward.7} parent=1 // pred_fallthru
      _
    %420 = vsyncpa [#allocation3], 1

// kernel: tile.48
$region0: #{tile.48}
  #allocation0 [shape = 's32[1]{0}', space=sflag, size = 0x4, scoped, tag = 'scoped memory for tile.48']
  %s0 = inlined_call_operand.vmem [shape: f32[16], index: 0, kind: input, shape index: {}]
  %s1 = inlined_call_operand.vmem [shape: f32[4,16], index: 1, kind: output, shape index: {}]
  // Predicated region
  $region2: #{tile.48} parent=0 // pred_check
    _
  $region3: #{tile.48} parent=0 // pred_check_branch
    %3 = sbr.rel (0) target = $region5
  $region4: #{tile.48} parent=0 // pred_region
    _
  $region5: #{tile.48} parent=0 // pred_fallthru
    _
  %v4 = vld [vmem:[%s0] ss:$0 sm:$0xff]
  %5 = vst [vmem:[%s1] sm:$0xf] %v4

// kernel: tile.49
$region0: #{tile.49}
  %s0 = inlined_call_operand.vmem [shape: f32[4,16], index: 0, kind: input, shape index: {}]
  %s1 = inlined_call_operand.vmem [shape: f32[64], index: 1, kind: output, shape index: {}]
  $region1: #{tile.49} parent=0
    #allocation0 [shape = 'u8[4096]{0}', space=vmem, size = 0x1000, scoped, tag = 'scoped mem for output reshape']
    #allocation1 [shape = 'u8[4096]{0}', space=vmem, size = 0x1000, scoped, tag = 'scoped mem for input reshape']
    %s3 = sshll.u32 1, 4
    %s4 = ssub.s32 %s3, 1
    %v5 = vld [vmem:[%s0] sm:%s4]
    %6 = vst [vmem:[#allocation1] sm:%s4] %v5
    %v7 = vld [vmem:[#allocation1] sm:$0x1]
    %vm8 = vcmask 130048
    %9 = vst.msk [vmem:[#allocation0] sm:$0x1] %vm8, %v7
    %s10 = scalar_lea.vmem [#allocation1], 3
    %v11 = vld [vmem:[%s10] sm:$0x1]
    %12 = vrot.lane.b32.xlu0 %v11, 48
    %v13 = vpop.permute.xlu0 %12
    %vm14 = vcmask 523648
    %15 = vst.msk [vmem:[#allocation0] sm:$0x1] %vm14, %v13
    %s16 = scalar_lea.vmem [#allocation1], 2
    %v17 = vld [vmem:[%s16] sm:$0x1]
    %18 = vrot.lane.b32.xlu0 %v17, 32
    %v19 = vpop.permute.xlu0 %18
    %vm20 = vcmask 392448
    %21 = vst.msk [vmem:[#allocation0] sm:$0x1] %vm20, %v19
    %s22 = scalar_lea.vmem [#allocation1], 1
    %v23 = vld [vmem:[%s22] sm:$0x1]
    %24 = vrot.lane.b32.xlu0 %v23, 16
    %v25 = vpop.permute.xlu0 %24
    %vm26 = vcmask 261248
    %27 = vst.msk [vmem:[#allocation0] sm:$0x1] %vm26, %v25
    %s29 = sshll.u32 1, 1
    %s30 = ssub.s32 %s29, 1
    %v32 = vld [vmem:[#allocation0] sm:%s30]
    %s33 = sshll.u32 1, 1
    %s34 = ssub.s32 %s33, 1
    %35 = vst [vmem:[%s1] sm:%s34] %v32

// kernel: conv_gener_p_forward.9
$region0: #{conv_gener_p_forward.9}
  #allocation0 [shape = 'u32[]', space=smem, size = 0x4, offset = 0x4, fixed_abs, tag = 'smem constant byte address 0x4 - core index']
  #allocation1 [shape = 'u32[144,128]{1,0:T(1,128)}', space=vmem, size = 0x12000, scoped, tag = 'internal scratch']
  %s0 = inlined_call_operand.vmem [shape: bf16[128,384], index: 0, kind: input, shape index: {}]
  %s1 = inlined_call_operand.vmem [shape: bf16[384,128], index: 1, kind: input, shape index: {}]
  %s2 = inlined_call_operand.vmem [shape: bf16[128,128], index: 2, kind: output, shape index: {0}]
  %s3 = inlined_call_operand.vmem [shape: f32[8,128], index: 3, kind: output, shape index: {1}]
  %s4 = inlined_call_operand.vmem [shape: f32[8,128], index: 4, kind: output, shape index: {2}]
  %5 = xla_tuple %s2, %s3, %s4
  %s6 = sld [smem:[#allocation0]]
  $region34: #{conv_gener_p_forward.9} parent=0
    _
  %s8 = ssub.s32 1, %s6
  %s9 = scalar_select 0, %s8, %s6
  // Predicated region
  $region2: #{conv_gener_p_forward.9} parent=0 // pred_check
    _
  $region3: #{conv_gener_p_forward.9} parent=0 // pred_check_branch
    %11 = sbr.rel (0) target = $region5
  $region4: #{conv_gener_p_forward.9} parent=0 // pred_region
    _
  $region5: #{conv_gener_p_forward.9} parent=0 // pred_fallthru
    _
  // Predicated region
  $region6: #{conv_gener_p_forward.9} parent=0 // pred_check
    _
  $region7: #{conv_gener_p_forward.9} parent=0 // pred_check_branch
    %13 = sbr.rel (0) target = $region9
  $region8: #{conv_gener_p_forward.9} parent=0 // pred_region
    _
  $region9: #{conv_gener_p_forward.9} parent=0 // pred_fallthru
    _
  %v15 = vld [vmem:[%s0] sm:$0xff]
  %v16 = vld [vmem:[%s0 + $0x8] sm:$0xf]
  %v17 = vld [vmem:[%s0 + $0xc] sm:$0xff]
  %v18 = vld [vmem:[%s0 + $0x14] sm:$0xf]
  %v19 = vld [vmem:[%s0 + $0x18] sm:$0xff]
  %v20 = vld [vmem:[%s0 + $0x20] sm:$0xf]
  %v21 = vld [vmem:[%s0 + $0x24] sm:$0xff]
  %v22 = vld [vmem:[%s0 + $0x2c] sm:$0xf]
  %v23 = vld [vmem:[%s0 + $0x30] sm:$0xff]
  %v24 = vld [vmem:[%s0 + $0x38] sm:$0xf]
  %v25 = vld [vmem:[%s0 + $0x3c] sm:$0xff]
  %v26 = vld [vmem:[%s0 + $0x44] sm:$0xf]
  %v27 = vld [vmem:[%s0 + $0x48] sm:$0xff]
  %v28 = vld [vmem:[%s0 + $0x50] sm:$0xf]
  %v29 = vld [vmem:[%s0 + $0x54] sm:$0xff]
  %v30 = vld [vmem:[%s0 + $0x5c] sm:$0xf]
  %v31 = vld [vmem:[%s0 + $0x60] sm:$0xff]
  %v32 = vld [vmem:[%s0 + $0x68] sm:$0xf]
  %v33 = vld [vmem:[%s0 + $0x6c] sm:$0xff]
  %v34 = vld [vmem:[%s0 + $0x74] sm:$0xf]
  %v35 = vld [vmem:[%s0 + $0x78] sm:$0xff]
  %v36 = vld [vmem:[%s0 + $0x80] sm:$0xf]
  %v37 = vld [vmem:[%s0 + $0x84] sm:$0xff]
  %v38 = vld [vmem:[%s0 + $0x8c] sm:$0xf]
  %v39 = vld [vmem:[%s0 + $0x90] sm:$0xff]
  %v40 = vld [vmem:[%s0 + $0x98] sm:$0xf]
  %v41 = vld [vmem:[%s0 + $0x9c] sm:$0xff]
  %v42 = vld [vmem:[%s0 + $0xa4] sm:$0xf]
  %v43 = vld [vmem:[%s0 + $0xa8] sm:$0xff]
  %v44 = vld [vmem:[%s0 + $0xb0] sm:$0xf]
  %v45 = vld [vmem:[%s0 + $0xb4] sm:$0xff]
  %v46 = vld [vmem:[%s0 + $0xbc] sm:$0xf]
  %v47 = vld [vmem:[%s1] sm:$0xf]
  %v48 = vld [vmem:[%s1 + $0x4] sm:$0xf]
  %v49 = vld [vmem:[%s1 + $0x8] sm:$0xf]
  %v50 = vld [vmem:[%s1 + $0xc] sm:$0xf]
  %v51 = vld [vmem:[%s1 + $0x10] sm:$0xf]
  %v52 = vld [vmem:[%s1 + $0x14] sm:$0xf]
  %v53 = vld [vmem:[%s1 + $0x18] sm:$0xf]
  %v54 = vld [vmem:[%s1 + $0x1c] sm:$0xf]
  %v55 = vld [vmem:[%s1 + $0x20] sm:$0xf]
  %v56 = vld [vmem:[%s1 + $0x24] sm:$0xf]
  %v57 = vld [vmem:[%s1 + $0x28] sm:$0xf]
  %v58 = vld [vmem:[%s1 + $0x2c] sm:$0xf]
  %v59 = vld [vmem:[%s1 + $0x30] sm:$0xf]
  %v60 = vld [vmem:[%s1 + $0x34] sm:$0xf]
  %v61 = vld [vmem:[%s1 + $0x38] sm:$0xf]
  %v62 = vld [vmem:[%s1 + $0x3c] sm:$0xf]
  %v63 = vld [vmem:[%s1 + $0x40] sm:$0xf]
  %v64 = vld [vmem:[%s1 + $0x44] sm:$0xf]
  %v65 = vld [vmem:[%s1 + $0x48] sm:$0xf]
  %v66 = vld [vmem:[%s1 + $0x4c] sm:$0xf]
  %v67 = vld [vmem:[%s1 + $0x50] sm:$0xf]
  %v68 = vld [vmem:[%s1 + $0x54] sm:$0xf]
  %v69 = vld [vmem:[%s1 + $0x58] sm:$0xf]
  %v70 = vld [vmem:[%s1 + $0x5c] sm:$0xf]
  %v71 = vld [vmem:[%s1 + $0x60] sm:$0xf]
  %v72 = vld [vmem:[%s1 + $0x64] sm:$0xf]
  %v73 = vld [vmem:[%s1 + $0x68] sm:$0xf]
  %v74 = vld [vmem:[%s1 + $0x6c] sm:$0xf]
  %v75 = vld [vmem:[%s1 + $0x70] sm:$0xf]
  %v76 = vld [vmem:[%s1 + $0x74] sm:$0xf]
  %v77 = vld [vmem:[%s1 + $0x78] sm:$0xf]
  %v78 = vld [vmem:[%s1 + $0x7c] sm:$0xf]
  %v79 = vld [vmem:[%s1 + $0x80] sm:$0xf]
  %v80 = vld [vmem:[%s1 + $0x84] sm:$0xf]
  %v81 = vld [vmem:[%s1 + $0x88] sm:$0xf]
  %v82 = vld [vmem:[%s1 + $0x8c] sm:$0xf]
  %v83 = vld [vmem:[%s1 + $0x90] sm:$0xf]
  %v84 = vld [vmem:[%s1 + $0x94] sm:$0xf]
  %v85 = vld [vmem:[%s1 + $0x98] sm:$0xf]
  %v86 = vld [vmem:[%s1 + $0x9c] sm:$0xf]
  %v87 = vld [vmem:[%s1 + $0xa0] sm:$0xf]
  %v88 = vld [vmem:[%s1 + $0xa4] sm:$0xf]
  %v89 = vld [vmem:[%s1 + $0xa8] sm:$0xf]
  %v90 = vld [vmem:[%s1 + $0xac] sm:$0xf]
  %v91 = vld [vmem:[%s1 + $0xb0] sm:$0xf]
  %v92 = vld [vmem:[%s1 + $0xb4] sm:$0xf]
  %v93 = vld [vmem:[%s1 + $0xb8] sm:$0xf]
  %v94 = vld [vmem:[%s1 + $0xbc] sm:$0xf]
  %v127 = vunpack.c.l.b16 %v15
  %v128 = vunpack.c.h.b16 %v15
  %v129 = vunpack.c.l.b16 %v16
  %v130 = vunpack.c.l.b16 %v17
  %v131 = vunpack.c.h.b16 %v17
  %v132 = vunpack.c.l.b16 %v18
  %v133 = vunpack.c.l.b16 %v19
  %v134 = vunpack.c.h.b16 %v19
  %v135 = vunpack.c.l.b16 %v20
  %v136 = vunpack.c.l.b16 %v21
  %v137 = vunpack.c.h.b16 %v21
  %v138 = vunpack.c.l.b16 %v22
  %v139 = vunpack.c.l.b16 %v23
  %v140 = vunpack.c.h.b16 %v23
  %v141 = vunpack.c.l.b16 %v24
  %v142 = vunpack.c.l.b16 %v25
  %v143 = vunpack.c.h.b16 %v25
  %v144 = vunpack.c.l.b16 %v26
  %v145 = vunpack.c.l.b16 %v27
  %v146 = vunpack.c.h.b16 %v27
  %v147 = vunpack.c.l.b16 %v28
  %v148 = vunpack.c.l.b16 %v29
  %v149 = vunpack.c.h.b16 %v29
  %v150 = vunpack.c.l.b16 %v30
  %v151 = vunpack.c.l.b16 %v31
  %v152 = vunpack.c.h.b16 %v31
  %v153 = vunpack.c.l.b16 %v32
  %v154 = vunpack.c.l.b16 %v33
  %v155 = vunpack.c.h.b16 %v33
  %v156 = vunpack.c.l.b16 %v34
  %v157 = vunpack.c.l.b16 %v35
  %v158 = vunpack.c.h.b16 %v35
  %v159 = vunpack.c.l.b16 %v36
  %v160 = vunpack.c.l.b16 %v37
  %v161 = vunpack.c.h.b16 %v37
  %v162 = vunpack.c.l.b16 %v38
  %v163 = vunpack.c.l.b16 %v39
  %v164 = vunpack.c.h.b16 %v39
  %v165 = vunpack.c.l.b16 %v40
  %v166 = vunpack.c.l.b16 %v41
  %v167 = vunpack.c.h.b16 %v41
  %v168 = vunpack.c.l.b16 %v42
  %v169 = vunpack.c.l.b16 %v43
  %v170 = vunpack.c.h.b16 %v43
  %v171 = vunpack.c.l.b16 %v44
  %v172 = vunpack.c.l.b16 %v45
  %v173 = vunpack.c.h.b16 %v45
  %v174 = vunpack.c.l.b16 %v46
  %v175 = vpack.c.b16 %v130, %v127
  %v176 = vpack.c.b16 %v131, %v128
  %v177 = vpack.c.b16 %v132, %v129
  %v178 = vpack.c.b16 %v136, %v133
  %v179 = vpack.c.b16 %v137, %v134
  %v180 = vpack.c.b16 %v138, %v135
  %v181 = vpack.c.b16 %v142, %v139
  %v182 = vpack.c.b16 %v143, %v140
  %v183 = vpack.c.b16 %v144, %v141
  %v184 = vpack.c.b16 %v148, %v145
  %v185 = vpack.c.b16 %v149, %v146
  %v186 = vpack.c.b16 %v150, %v147
  %v187 = vpack.c.b16 %v154, %v151
  %v188 = vpack.c.b16 %v155, %v152
  %v189 = vpack.c.b16 %v156, %v153
  %v190 = vpack.c.b16 %v160, %v157
  %v191 = vpack.c.b16 %v161, %v158
  %v192 = vpack.c.b16 %v162, %v159
  %v193 = vpack.c.b16 %v166, %v163
  %v194 = vpack.c.b16 %v167, %v164
  %v195 = vpack.c.b16 %v168, %v165
  %v196 = vpack.c.b16 %v172, %v169
  %v197 = vpack.c.b16 %v173, %v170
  %v198 = vpack.c.b16 %v174, %v171
  %v271 = vunpack.c.l.b16 %v47
  %v272 = vunpack.c.l.b16 %v48
  %v273 = vunpack.c.l.b16 %v49
  %v274 = vunpack.c.l.b16 %v50
  %v275 = vunpack.c.l.b16 %v51
  %v276 = vunpack.c.l.b16 %v52
  %v277 = vunpack.c.l.b16 %v53
  %v278 = vunpack.c.l.b16 %v54
  %v279 = vunpack.c.l.b16 %v55
  %v280 = vunpack.c.l.b16 %v56
  %v281 = vunpack.c.l.b16 %v57
  %v282 = vunpack.c.l.b16 %v58
  %v283 = vunpack.c.l.b16 %v59
  %v284 = vunpack.c.l.b16 %v60
  %v285 = vunpack.c.l.b16 %v61
  %v286 = vunpack.c.l.b16 %v62
  %v287 = vunpack.c.l.b16 %v63
  %v288 = vunpack.c.l.b16 %v64
  %v289 = vunpack.c.l.b16 %v65
  %v290 = vunpack.c.l.b16 %v66
  %v291 = vunpack.c.l.b16 %v67
  %v292 = vunpack.c.l.b16 %v68
  %v293 = vunpack.c.l.b16 %v69
  %v294 = vunpack.c.l.b16 %v70
  %v295 = vunpack.c.l.b16 %v71
  %v296 = vunpack.c.l.b16 %v72
  %v297 = vunpack.c.l.b16 %v73
  %v298 = vunpack.c.l.b16 %v74
  %v299 = vunpack.c.l.b16 %v75
  %v300 = vunpack.c.l.b16 %v76
  %v301 = vunpack.c.l.b16 %v77
  %v302 = vunpack.c.l.b16 %v78
  %v303 = vunpack.c.l.b16 %v79
  %v304 = vunpack.c.l.b16 %v80
  %v305 = vunpack.c.l.b16 %v81
  %v306 = vunpack.c.l.b16 %v82
  %v307 = vunpack.c.l.b16 %v83
  %v308 = vunpack.c.l.b16 %v84
  %v309 = vunpack.c.l.b16 %v85
  %v310 = vunpack.c.l.b16 %v86
  %v311 = vunpack.c.l.b16 %v87
  %v312 = vunpack.c.l.b16 %v88
  %v313 = vunpack.c.l.b16 %v89
  %v314 = vunpack.c.l.b16 %v90
  %v315 = vunpack.c.l.b16 %v91
  %v316 = vunpack.c.l.b16 %v92
  %v317 = vunpack.c.l.b16 %v93
  %v318 = vunpack.c.l.b16 %v94
  %v319 = vpack.c.b16 %v272, %v271
  %v320 = vpack.c.b16 %v274, %v273
  %v321 = vpack.c.b16 %v276, %v275
  %v322 = vpack.c.b16 %v278, %v277
  %v323 = vpack.c.b16 %v280, %v279
  %v324 = vpack.c.b16 %v282, %v281
  %v325 = vpack.c.b16 %v284, %v283
  %v326 = vpack.c.b16 %v286, %v285
  %v327 = vpack.c.b16 %v288, %v287
  %v328 = vpack.c.b16 %v290, %v289
  %v329 = vpack.c.b16 %v292, %v291
  %v330 = vpack.c.b16 %v294, %v293
  %v331 = vpack.c.b16 %v296, %v295
  %v332 = vpack.c.b16 %v298, %v297
  %v333 = vpack.c.b16 %v300, %v299
  %v334 = vpack.c.b16 %v302, %v301
  %v335 = vpack.c.b16 %v304, %v303
  %v336 = vpack.c.b16 %v306, %v305
  %v337 = vpack.c.b16 %v308, %v307
  %v338 = vpack.c.b16 %v310, %v309
  %v339 = vpack.c.b16 %v312, %v311
  %v340 = vpack.c.b16 %v314, %v313
  %v341 = vpack.c.b16 %v316, %v315
  %v342 = vpack.c.b16 %v318, %v317
  %367 = vmatprep.subr.bf16.mxu0 0
  %368 = vmatpush1.bf16.msra.mxu0 %v326
  %369 = vmatprep.subr.bf16.mxu0 0
  %370 = vmatpush1.bf16.msra.mxu0 %v325
  %371 = vmatprep.subr.bf16.mxu0 0
  %372 = vmatpush1.bf16.msra.mxu0 %v324
  %373 = vmatprep.subr.bf16.mxu0 0
  %374 = vmatpush1.bf16.msra.mxu0 %v323
  %375 = vmatprep.subr.bf16.mxu0 0
  %376 = vmatpush1.bf16.msra.mxu0 %v322
  %377 = vmatprep.subr.bf16.mxu0 0
  %378 = vmatpush1.bf16.msra.mxu0 %v321
  %379 = vmatprep.subr.bf16.mxu0 0
  %380 = vmatpush1.bf16.msra.mxu0 %v320
  %381 = vmatprep.subr.bf16.mxu0 0
  %382 = vmatpush1.bf16.msra.mxu0 %v319
  %383 = vmatprep.subr.bf16.mxu0 0
  %384 = vmatpush2.bf16.msra.mxu0 %v334
  %385 = vmatprep.subr.bf16.mxu0 0
  %386 = vmatpush2.bf16.msra.mxu0 %v333
  %387 = vmatprep.subr.bf16.mxu0 0
  %388 = vmatpush2.bf16.msra.mxu0 %v332
  %389 = vmatprep.subr.bf16.mxu0 0
  %390 = vmatpush2.bf16.msra.mxu0 %v331
  %391 = vmatprep.subr.bf16.mxu0 0
  %392 = vmatpush2.bf16.msra.mxu0 %v330
  %393 = vmatprep.subr.bf16.mxu0 0
  %394 = vmatpush2.bf16.msra.mxu0 %v329
  %395 = vmatprep.subr.bf16.mxu0 0
  %396 = vmatpush2.bf16.msra.mxu0 %v328
  %397 = vmatprep.subr.bf16.mxu0 0
  %398 = vmatpush2.bf16.msra.mxu0 %v327
  %399 = vmatprep.mubr.bf16.mxu0 %v176
  %400 = vmatmul.mubr.bf16.gmra.mxu0 %v175
  %v401 = vpop.f32.mrf.mxu0
  %v402 = vadd.f32 0.0, %v401
  %v403 = vpop.f32.mrf.mxu0
  %v404 = vpop.f32.mrf.mxu0
  %v405 = vadd.f32 0.0, %v404
  %v406 = vpop.f32.mrf.mxu0
  %407 = vmatprep.mubr.bf16.mxu0 %v179
  %408 = vmatmul.mubr.bf16.gmra.mxu0 %v178
  %v409 = vpop.f32.mrf.mxu0
  %v410 = vadd.f32 0.0, %v409
  %v411 = vpop.f32.mrf.mxu0
  %v412 = vpop.f32.mrf.mxu0
  %v413 = vadd.f32 0.0, %v412
  %v414 = vpop.f32.mrf.mxu0
  %415 = vmatprep.mubr.bf16.mxu0 %v182
  %416 = vmatmul.mubr.bf16.gmra.mxu0 %v181
  %v417 = vpop.f32.mrf.mxu0
  %v418 = vadd.f32 0.0, %v417
  %v419 = vpop.f32.mrf.mxu0
  %v420 = vpop.f32.mrf.mxu0
  %v421 = vadd.f32 0.0, %v420
  %v422 = vpop.f32.mrf.mxu0
  %423 = vmatprep.mubr.bf16.mxu0 %v185
  %424 = vmatmul.mubr.bf16.gmra.mxu0 %v184
  %v425 = vpop.f32.mrf.mxu0
  %v426 = vadd.f32 0.0, %v425
  %v427 = vpop.f32.mrf.mxu0
  %v428 = vpop.f32.mrf.mxu0
  %v429 = vadd.f32 0.0, %v428
  %v430 = vpop.f32.mrf.mxu0
  %431 = vmatprep.mubr.bf16.mxu0 %v188
  %432 = vmatmul.mubr.bf16.gmra.mxu0 %v187
  %v433 = vpop.f32.mrf.mxu0
  %v434 = vadd.f32 0.0, %v433
  %v435 = vpop.f32.mrf.mxu0
  %v436 = vpop.f32.mrf.mxu0
  %v437 = vadd.f32 0.0, %v436
  %v438 = vpop.f32.mrf.mxu0
  %439 = vmatprep.mubr.bf16.mxu0 %v191
  %440 = vmatmul.mubr.bf16.gmra.mxu0 %v190
  %v441 = vpop.f32.mrf.mxu0
  %v442 = vadd.f32 0.0, %v441
  %v443 = vpop.f32.mrf.mxu0
  %v444 = vpop.f32.mrf.mxu0
  %v445 = vadd.f32 0.0, %v444
  %v446 = vpop.f32.mrf.mxu0
  %447 = vmatprep.mubr.bf16.mxu0 %v194
  %448 = vmatmul.mubr.bf16.gmra.mxu0 %v193
  %v449 = vpop.f32.mrf.mxu0
  %v450 = vadd.f32 0.0, %v449
  %v451 = vpop.f32.mrf.mxu0
  %v452 = vpop.f32.mrf.mxu0
  %v453 = vadd.f32 0.0, %v452
  %v454 = vpop.f32.mrf.mxu0
  %455 = vmatprep.mubr.bf16.mxu0 %v197
  %456 = vmatmul.mubr.bf16.gmra.mxu0 %v196
  %v457 = vpop.f32.mrf.mxu0
  %v458 = vadd.f32 0.0, %v457
  %v459 = vpop.f32.mrf.mxu0
  %v460 = vpop.f32.mrf.mxu0
  %v461 = vadd.f32 0.0, %v460
  %v462 = vpop.f32.mrf.mxu0
  %463 = vdwg.mxu0
  %464 = vmatprep.subr.bf16.mxu0 0
  %465 = vmatpush1.bf16.msra.mxu0 %v342
  %466 = vmatprep.subr.bf16.mxu0 0
  %467 = vmatpush1.bf16.msra.mxu0 %v341
  %468 = vmatprep.subr.bf16.mxu0 0
  %469 = vmatpush1.bf16.msra.mxu0 %v340
  %470 = vmatprep.subr.bf16.mxu0 0
  %471 = vmatpush1.bf16.msra.mxu0 %v339
  %472 = vmatprep.subr.bf16.mxu0 0
  %473 = vmatpush1.bf16.msra.mxu0 %v338
  %474 = vmatprep.subr.bf16.mxu0 0
  %475 = vmatpush1.bf16.msra.mxu0 %v337
  %476 = vmatprep.subr.bf16.mxu0 0
  %477 = vmatpush1.bf16.msra.mxu0 %v336
  %478 = vmatprep.subr.bf16.mxu0 0
  %479 = vmatpush1.bf16.msra.mxu0 %v335
  %480 = vmatprep.subr.bf16.mxu0 0
  %481 = vmatpush2.bf16.msra.mxu0 0
  %482 = vmatprep.subr.bf16.mxu0 0
  %483 = vmatpush2.bf16.msra.mxu0 0
  %484 = vmatprep.subr.bf16.mxu0 0
  %485 = vmatpush2.bf16.msra.mxu0 0
  %486 = vmatprep.subr.bf16.mxu0 0
  %487 = vmatpush2.bf16.msra.mxu0 0
  %488 = vmatprep.subr.bf16.mxu0 0
  %489 = vmatpush2.bf16.msra.mxu0 0
  %490 = vmatprep.subr.bf16.mxu0 0
  %491 = vmatpush2.bf16.msra.mxu0 0
  %492 = vmatprep.subr.bf16.mxu0 0
  %493 = vmatpush2.bf16.msra.mxu0 0
  %494 = vmatprep.subr.bf16.mxu0 0
  %495 = vmatpush2.bf16.msra.mxu0 0
  %496 = vmatprep.mubr.bf16.mxu0 0
  %497 = vmatmul.mubr.bf16.gmra.mxu0 %v177
  %v498 = vpop.f32.mrf.mxu0
  %v499 = vadd.f32 %v402, %v498
  %v500 = vpop.f32.mrf.mxu0
  %v501 = vpop.f32.mrf.mxu0
  %v502 = vadd.f32 %v405, %v501
  %v503 = vpop.f32.mrf.mxu0
  %504 = vmatprep.mubr.bf16.mxu0 0
  %505 = vmatmul.mubr.bf16.gmra.mxu0 %v180
  %v506 = vpop.f32.mrf.mxu0
  %v507 = vadd.f32 %v410, %v506
  %v508 = vpop.f32.mrf.mxu0
  %v509 = vpop.f32.mrf.mxu0
  %v510 = vadd.f32 %v413, %v509
  %v511 = vpop.f32.mrf.mxu0
  %512 = vmatprep.mubr.bf16.mxu0 0
  %513 = vmatmul.mubr.bf16.gmra.mxu0 %v183
  %v514 = vpop.f32.mrf.mxu0
  %v515 = vadd.f32 %v418, %v514
  %v516 = vpop.f32.mrf.mxu0
  %v517 = vpop.f32.mrf.mxu0
  %v518 = vadd.f32 %v421, %v517
  %v519 = vpop.f32.mrf.mxu0
  %520 = vmatprep.mubr.bf16.mxu0 0
  %521 = vmatmul.mubr.bf16.gmra.mxu0 %v186
  %v522 = vpop.f32.mrf.mxu0
  %v523 = vadd.f32 %v426, %v522
  %v524 = vpop.f32.mrf.mxu0
  %v525 = vpop.f32.mrf.mxu0
  %v526 = vadd.f32 %v429, %v525
  %v527 = vpop.f32.mrf.mxu0
  %528 = vmatprep.mubr.bf16.mxu0 0
  %529 = vmatmul.mubr.bf16.gmra.mxu0 %v189
  %v530 = vpop.f32.mrf.mxu0
  %v531 = vadd.f32 %v434, %v530
  %v532 = vpop.f32.mrf.mxu0
  %v533 = vpop.f32.mrf.mxu0
  %v534 = vadd.f32 %v437, %v533
  %v535 = vpop.f32.mrf.mxu0
  %536 = vmatprep.mubr.bf16.mxu0 0
  %537 = vmatmul.mubr.bf16.gmra.mxu0 %v192
  %v538 = vpop.f32.mrf.mxu0
  %v539 = vadd.f32 %v442, %v538
  %v540 = vpop.f32.mrf.mxu0
  %v541 = vpop.f32.mrf.mxu0
  %v542 = vadd.f32 %v445, %v541
  %v543 = vpop.f32.mrf.mxu0
  %544 = vmatprep.mubr.bf16.mxu0 0
  %545 = vmatmul.mubr.bf16.gmra.mxu0 %v195
  %v546 = vpop.f32.mrf.mxu0
  %v547 = vadd.f32 %v450, %v546
  %v548 = vpop.f32.mrf.mxu0
  %v549 = vpop.f32.mrf.mxu0
  %v550 = vadd.f32 %v453, %v549
  %v551 = vpop.f32.mrf.mxu0
  %552 = vmatprep.mubr.bf16.mxu0 0
  %553 = vmatmul.mubr.bf16.gmra.mxu0 %v198
  %v554 = vpop.f32.mrf.mxu0
  %v555 = vadd.f32 %v458, %v554
  %v556 = vpop.f32.mrf.mxu0
  %v557 = vpop.f32.mrf.mxu0
  %v558 = vadd.f32 %v461, %v557
  %v559 = vpop.f32.mrf.mxu0
  %560 = vdwg.mxu0
  %v561 = vpack.c.bf16 %v502, %v499
  %v562 = vpack.c.bf16 %v510, %v507
  %v563 = vpack.c.bf16 %v518, %v515
  %v564 = vpack.c.bf16 %v526, %v523
  %v565 = vpack.c.bf16 %v534, %v531
  %v566 = vpack.c.bf16 %v542, %v539
  %v567 = vpack.c.bf16 %v550, %v547
  %v568 = vpack.c.bf16 %v558, %v555
  %v577 = vunpack.c.l.b16 %v561
  %v578 = vunpack.c.h.b16 %v561
  %v579 = vunpack.c.l.b16 %v562
  %v580 = vunpack.c.h.b16 %v562
  %v581 = vunpack.c.l.b16 %v563
  %v582 = vunpack.c.h.b16 %v563
  %v583 = vunpack.c.l.b16 %v564
  %v584 = vunpack.c.h.b16 %v564
  %v585 = vunpack.c.l.b16 %v565
  %v586 = vunpack.c.h.b16 %v565
  %v587 = vunpack.c.l.b16 %v566
  %v588 = vunpack.c.h.b16 %v566
  %v589 = vunpack.c.l.b16 %v567
  %v590 = vunpack.c.h.b16 %v567
  %v591 = vunpack.c.l.b16 %v568
  %v592 = vunpack.c.h.b16 %v568
  %v593 = vpack.c.b16 %v577, %v577
  %v594 = vpack.c.b16 %v578, %v578
  %v595 = vpack.c.b16 %v579, %v579
  %v596 = vpack.c.b16 %v580, %v580
  %v597 = vpack.c.b16 %v581, %v581
  %v598 = vpack.c.b16 %v582, %v582
  %v599 = vpack.c.b16 %v583, %v583
  %v600 = vpack.c.b16 %v584, %v584
  %v601 = vpack.c.b16 %v585, %v585
  %v602 = vpack.c.b16 %v586, %v586
  %v603 = vpack.c.b16 %v587, %v587
  %v604 = vpack.c.b16 %v588, %v588
  %v605 = vpack.c.b16 %v589, %v589
  %v606 = vpack.c.b16 %v590, %v590
  %v607 = vpack.c.b16 %v591, %v591
  %v608 = vpack.c.b16 %v592, %v592
  %625 = vst [vmem:[%s2] sm:$0xf] %v593
  %626 = vst [vmem:[%s2 + $0x4] sm:$0xf] %v594
  %627 = vst [vmem:[%s2 + $0x8] sm:$0xf] %v595
  %628 = vst [vmem:[%s2 + $0xc] sm:$0xf] %v596
  %629 = vst [vmem:[%s2 + $0x10] sm:$0xf] %v597
  %630 = vst [vmem:[%s2 + $0x14] sm:$0xf] %v598
  %631 = vst [vmem:[%s2 + $0x18] sm:$0xf] %v599
  %632 = vst [vmem:[%s2 + $0x1c] sm:$0xf] %v600
  %633 = vst [vmem:[%s2 + $0x20] sm:$0xf] %v601
  %634 = vst [vmem:[%s2 + $0x24] sm:$0xf] %v602
  %635 = vst [vmem:[%s2 + $0x28] sm:$0xf] %v603
  %636 = vst [vmem:[%s2 + $0x2c] sm:$0xf] %v604
  %637 = vst [vmem:[%s2 + $0x30] sm:$0xf] %v605
  %638 = vst [vmem:[%s2 + $0x34] sm:$0xf] %v606
  %639 = vst [vmem:[%s2 + $0x38] sm:$0xf] %v607
  %640 = vst [vmem:[%s2 + $0x3c] sm:$0xf] %v608
  %v641 = vadd.f32 %v499, %v502
  %v642 = vadd.f32 %v641, %v507
  %v643 = vadd.f32 %v642, %v510
  %v644 = vadd.f32 %v643, %v515
  %v645 = vadd.f32 %v644, %v518
  %v646 = vadd.f32 %v645, %v523
  %v647 = vadd.f32 %v646, %v526
  %v648 = vadd.f32 %v647, %v531
  %v649 = vadd.f32 %v648, %v534
  %v650 = vadd.f32 %v649, %v539
  %v651 = vadd.f32 %v650, %v542
  %v652 = vadd.f32 %v651, %v547
  %v653 = vadd.f32 %v652, %v550
  %v654 = vadd.f32 %v653, %v555
  %v655 = vadd.f32 %v654, %v558
  %v656 = vrot.slane %v655, 4
  %v657 = vadd.f32 %v655, %v656
  %v658 = vrot.slane %v657, 2
  %v659 = vadd.f32 %v657, %v658
  %v660 = vrot.slane %v659, 1
  %v661 = vadd.f32 %v659, %v660
  %v662 = vmul.f32 %v499, %v499
  %v663 = vmul.f32 %v502, %v502
  %v664 = vmul.f32 %v507, %v507
  %v665 = vmul.f32 %v510, %v510
  %v666 = vmul.f32 %v515, %v515
  %v667 = vmul.f32 %v518, %v518
  %v668 = vmul.f32 %v523, %v523
  %v669 = vmul.f32 %v526, %v526
  %v670 = vmul.f32 %v531, %v531
  %v671 = vmul.f32 %v534, %v534
  %v672 = vmul.f32 %v539, %v539
  %v673 = vmul.f32 %v542, %v542
  %v674 = vmul.f32 %v547, %v547
  %v675 = vmul.f32 %v550, %v550
  %v676 = vmul.f32 %v555, %v555
  %v677 = vmul.f32 %v558, %v558
  %v678 = vadd.f32 %v662, %v663
  %v679 = vadd.f32 %v678, %v664
  %v680 = vadd.f32 %v679, %v665
  %v681 = vadd.f32 %v680, %v666
  %v682 = vadd.f32 %v681, %v667
  %v683 = vadd.f32 %v682, %v668
  %v684 = vadd.f32 %v683, %v669
  %v685 = vadd.f32 %v684, %v670
  %v686 = vadd.f32 %v685, %v671
  %v687 = vadd.f32 %v686, %v672
  %v688 = vadd.f32 %v687, %v673
  %v689 = vadd.f32 %v688, %v674
  %v690 = vadd.f32 %v689, %v675
  %v691 = vadd.f32 %v690, %v676
  %v692 = vadd.f32 %v691, %v677
  %v693 = vrot.slane %v692, 4
  %v694 = vadd.f32 %v692, %v693
  %v695 = vrot.slane %v694, 2
  %v696 = vadd.f32 %v694, %v695
  %v697 = vrot.slane %v696, 1
  %v698 = vadd.f32 %v696, %v697
  %v699 = vlaneseq
  %v700 = vshrl.u32 %v699, 7
  %vm701 = vcmp.eq.s32.totalorder %v700, 0
  %v702 = vsel %vm701, %v661, 0.0
  %703 = vst [vmem:[%s3] sm:$0xff] %v702
  %v704 = vsel %vm701, %v698, 0.0
  %705 = vst [vmem:[%s4] sm:$0xff] %v704
  // Predicated region
  $region10: #{conv_gener_p_forward.9} parent=0 // pred_check
    _
  $region11: #{conv_gener_p_forward.9} parent=0 // pred_check_branch
    %707 = sbr.rel (0) target = $region13
  $region12: #{conv_gener_p_forward.9} parent=0 // pred_region
    _
  $region13: #{conv_gener_p_forward.9} parent=0 // pred_fallthru
    _
  // Predicated region
  $region14: #{conv_gener_p_forward.9} parent=0 // pred_check
    _
  $region15: #{conv_gener_p_forward.9} parent=0 // pred_check_branch
    %709 = sbr.rel (0) target = $region17
  $region16: #{conv_gener_p_forward.9} parent=0 // pred_region
    _
  $region17: #{conv_gener_p_forward.9} parent=0 // pred_fallthru
    _
  // Predicated region
  $region18: #{conv_gener_p_forward.9} parent=0 // pred_check
    _
  $region19: #{conv_gener_p_forward.9} parent=0 // pred_check_branch
    %711 = sbr.rel (0) target = $region21
  $region20: #{conv_gener_p_forward.9} parent=0 // pred_region
    _
  $region21: #{conv_gener_p_forward.9} parent=0 // pred_fallthru
    _
  // Predicated region
  $region22: #{conv_gener_p_forward.9} parent=0 // pred_check
    _
  $region23: #{conv_gener_p_forward.9} parent=0 // pred_check_branch
    %713 = sbr.rel (0) target = $region25
  $region24: #{conv_gener_p_forward.9} parent=0 // pred_region
    _
  $region25: #{conv_gener_p_forward.9} parent=0 // pred_fallthru
    _
  // Predicated region
  $region26: #{conv_gener_p_forward.9} parent=0 // pred_check
    _
  $region27: #{conv_gener_p_forward.9} parent=0 // pred_check_branch
    %715 = sbr.rel (0) target = $region29
  $region28: #{conv_gener_p_forward.9} parent=0 // pred_region
    _
  $region29: #{conv_gener_p_forward.9} parent=0 // pred_fallthru
    _
  // Predicated region
  $region30: #{conv_gener_p_forward.9} parent=0 // pred_check
    _
  $region31: #{conv_gener_p_forward.9} parent=0 // pred_check_branch
    %717 = sbr.rel (0) target = $region33
  $region32: #{conv_gener_p_forward.9} parent=0 // pred_region
    _
  $region33: #{conv_gener_p_forward.9} parent=0 // pred_fallthru
    _

// kernel: conv_gener_p_forward.10
$region0: #{conv_gener_p_forward.10}
  #allocation0 [shape = 'u32[]', space=smem, size = 0x4, offset = 0x4, fixed_abs, tag = 'smem constant byte address 0x4 - core index']
  #allocation1 [shape = 'u32[144,128]{1,0:T(1,128)}', space=vmem, size = 0x12000, scoped, tag = 'internal scratch']
  %s0 = inlined_call_operand.vmem [shape: bf16[128,128], index: 0, kind: input, shape index: {}]
  %s1 = inlined_call_operand.vmem [shape: f32[1,128], index: 1, kind: input, shape index: {}]
  %s2 = inlined_call_operand.vmem [shape: f32[1,128], index: 2, kind: input, shape index: {}]
  %s3 = inlined_call_operand.vmem [shape: bf16[128,128], index: 3, kind: output, shape index: {}]
  %s4 = sld [smem:[#allocation0]]
  $region22: #{conv_gener_p_forward.10} parent=0
    _
  %s6 = ssub.s32 1, %s4
  %s7 = scalar_select 0, %s6, %s4
  // Predicated region
  $region2: #{conv_gener_p_forward.10} parent=0 // pred_check
    _
  $region3: #{conv_gener_p_forward.10} parent=0 // pred_check_branch
    %9 = sbr.rel (0) target = $region5
  $region4: #{conv_gener_p_forward.10} parent=0 // pred_region
    _
  $region5: #{conv_gener_p_forward.10} parent=0 // pred_fallthru
    _
  // Predicated region
  $region6: #{conv_gener_p_forward.10} parent=0 // pred_check
    _
  $region7: #{conv_gener_p_forward.10} parent=0 // pred_check_branch
    %11 = sbr.rel (0) target = $region9
  $region8: #{conv_gener_p_forward.10} parent=0 // pred_region
    _
  $region9: #{conv_gener_p_forward.10} parent=0 // pred_fallthru
    _
  // Predicated region
  $region10: #{conv_gener_p_forward.10} parent=0 // pred_check
    _
  $region11: #{conv_gener_p_forward.10} parent=0 // pred_check_branch
    %13 = sbr.rel (0) target = $region13
  $region12: #{conv_gener_p_forward.10} parent=0 // pred_region
    _
  $region13: #{conv_gener_p_forward.10} parent=0 // pred_fallthru
    _
  %v14 = vld [vmem:[%s0] sm:$0xf]
  %v15 = vld [vmem:[%s0 + $0x4] sm:$0xf]
  %v16 = vld [vmem:[%s0 + $0x8] sm:$0xf]
  %v17 = vld [vmem:[%s0 + $0xc] sm:$0xf]
  %v18 = vld [vmem:[%s0 + $0x10] sm:$0xf]
  %v19 = vld [vmem:[%s0 + $0x14] sm:$0xf]
  %v20 = vld [vmem:[%s0 + $0x18] sm:$0xf]
  %v21 = vld [vmem:[%s0 + $0x1c] sm:$0xf]
  %v22 = vld [vmem:[%s0 + $0x20] sm:$0xf]
  %v23 = vld [vmem:[%s0 + $0x24] sm:$0xf]
  %v24 = vld [vmem:[%s0 + $0x28] sm:$0xf]
  %v25 = vld [vmem:[%s0 + $0x2c] sm:$0xf]
  %v26 = vld [vmem:[%s0 + $0x30] sm:$0xf]
  %v27 = vld [vmem:[%s0 + $0x34] sm:$0xf]
  %v28 = vld [vmem:[%s0 + $0x38] sm:$0xf]
  %v29 = vld [vmem:[%s0 + $0x3c] sm:$0xf]
  %v30 = vunpack.c.l.bf16 %v14
  %v31 = vunpack.c.l.bf16 %v15
  %v32 = vunpack.c.l.bf16 %v16
  %v33 = vunpack.c.l.bf16 %v17
  %v34 = vunpack.c.l.bf16 %v18
  %v35 = vunpack.c.l.bf16 %v19
  %v36 = vunpack.c.l.bf16 %v20
  %v37 = vunpack.c.l.bf16 %v21
  %v38 = vunpack.c.l.bf16 %v22
  %v39 = vunpack.c.l.bf16 %v23
  %v40 = vunpack.c.l.bf16 %v24
  %v41 = vunpack.c.l.bf16 %v25
  %v42 = vunpack.c.l.bf16 %v26
  %v43 = vunpack.c.l.bf16 %v27
  %v44 = vunpack.c.l.bf16 %v28
  %v45 = vunpack.c.l.bf16 %v29
  %v46 = vld [vmem:[%s1] sm:$0x1]
  %v48 = vlaneseq
  %v49 = vshrl.u32 %v48, 7
  %v50 = vsub.s32 0, %v49
  %v51 = vrot.slane %v46, %v50
  %v53 = vmul.f32 %v30, %v51
  %v54 = vmul.f32 %v31, %v51
  %v55 = vmul.f32 %v32, %v51
  %v56 = vmul.f32 %v33, %v51
  %v57 = vmul.f32 %v34, %v51
  %v58 = vmul.f32 %v35, %v51
  %v59 = vmul.f32 %v36, %v51
  %v60 = vmul.f32 %v37, %v51
  %v61 = vmul.f32 %v38, %v51
  %v62 = vmul.f32 %v39, %v51
  %v63 = vmul.f32 %v40, %v51
  %v64 = vmul.f32 %v41, %v51
  %v65 = vmul.f32 %v42, %v51
  %v66 = vmul.f32 %v43, %v51
  %v67 = vmul.f32 %v44, %v51
  %v68 = vmul.f32 %v45, %v51
  %v69 = vld [vmem:[%s2] sm:$0x1]
  %v71 = vlaneseq
  %v72 = vshrl.u32 %v71, 7
  %v73 = vsub.s32 0, %v72
  %v74 = vrot.slane %v69, %v73
  %v76 = vadd.f32 %v53, %v74
  %v77 = vadd.f32 %v54, %v74
  %v78 = vadd.f32 %v55, %v74
  %v79 = vadd.f32 %v56, %v74
  %v80 = vadd.f32 %v57, %v74
  %v81 = vadd.f32 %v58, %v74
  %v82 = vadd.f32 %v59, %v74
  %v83 = vadd.f32 %v60, %v74
  %v84 = vadd.f32 %v61, %v74
  %v85 = vadd.f32 %v62, %v74
  %v86 = vadd.f32 %v63, %v74
  %v87 = vadd.f32 %v64, %v74
  %v88 = vadd.f32 %v65, %v74
  %v89 = vadd.f32 %v66, %v74
  %v90 = vadd.f32 %v67, %v74
  %v91 = vadd.f32 %v68, %v74
  %v92 = vmax.f32 %v76, 0.0
  %v93 = vmax.f32 %v77, 0.0
  %v94 = vmax.f32 %v78, 0.0
  %v95 = vmax.f32 %v79, 0.0
  %v96 = vmax.f32 %v80, 0.0
  %v97 = vmax.f32 %v81, 0.0
  %v98 = vmax.f32 %v82, 0.0
  %v99 = vmax.f32 %v83, 0.0
  %v100 = vmax.f32 %v84, 0.0
  %v101 = vmax.f32 %v85, 0.0
  %v102 = vmax.f32 %v86, 0.0
  %v103 = vmax.f32 %v87, 0.0
  %v104 = vmax.f32 %v88, 0.0
  %v105 = vmax.f32 %v89, 0.0
  %v106 = vmax.f32 %v90, 0.0
  %v107 = vmax.f32 %v91, 0.0
  %v108 = vpack.c.bf16 %v93, %v92
  %v109 = vpack.c.bf16 %v95, %v94
  %v110 = vpack.c.bf16 %v97, %v96
  %v111 = vpack.c.bf16 %v99, %v98
  %v112 = vpack.c.bf16 %v101, %v100
  %v113 = vpack.c.bf16 %v103, %v102
  %v114 = vpack.c.bf16 %v105, %v104
  %v115 = vpack.c.bf16 %v107, %v106
  %v124 = vunpack.c.l.b16 %v108
  %v125 = vunpack.c.h.b16 %v108
  %v126 = vunpack.c.l.b16 %v109
  %v127 = vunpack.c.h.b16 %v109
  %v128 = vunpack.c.l.b16 %v110
  %v129 = vunpack.c.h.b16 %v110
  %v130 = vunpack.c.l.b16 %v111
  %v131 = vunpack.c.h.b16 %v111
  %v132 = vunpack.c.l.b16 %v112
  %v133 = vunpack.c.h.b16 %v112
  %v134 = vunpack.c.l.b16 %v113
  %v135 = vunpack.c.h.b16 %v113
  %v136 = vunpack.c.l.b16 %v114
  %v137 = vunpack.c.h.b16 %v114
  %v138 = vunpack.c.l.b16 %v115
  %v139 = vunpack.c.h.b16 %v115
  %v140 = vpack.c.b16 %v124, %v124
  %v141 = vpack.c.b16 %v125, %v125
  %v142 = vpack.c.b16 %v126, %v126
  %v143 = vpack.c.b16 %v127, %v127
  %v144 = vpack.c.b16 %v128, %v128
  %v145 = vpack.c.b16 %v129, %v129
  %v146 = vpack.c.b16 %v130, %v130
  %v147 = vpack.c.b16 %v131, %v131
  %v148 = vpack.c.b16 %v132, %v132
  %v149 = vpack.c.b16 %v133, %v133
  %v150 = vpack.c.b16 %v134, %v134
  %v151 = vpack.c.b16 %v135, %v135
  %v152 = vpack.c.b16 %v136, %v136
  %v153 = vpack.c.b16 %v137, %v137
  %v154 = vpack.c.b16 %v138, %v138
  %v155 = vpack.c.b16 %v139, %v139
  %172 = vst [vmem:[%s3] sm:$0xf] %v140
  %173 = vst [vmem:[%s3 + $0x4] sm:$0xf] %v141
  %174 = vst [vmem:[%s3 + $0x8] sm:$0xf] %v142
  %175 = vst [vmem:[%s3 + $0xc] sm:$0xf] %v143
  %176 = vst [vmem:[%s3 + $0x10] sm:$0xf] %v144
  %177 = vst [vmem:[%s3 + $0x14] sm:$0xf] %v145
  %178 = vst [vmem:[%s3 + $0x18] sm:$0xf] %v146
  %179 = vst [vmem:[%s3 + $0x1c] sm:$0xf] %v147
  %180 = vst [vmem:[%s3 + $0x20] sm:$0xf] %v148
  %181 = vst [vmem:[%s3 + $0x24] sm:$0xf] %v149
  %182 = vst [vmem:[%s3 + $0x28] sm:$0xf] %v150
  %183 = vst [vmem:[%s3 + $0x2c] sm:$0xf] %v151
  %184 = vst [vmem:[%s3 + $0x30] sm:$0xf] %v152
  %185 = vst [vmem:[%s3 + $0x34] sm:$0xf] %v153
  %186 = vst [vmem:[%s3 + $0x38] sm:$0xf] %v154
  %187 = vst [vmem:[%s3 + $0x3c] sm:$0xf] %v155
  // Predicated region
  $region14: #{conv_gener_p_forward.10} parent=0 // pred_check
    _
  $region15: #{conv_gener_p_forward.10} parent=0 // pred_check_branch
    %189 = sbr.rel (0) target = $region17
  $region16: #{conv_gener_p_forward.10} parent=0 // pred_region
    _
  $region17: #{conv_gener_p_forward.10} parent=0 // pred_fallthru
    _
  // Predicated region
  $region18: #{conv_gener_p_forward.10} parent=0 // pred_check
    _
  $region19: #{conv_gener_p_forward.10} parent=0 // pred_check_branch
    %191 = sbr.rel (0) target = $region21
  $region20: #{conv_gener_p_forward.10} parent=0 // pred_region
    _
  $region21: #{conv_gener_p_forward.10} parent=0 // pred_fallthru
    _

// kernel: tile.58
$region0: #{tile.58}
  #allocation0 [shape = 's32[1]{0}', space=sflag, size = 0x4, scoped, tag = 'scoped memory for tile.58']
  %s0 = inlined_call_operand.vmem [shape: f32[8], index: 0, kind: input, shape index: {}]
  %s1 = inlined_call_operand.vmem [shape: f32[4,8], index: 1, kind: output, shape index: {}]
  // Predicated region
  $region2: #{tile.58} parent=0 // pred_check
    _
  $region3: #{tile.58} parent=0 // pred_check_branch
    %3 = sbr.rel (0) target = $region5
  $region4: #{tile.58} parent=0 // pred_region
    _
  $region5: #{tile.58} parent=0 // pred_fallthru
    _
  %v4 = vld [vmem:[%s0] ss:$0 sm:$0xff]
  %5 = vst [vmem:[%s1] sm:$0xf] %v4

// kernel: tile.59
$region0: #{tile.59}
  %s0 = inlined_call_operand.vmem [shape: f32[4,8], index: 0, kind: input, shape index: {}]
  %s1 = inlined_call_operand.vmem [shape: f32[32], index: 1, kind: output, shape index: {}]
  $region1: #{tile.59} parent=0
    #allocation0 [shape = 'u8[4096]{0}', space=vmem, size = 0x1000, scoped, tag = 'scoped mem for output reshape']
    #allocation1 [shape = 'u8[4096]{0}', space=vmem, size = 0x1000, scoped, tag = 'scoped mem for input reshape']
    %s3 = sshll.u32 1, 4
    %s4 = ssub.s32 %s3, 1
    %v5 = vld [vmem:[%s0] sm:%s4]
    %6 = vst [vmem:[#allocation1] sm:%s4] %v5
    %v7 = vld [vmem:[#allocation1] sm:$0x1]
    %vm8 = vcmask 64512
    %9 = vst.msk [vmem:[#allocation0] sm:$0x1] %vm8, %v7
    %s10 = scalar_lea.vmem [#allocation1], 3
    %v11 = vld [vmem:[%s10] sm:$0x1]
    %12 = vrot.lane.b32.xlu0 %v11, 24
    %v13 = vpop.permute.xlu0 %12
    %vm14 = vcmask 261312
    %15 = vst.msk [vmem:[#allocation0] sm:$0x1] %vm14, %v13
    %s16 = scalar_lea.vmem [#allocation1], 2
    %v17 = vld [vmem:[%s16] sm:$0x1]
    %18 = vrot.lane.b32.xlu0 %v17, 16
    %v19 = vpop.permute.xlu0 %18
    %vm20 = vcmask 195712
    %21 = vst.msk [vmem:[#allocation0] sm:$0x1] %vm20, %v19
    %s22 = scalar_lea.vmem [#allocation1], 1
    %v23 = vld [vmem:[%s22] sm:$0x1]
    %24 = vrot.lane.b32.xlu0 %v23, 8
    %v25 = vpop.permute.xlu0 %24
    %vm26 = vcmask 130112
    %27 = vst.msk [vmem:[#allocation0] sm:$0x1] %vm26, %v25
    %s29 = sshll.u32 1, 1
    %s30 = ssub.s32 %s29, 1
    %v32 = vld [vmem:[#allocation0] sm:%s30]
    %s33 = sshll.u32 1, 1
    %s34 = ssub.s32 %s33, 1
    %35 = vst [vmem:[%s1] sm:%s34] %v32

// kernel: conv_gener_p_forward.12
$region0: #{conv_gener_p_forward.12}
  #allocation0 [shape = 'u32[]', space=smem, size = 0x4, offset = 0x4, fixed_abs, tag = 'smem constant byte address 0x4 - core index']
  #allocation1 [shape = 'u32[144,128]{1,0:T(1,128)}', space=vmem, size = 0x12000, scoped, tag = 'internal scratch']
  %s0 = inlined_call_operand.vmem [shape: bf16[512,128], index: 0, kind: input, shape index: {}]
  %s1 = inlined_call_operand.vmem [shape: f32[1,128], index: 1, kind: input, shape index: {}]
  %s2 = inlined_call_operand.vmem [shape: f32[1,128], index: 2, kind: input, shape index: {}]
  %s3 = inlined_call_operand.vmem [shape: bf16[512,128], index: 3, kind: output, shape index: {}]
  %s4 = sld [smem:[#allocation0]]
  $region22: #{conv_gener_p_forward.12} parent=0
    _
  %s6 = ssub.s32 1, %s4
  %s7 = scalar_select 0, %s6, %s4
  // Predicated region
  $region2: #{conv_gener_p_forward.12} parent=0 // pred_check
    _
  $region3: #{conv_gener_p_forward.12} parent=0 // pred_check_branch
    %9 = sbr.rel (0) target = $region5
  $region4: #{conv_gener_p_forward.12} parent=0 // pred_region
    _
  $region5: #{conv_gener_p_forward.12} parent=0 // pred_fallthru
    _
  // Predicated region
  $region6: #{conv_gener_p_forward.12} parent=0 // pred_check
    _
  $region7: #{conv_gener_p_forward.12} parent=0 // pred_check_branch
    %11 = sbr.rel (0) target = $region9
  $region8: #{conv_gener_p_forward.12} parent=0 // pred_region
    _
  $region9: #{conv_gener_p_forward.12} parent=0 // pred_fallthru
    _
  // Predicated region
  $region10: #{conv_gener_p_forward.12} parent=0 // pred_check
    _
  $region11: #{conv_gener_p_forward.12} parent=0 // pred_check_branch
    %13 = sbr.rel (0) target = $region13
  $region12: #{conv_gener_p_forward.12} parent=0 // pred_region
    _
  $region13: #{conv_gener_p_forward.12} parent=0 // pred_fallthru
    _
  %v14 = vld [vmem:[%s0] sm:$0xf]
  %v15 = vld [vmem:[%s0 + $0x4] sm:$0xf]
  %v16 = vld [vmem:[%s0 + $0x8] sm:$0xf]
  %v17 = vld [vmem:[%s0 + $0xc] sm:$0xf]
  %v18 = vld [vmem:[%s0 + $0x10] sm:$0xf]
  %v19 = vld [vmem:[%s0 + $0x14] sm:$0xf]
  %v20 = vld [vmem:[%s0 + $0x18] sm:$0xf]
  %v21 = vld [vmem:[%s0 + $0x1c] sm:$0xf]
  %v22 = vld [vmem:[%s0 + $0x20] sm:$0xf]
  %v23 = vld [vmem:[%s0 + $0x24] sm:$0xf]
  %v24 = vld [vmem:[%s0 + $0x28] sm:$0xf]
  %v25 = vld [vmem:[%s0 + $0x2c] sm:$0xf]
  %v26 = vld [vmem:[%s0 + $0x30] sm:$0xf]
  %v27 = vld [vmem:[%s0 + $0x34] sm:$0xf]
  %v28 = vld [vmem:[%s0 + $0x38] sm:$0xf]
  %v29 = vld [vmem:[%s0 + $0x3c] sm:$0xf]
  %v30 = vld [vmem:[%s0 + $0x40] sm:$0xf]
  %v31 = vld [vmem:[%s0 + $0x44] sm:$0xf]
  %v32 = vld [vmem:[%s0 + $0x48] sm:$0xf]
  %v33 = vld [vmem:[%s0 + $0x4c] sm:$0xf]
  %v34 = vld [vmem:[%s0 + $0x50] sm:$0xf]
  %v35 = vld [vmem:[%s0 + $0x54] sm:$0xf]
  %v36 = vld [vmem:[%s0 + $0x58] sm:$0xf]
  %v37 = vld [vmem:[%s0 + $0x5c] sm:$0xf]
  %v38 = vld [vmem:[%s0 + $0x60] sm:$0xf]
  %v39 = vld [vmem:[%s0 + $0x64] sm:$0xf]
  %v40 = vld [vmem:[%s0 + $0x68] sm:$0xf]
  %v41 = vld [vmem:[%s0 + $0x6c] sm:$0xf]
  %v42 = vld [vmem:[%s0 + $0x70] sm:$0xf]
  %v43 = vld [vmem:[%s0 + $0x74] sm:$0xf]
  %v44 = vld [vmem:[%s0 + $0x78] sm:$0xf]
  %v45 = vld [vmem:[%s0 + $0x7c] sm:$0xf]
  %v46 = vld [vmem:[%s0 + $0x80] sm:$0xf]
  %v47 = vld [vmem:[%s0 + $0x84] sm:$0xf]
  %v48 = vld [vmem:[%s0 + $0x88] sm:$0xf]
  %v49 = vld [vmem:[%s0 + $0x8c] sm:$0xf]
  %v50 = vld [vmem:[%s0 + $0x90] sm:$0xf]
  %v51 = vld [vmem:[%s0 + $0x94] sm:$0xf]
  %v52 = vld [vmem:[%s0 + $0x98] sm:$0xf]
  %v53 = vld [vmem:[%s0 + $0x9c] sm:$0xf]
  %v54 = vld [vmem:[%s0 + $0xa0] sm:$0xf]
  %v55 = vld [vmem:[%s0 + $0xa4] sm:$0xf]
  %v56 = vld [vmem:[%s0 + $0xa8] sm:$0xf]
  %v57 = vld [vmem:[%s0 + $0xac] sm:$0xf]
  %v58 = vld [vmem:[%s0 + $0xb0] sm:$0xf]
  %v59 = vld [vmem:[%s0 + $0xb4] sm:$0xf]
  %v60 = vld [vmem:[%s0 + $0xb8] sm:$0xf]
  %v61 = vld [vmem:[%s0 + $0xbc] sm:$0xf]
  %v62 = vld [vmem:[%s0 + $0xc0] sm:$0xf]
  %v63 = vld [vmem:[%s0 + $0xc4] sm:$0xf]
  %v64 = vld [vmem:[%s0 + $0xc8] sm:$0xf]
  %v65 = vld [vmem:[%s0 + $0xcc] sm:$0xf]
  %v66 = vld [vmem:[%s0 + $0xd0] sm:$0xf]
  %v67 = vld [vmem:[%s0 + $0xd4] sm:$0xf]
  %v68 = vld [vmem:[%s0 + $0xd8] sm:$0xf]
  %v69 = vld [vmem:[%s0 + $0xdc] sm:$0xf]
  %v70 = vld [vmem:[%s0 + $0xe0] sm:$0xf]
  %v71 = vld [vmem:[%s0 + $0xe4] sm:$0xf]
  %v72 = vld [vmem:[%s0 + $0xe8] sm:$0xf]
  %v73 = vld [vmem:[%s0 + $0xec] sm:$0xf]
  %v74 = vld [vmem:[%s0 + $0xf0] sm:$0xf]
  %v75 = vld [vmem:[%s0 + $0xf4] sm:$0xf]
  %v76 = vld [vmem:[%s0 + $0xf8] sm:$0xf]
  %v77 = vld [vmem:[%s0 + $0xfc] sm:$0xf]
  %v78 = vunpack.c.l.bf16 %v14
  %v79 = vunpack.c.l.bf16 %v15
  %v80 = vunpack.c.l.bf16 %v16
  %v81 = vunpack.c.l.bf16 %v17
  %v82 = vunpack.c.l.bf16 %v18
  %v83 = vunpack.c.l.bf16 %v19
  %v84 = vunpack.c.l.bf16 %v20
  %v85 = vunpack.c.l.bf16 %v21
  %v86 = vunpack.c.l.bf16 %v22
  %v87 = vunpack.c.l.bf16 %v23
  %v88 = vunpack.c.l.bf16 %v24
  %v89 = vunpack.c.l.bf16 %v25
  %v90 = vunpack.c.l.bf16 %v26
  %v91 = vunpack.c.l.bf16 %v27
  %v92 = vunpack.c.l.bf16 %v28
  %v93 = vunpack.c.l.bf16 %v29
  %v94 = vunpack.c.l.bf16 %v30
  %v95 = vunpack.c.l.bf16 %v31
  %v96 = vunpack.c.l.bf16 %v32
  %v97 = vunpack.c.l.bf16 %v33
  %v98 = vunpack.c.l.bf16 %v34
  %v99 = vunpack.c.l.bf16 %v35
  %v100 = vunpack.c.l.bf16 %v36
  %v101 = vunpack.c.l.bf16 %v37
  %v102 = vunpack.c.l.bf16 %v38
  %v103 = vunpack.c.l.bf16 %v39
  %v104 = vunpack.c.l.bf16 %v40
  %v105 = vunpack.c.l.bf16 %v41
  %v106 = vunpack.c.l.bf16 %v42
  %v107 = vunpack.c.l.bf16 %v43
  %v108 = vunpack.c.l.bf16 %v44
  %v109 = vunpack.c.l.bf16 %v45
  %v110 = vunpack.c.l.bf16 %v46
  %v111 = vunpack.c.l.bf16 %v47
  %v112 = vunpack.c.l.bf16 %v48
  %v113 = vunpack.c.l.bf16 %v49
  %v114 = vunpack.c.l.bf16 %v50
  %v115 = vunpack.c.l.bf16 %v51
  %v116 = vunpack.c.l.bf16 %v52
  %v117 = vunpack.c.l.bf16 %v53
  %v118 = vunpack.c.l.bf16 %v54
  %v119 = vunpack.c.l.bf16 %v55
  %v120 = vunpack.c.l.bf16 %v56
  %v121 = vunpack.c.l.bf16 %v57
  %v122 = vunpack.c.l.bf16 %v58
  %v123 = vunpack.c.l.bf16 %v59
  %v124 = vunpack.c.l.bf16 %v60
  %v125 = vunpack.c.l.bf16 %v61
  %v126 = vunpack.c.l.bf16 %v62
  %v127 = vunpack.c.l.bf16 %v63
  %v128 = vunpack.c.l.bf16 %v64
  %v129 = vunpack.c.l.bf16 %v65
  %v130 = vunpack.c.l.bf16 %v66
  %v131 = vunpack.c.l.bf16 %v67
  %v132 = vunpack.c.l.bf16 %v68
  %v133 = vunpack.c.l.bf16 %v69
  %v134 = vunpack.c.l.bf16 %v70
  %v135 = vunpack.c.l.bf16 %v71
  %v136 = vunpack.c.l.bf16 %v72
  %v137 = vunpack.c.l.bf16 %v73
  %v138 = vunpack.c.l.bf16 %v74
  %v139 = vunpack.c.l.bf16 %v75
  %v140 = vunpack.c.l.bf16 %v76
  %v141 = vunpack.c.l.bf16 %v77
  %v142 = vld [vmem:[%s1] sm:$0x1]
  %v144 = vlaneseq
  %v145 = vshrl.u32 %v144, 7
  %v146 = vsub.s32 0, %v145
  %v147 = vrot.slane %v142, %v146
  %v149 = vmul.f32 %v78, %v147
  %v150 = vmul.f32 %v79, %v147
  %v151 = vmul.f32 %v80, %v147
  %v152 = vmul.f32 %v81, %v147
  %v153 = vmul.f32 %v82, %v147
  %v154 = vmul.f32 %v83, %v147
  %v155 = vmul.f32 %v84, %v147
  %v156 = vmul.f32 %v85, %v147
  %v157 = vmul.f32 %v86, %v147
  %v158 = vmul.f32 %v87, %v147
  %v159 = vmul.f32 %v88, %v147
  %v160 = vmul.f32 %v89, %v147
  %v161 = vmul.f32 %v90, %v147
  %v162 = vmul.f32 %v91, %v147
  %v163 = vmul.f32 %v92, %v147
  %v164 = vmul.f32 %v93, %v147
  %v165 = vmul.f32 %v94, %v147
  %v166 = vmul.f32 %v95, %v147
  %v167 = vmul.f32 %v96, %v147
  %v168 = vmul.f32 %v97, %v147
  %v169 = vmul.f32 %v98, %v147
  %v170 = vmul.f32 %v99, %v147
  %v171 = vmul.f32 %v100, %v147
  %v172 = vmul.f32 %v101, %v147
  %v173 = vmul.f32 %v102, %v147
  %v174 = vmul.f32 %v103, %v147
  %v175 = vmul.f32 %v104, %v147
  %v176 = vmul.f32 %v105, %v147
  %v177 = vmul.f32 %v106, %v147
  %v178 = vmul.f32 %v107, %v147
  %v179 = vmul.f32 %v108, %v147
  %v180 = vmul.f32 %v109, %v147
  %v181 = vmul.f32 %v110, %v147
  %v182 = vmul.f32 %v111, %v147
  %v183 = vmul.f32 %v112, %v147
  %v184 = vmul.f32 %v113, %v147
  %v185 = vmul.f32 %v114, %v147
  %v186 = vmul.f32 %v115, %v147
  %v187 = vmul.f32 %v116, %v147
  %v188 = vmul.f32 %v117, %v147
  %v189 = vmul.f32 %v118, %v147
  %v190 = vmul.f32 %v119, %v147
  %v191 = vmul.f32 %v120, %v147
  %v192 = vmul.f32 %v121, %v147
  %v193 = vmul.f32 %v122, %v147
  %v194 = vmul.f32 %v123, %v147
  %v195 = vmul.f32 %v124, %v147
  %v196 = vmul.f32 %v125, %v147
  %v197 = vmul.f32 %v126, %v147
  %v198 = vmul.f32 %v127, %v147
  %v199 = vmul.f32 %v128, %v147
  %v200 = vmul.f32 %v129, %v147
  %v201 = vmul.f32 %v130, %v147
  %v202 = vmul.f32 %v131, %v147
  %v203 = vmul.f32 %v132, %v147
  %v204 = vmul.f32 %v133, %v147
  %v205 = vmul.f32 %v134, %v147
  %v206 = vmul.f32 %v135, %v147
  %v207 = vmul.f32 %v136, %v147
  %v208 = vmul.f32 %v137, %v147
  %v209 = vmul.f32 %v138, %v147
  %v210 = vmul.f32 %v139, %v147
  %v211 = vmul.f32 %v140, %v147
  %v212 = vmul.f32 %v141, %v147
  %v213 = vld [vmem:[%s2] sm:$0x1]
  %v215 = vlaneseq
  %v216 = vshrl.u32 %v215, 7
  %v217 = vsub.s32 0, %v216
  %v218 = vrot.slane %v213, %v217
  %v220 = vadd.f32 %v149, %v218
  %v221 = vadd.f32 %v150, %v218
  %v222 = vadd.f32 %v151, %v218
  %v223 = vadd.f32 %v152, %v218
  %v224 = vadd.f32 %v153, %v218
  %v225 = vadd.f32 %v154, %v218
  %v226 = vadd.f32 %v155, %v218
  %v227 = vadd.f32 %v156, %v218
  %v228 = vadd.f32 %v157, %v218
  %v229 = vadd.f32 %v158, %v218
  %v230 = vadd.f32 %v159, %v218
  %v231 = vadd.f32 %v160, %v218
  %v232 = vadd.f32 %v161, %v218
  %v233 = vadd.f32 %v162, %v218
  %v234 = vadd.f32 %v163, %v218
  %v235 = vadd.f32 %v164, %v218
  %v236 = vadd.f32 %v165, %v218
  %v237 = vadd.f32 %v166, %v218
  %v238 = vadd.f32 %v167, %v218
  %v239 = vadd.f32 %v168, %v218
  %v240 = vadd.f32 %v169, %v218
  %v241 = vadd.f32 %v170, %v218
  %v242 = vadd.f32 %v171, %v218
  %v243 = vadd.f32 %v172, %v218
  %v244 = vadd.f32 %v173, %v218
  %v245 = vadd.f32 %v174, %v218
  %v246 = vadd.f32 %v175, %v218
  %v247 = vadd.f32 %v176, %v218
  %v248 = vadd.f32 %v177, %v218
  %v249 = vadd.f32 %v178, %v218
  %v250 = vadd.f32 %v179, %v218
  %v251 = vadd.f32 %v180, %v218
  %v252 = vadd.f32 %v181, %v218
  %v253 = vadd.f32 %v182, %v218
  %v254 = vadd.f32 %v183, %v218
  %v255 = vadd.f32 %v184, %v218
  %v256 = vadd.f32 %v185, %v218
  %v257 = vadd.f32 %v186, %v218
  %v258 = vadd.f32 %v187, %v218
  %v259 = vadd.f32 %v188, %v218
  %v260 = vadd.f32 %v189, %v218
  %v261 = vadd.f32 %v190, %v218
  %v262 = vadd.f32 %v191, %v218
  %v263 = vadd.f32 %v192, %v218
  %v264 = vadd.f32 %v193, %v218
  %v265 = vadd.f32 %v194, %v218
  %v266 = vadd.f32 %v195, %v218
  %v267 = vadd.f32 %v196, %v218
  %v268 = vadd.f32 %v197, %v218
  %v269 = vadd.f32 %v198, %v218
  %v270 = vadd.f32 %v199, %v218
  %v271 = vadd.f32 %v200, %v218
  %v272 = vadd.f32 %v201, %v218
  %v273 = vadd.f32 %v202, %v218
  %v274 = vadd.f32 %v203, %v218
  %v275 = vadd.f32 %v204, %v218
  %v276 = vadd.f32 %v205, %v218
  %v277 = vadd.f32 %v206, %v218
  %v278 = vadd.f32 %v207, %v218
  %v279 = vadd.f32 %v208, %v218
  %v280 = vadd.f32 %v209, %v218
  %v281 = vadd.f32 %v210, %v218
  %v282 = vadd.f32 %v211, %v218
  %v283 = vadd.f32 %v212, %v218
  %v284 = vmax.f32 %v220, 0.0
  %v285 = vmax.f32 %v221, 0.0
  %v286 = vmax.f32 %v222, 0.0
  %v287 = vmax.f32 %v223, 0.0
  %v288 = vmax.f32 %v224, 0.0
  %v289 = vmax.f32 %v225, 0.0
  %v290 = vmax.f32 %v226, 0.0
  %v291 = vmax.f32 %v227, 0.0
  %v292 = vmax.f32 %v228, 0.0
  %v293 = vmax.f32 %v229, 0.0
  %v294 = vmax.f32 %v230, 0.0
  %v295 = vmax.f32 %v231, 0.0
  %v296 = vmax.f32 %v232, 0.0
  %v297 = vmax.f32 %v233, 0.0
  %v298 = vmax.f32 %v234, 0.0
  %v299 = vmax.f32 %v235, 0.0
  %v300 = vmax.f32 %v236, 0.0
  %v301 = vmax.f32 %v237, 0.0
  %v302 = vmax.f32 %v238, 0.0
  %v303 = vmax.f32 %v239, 0.0
  %v304 = vmax.f32 %v240, 0.0
  %v305 = vmax.f32 %v241, 0.0
  %v306 = vmax.f32 %v242, 0.0
  %v307 = vmax.f32 %v243, 0.0
  %v308 = vmax.f32 %v244, 0.0
  %v309 = vmax.f32 %v245, 0.0
  %v310 = vmax.f32 %v246, 0.0
  %v311 = vmax.f32 %v247, 0.0
  %v312 = vmax.f32 %v248, 0.0
  %v313 = vmax.f32 %v249, 0.0
  %v314 = vmax.f32 %v250, 0.0
  %v315 = vmax.f32 %v251, 0.0
  %v316 = vmax.f32 %v252, 0.0
  %v317 = vmax.f32 %v253, 0.0
  %v318 = vmax.f32 %v254, 0.0
  %v319 = vmax.f32 %v255, 0.0
  %v320 = vmax.f32 %v256, 0.0
  %v321 = vmax.f32 %v257, 0.0
  %v322 = vmax.f32 %v258, 0.0
  %v323 = vmax.f32 %v259, 0.0
  %v324 = vmax.f32 %v260, 0.0
  %v325 = vmax.f32 %v261, 0.0
  %v326 = vmax.f32 %v262, 0.0
  %v327 = vmax.f32 %v263, 0.0
  %v328 = vmax.f32 %v264, 0.0
  %v329 = vmax.f32 %v265, 0.0
  %v330 = vmax.f32 %v266, 0.0
  %v331 = vmax.f32 %v267, 0.0
  %v332 = vmax.f32 %v268, 0.0
  %v333 = vmax.f32 %v269, 0.0
  %v334 = vmax.f32 %v270, 0.0
  %v335 = vmax.f32 %v271, 0.0
  %v336 = vmax.f32 %v272, 0.0
  %v337 = vmax.f32 %v273, 0.0
  %v338 = vmax.f32 %v274, 0.0
  %v339 = vmax.f32 %v275, 0.0
  %v340 = vmax.f32 %v276, 0.0
  %v341 = vmax.f32 %v277, 0.0
  %v342 = vmax.f32 %v278, 0.0
  %v343 = vmax.f32 %v279, 0.0
  %v344 = vmax.f32 %v280, 0.0
  %v345 = vmax.f32 %v281, 0.0
  %v346 = vmax.f32 %v282, 0.0
  %v347 = vmax.f32 %v283, 0.0
  %v348 = vpack.c.bf16 %v285, %v284
  %v349 = vpack.c.bf16 %v287, %v286
  %v350 = vpack.c.bf16 %v289, %v288
  %v351 = vpack.c.bf16 %v291, %v290
  %v352 = vpack.c.bf16 %v293, %v292
  %v353 = vpack.c.bf16 %v295, %v294
  %v354 = vpack.c.bf16 %v297, %v296
  %v355 = vpack.c.bf16 %v299, %v298
  %v356 = vpack.c.bf16 %v301, %v300
  %v357 = vpack.c.bf16 %v303, %v302
  %v358 = vpack.c.bf16 %v305, %v304
  %v359 = vpack.c.bf16 %v307, %v306
  %v360 = vpack.c.bf16 %v309, %v308
  %v361 = vpack.c.bf16 %v311, %v310
  %v362 = vpack.c.bf16 %v313, %v312
  %v363 = vpack.c.bf16 %v315, %v314
  %v364 = vpack.c.bf16 %v317, %v316
  %v365 = vpack.c.bf16 %v319, %v318
  %v366 = vpack.c.bf16 %v321, %v320
  %v367 = vpack.c.bf16 %v323, %v322
  %v368 = vpack.c.bf16 %v325, %v324
  %v369 = vpack.c.bf16 %v327, %v326
  %v370 = vpack.c.bf16 %v329, %v328
  %v371 = vpack.c.bf16 %v331, %v330
  %v372 = vpack.c.bf16 %v333, %v332
  %v373 = vpack.c.bf16 %v335, %v334
  %v374 = vpack.c.bf16 %v337, %v336
  %v375 = vpack.c.bf16 %v339, %v338
  %v376 = vpack.c.bf16 %v341, %v340
  %v377 = vpack.c.bf16 %v343, %v342
  %v378 = vpack.c.bf16 %v345, %v344
  %v379 = vpack.c.bf16 %v347, %v346
  %v412 = vunpack.c.l.b16 %v348
  %v413 = vunpack.c.h.b16 %v348
  %v414 = vunpack.c.l.b16 %v349
  %v415 = vunpack.c.h.b16 %v349
  %v416 = vunpack.c.l.b16 %v350
  %v417 = vunpack.c.h.b16 %v350
  %v418 = vunpack.c.l.b16 %v351
  %v419 = vunpack.c.h.b16 %v351
  %v420 = vunpack.c.l.b16 %v352
  %v421 = vunpack.c.h.b16 %v352
  %v422 = vunpack.c.l.b16 %v353
  %v423 = vunpack.c.h.b16 %v353
  %v424 = vunpack.c.l.b16 %v354
  %v425 = vunpack.c.h.b16 %v354
  %v426 = vunpack.c.l.b16 %v355
  %v427 = vunpack.c.h.b16 %v355
  %v428 = vunpack.c.l.b16 %v356
  %v429 = vunpack.c.h.b16 %v356
  %v430 = vunpack.c.l.b16 %v357
  %v431 = vunpack.c.h.b16 %v357
  %v432 = vunpack.c.l.b16 %v358
  %v433 = vunpack.c.h.b16 %v358
  %v434 = vunpack.c.l.b16 %v359
  %v435 = vunpack.c.h.b16 %v359
  %v436 = vunpack.c.l.b16 %v360
  %v437 = vunpack.c.h.b16 %v360
  %v438 = vunpack.c.l.b16 %v361
  %v439 = vunpack.c.h.b16 %v361
  %v440 = vunpack.c.l.b16 %v362
  %v441 = vunpack.c.h.b16 %v362
  %v442 = vunpack.c.l.b16 %v363
  %v443 = vunpack.c.h.b16 %v363
  %v444 = vunpack.c.l.b16 %v364
  %v445 = vunpack.c.h.b16 %v364
  %v446 = vunpack.c.l.b16 %v365
  %v447 = vunpack.c.h.b16 %v365
  %v448 = vunpack.c.l.b16 %v366
  %v449 = vunpack.c.h.b16 %v366
  %v450 = vunpack.c.l.b16 %v367
  %v451 = vunpack.c.h.b16 %v367
  %v452 = vunpack.c.l.b16 %v368
  %v453 = vunpack.c.h.b16 %v368
  %v454 = vunpack.c.l.b16 %v369
  %v455 = vunpack.c.h.b16 %v369
  %v456 = vunpack.c.l.b16 %v370
  %v457 = vunpack.c.h.b16 %v370
  %v458 = vunpack.c.l.b16 %v371
  %v459 = vunpack.c.h.b16 %v371
  %v460 = vunpack.c.l.b16 %v372
  %v461 = vunpack.c.h.b16 %v372
  %v462 = vunpack.c.l.b16 %v373
  %v463 = vunpack.c.h.b16 %v373
  %v464 = vunpack.c.l.b16 %v374
  %v465 = vunpack.c.h.b16 %v374
  %v466 = vunpack.c.l.b16 %v375
  %v467 = vunpack.c.h.b16 %v375
  %v468 = vunpack.c.l.b16 %v376
  %v469 = vunpack.c.h.b16 %v376
  %v470 = vunpack.c.l.b16 %v377
  %v471 = vunpack.c.h.b16 %v377
  %v472 = vunpack.c.l.b16 %v378
  %v473 = vunpack.c.h.b16 %v378
  %v474 = vunpack.c.l.b16 %v379
  %v475 = vunpack.c.h.b16 %v379
  %v476 = vpack.c.b16 %v412, %v412
  %v477 = vpack.c.b16 %v413, %v413
  %v478 = vpack.c.b16 %v414, %v414
  %v479 = vpack.c.b16 %v415, %v415
  %v480 = vpack.c.b16 %v416, %v416
  %v481 = vpack.c.b16 %v417, %v417
  %v482 = vpack.c.b16 %v418, %v418
  %v483 = vpack.c.b16 %v419, %v419
  %v484 = vpack.c.b16 %v420, %v420
  %v485 = vpack.c.b16 %v421, %v421
  %v486 = vpack.c.b16 %v422, %v422
  %v487 = vpack.c.b16 %v423, %v423
  %v488 = vpack.c.b16 %v424, %v424
  %v489 = vpack.c.b16 %v425, %v425
  %v490 = vpack.c.b16 %v426, %v426
  %v491 = vpack.c.b16 %v427, %v427
  %v492 = vpack.c.b16 %v428, %v428
  %v493 = vpack.c.b16 %v429, %v429
  %v494 = vpack.c.b16 %v430, %v430
  %v495 = vpack.c.b16 %v431, %v431
  %v496 = vpack.c.b16 %v432, %v432
  %v497 = vpack.c.b16 %v433, %v433
  %v498 = vpack.c.b16 %v434, %v434
  %v499 = vpack.c.b16 %v435, %v435
  %v500 = vpack.c.b16 %v436, %v436
  %v501 = vpack.c.b16 %v437, %v437
  %v502 = vpack.c.b16 %v438, %v438
  %v503 = vpack.c.b16 %v439, %v439
  %v504 = vpack.c.b16 %v440, %v440
  %v505 = vpack.c.b16 %v441, %v441
  %v506 = vpack.c.b16 %v442, %v442
  %v507 = vpack.c.b16 %v443, %v443
  %v508 = vpack.c.b16 %v444, %v444
  %v509 = vpack.c.b16 %v445, %v445
  %v510 = vpack.c.b16 %v446, %v446
  %v511 = vpack.c.b16 %v447, %v447
  %v512 = vpack.c.b16 %v448, %v448
  %v513 = vpack.c.b16 %v449, %v449
  %v514 = vpack.c.b16 %v450, %v450
  %v515 = vpack.c.b16 %v451, %v451
  %v516 = vpack.c.b16 %v452, %v452
  %v517 = vpack.c.b16 %v453, %v453
  %v518 = vpack.c.b16 %v454, %v454
  %v519 = vpack.c.b16 %v455, %v455
  %v520 = vpack.c.b16 %v456, %v456
  %v521 = vpack.c.b16 %v457, %v457
  %v522 = vpack.c.b16 %v458, %v458
  %v523 = vpack.c.b16 %v459, %v459
  %v524 = vpack.c.b16 %v460, %v460
  %v525 = vpack.c.b16 %v461, %v461
  %v526 = vpack.c.b16 %v462, %v462
  %v527 = vpack.c.b16 %v463, %v463
  %v528 = vpack.c.b16 %v464, %v464
  %v529 = vpack.c.b16 %v465, %v465
  %v530 = vpack.c.b16 %v466, %v466
  %v531 = vpack.c.b16 %v467, %v467
  %v532 = vpack.c.b16 %v468, %v468
  %v533 = vpack.c.b16 %v469, %v469
  %v534 = vpack.c.b16 %v470, %v470
  %v535 = vpack.c.b16 %v471, %v471
  %v536 = vpack.c.b16 %v472, %v472
  %v537 = vpack.c.b16 %v473, %v473
  %v538 = vpack.c.b16 %v474, %v474
  %v539 = vpack.c.b16 %v475, %v475
  %604 = vst [vmem:[%s3] sm:$0xf] %v476
  %605 = vst [vmem:[%s3 + $0x4] sm:$0xf] %v477
  %606 = vst [vmem:[%s3 + $0x8] sm:$0xf] %v478
  %607 = vst [vmem:[%s3 + $0xc] sm:$0xf] %v479
  %608 = vst [vmem:[%s3 + $0x10] sm:$0xf] %v480
  %609 = vst [vmem:[%s3 + $0x14] sm:$0xf] %v481
  %610 = vst [vmem:[%s3 + $0x18] sm:$0xf] %v482
  %611 = vst [vmem:[%s3 + $0x1c] sm:$0xf] %v483
  %612 = vst [vmem:[%s3 + $0x20] sm:$0xf] %v484
  %613 = vst [vmem:[%s3 + $0x24] sm:$0xf] %v485
  %614 = vst [vmem:[%s3 + $0x28] sm:$0xf] %v486
  %615 = vst [vmem:[%s3 + $0x2c] sm:$0xf] %v487
  %616 = vst [vmem:[%s3 + $0x30] sm:$0xf] %v488
  %617 = vst [vmem:[%s3 + $0x34] sm:$0xf] %v489
  %618 = vst [vmem:[%s3 + $0x38] sm:$0xf] %v490
  %619 = vst [vmem:[%s3 + $0x3c] sm:$0xf] %v491
  %620 = vst [vmem:[%s3 + $0x40] sm:$0xf] %v492
  %621 = vst [vmem:[%s3 + $0x44] sm:$0xf] %v493
  %622 = vst [vmem:[%s3 + $0x48] sm:$0xf] %v494
  %623 = vst [vmem:[%s3 + $0x4c] sm:$0xf] %v495
  %624 = vst [vmem:[%s3 + $0x50] sm:$0xf] %v496
  %625 = vst [vmem:[%s3 + $0x54] sm:$0xf] %v497
  %626 = vst [vmem:[%s3 + $0x58] sm:$0xf] %v498
  %627 = vst [vmem:[%s3 + $0x5c] sm:$0xf] %v499
  %628 = vst [vmem:[%s3 + $0x60] sm:$0xf] %v500
  %629 = vst [vmem:[%s3 + $0x64] sm:$0xf] %v501
  %630 = vst [vmem:[%s3 + $0x68] sm:$0xf] %v502
  %631 = vst [vmem:[%s3 + $0x6c] sm:$0xf] %v503
  %632 = vst [vmem:[%s3 + $0x70] sm:$0xf] %v504
  %633 = vst [vmem:[%s3 + $0x74] sm:$0xf] %v505
  %634 = vst [vmem:[%s3 + $0x78] sm:$0xf] %v506
  %635 = vst [vmem:[%s3 + $0x7c] sm:$0xf] %v507
  %636 = vst [vmem:[%s3 + $0x80] sm:$0xf] %v508
  %637 = vst [vmem:[%s3 + $0x84] sm:$0xf] %v509
  %638 = vst [vmem:[%s3 + $0x88] sm:$0xf] %v510
  %639 = vst [vmem:[%s3 + $0x8c] sm:$0xf] %v511
  %640 = vst [vmem:[%s3 + $0x90] sm:$0xf] %v512
  %641 = vst [vmem:[%s3 + $0x94] sm:$0xf] %v513
  %642 = vst [vmem:[%s3 + $0x98] sm:$0xf] %v514
  %643 = vst [vmem:[%s3 + $0x9c] sm:$0xf] %v515
  %644 = vst [vmem:[%s3 + $0xa0] sm:$0xf] %v516
  %645 = vst [vmem:[%s3 + $0xa4] sm:$0xf] %v517
  %646 = vst [vmem:[%s3 + $0xa8] sm:$0xf] %v518
  %647 = vst [vmem:[%s3 + $0xac] sm:$0xf] %v519
  %648 = vst [vmem:[%s3 + $0xb0] sm:$0xf] %v520
  %649 = vst [vmem:[%s3 + $0xb4] sm:$0xf] %v521
  %650 = vst [vmem:[%s3 + $0xb8] sm:$0xf] %v522
  %651 = vst [vmem:[%s3 + $0xbc] sm:$0xf] %v523
  %652 = vst [vmem:[%s3 + $0xc0] sm:$0xf] %v524
  %653 = vst [vmem:[%s3 + $0xc4] sm:$0xf] %v525
  %654 = vst [vmem:[%s3 + $0xc8] sm:$0xf] %v526
  %655 = vst [vmem:[%s3 + $0xcc] sm:$0xf] %v527
  %656 = vst [vmem:[%s3 + $0xd0] sm:$0xf] %v528
  %657 = vst [vmem:[%s3 + $0xd4] sm:$0xf] %v529
  %658 = vst [vmem:[%s3 + $0xd8] sm:$0xf] %v530
  %659 = vst [vmem:[%s3 + $0xdc] sm:$0xf] %v531
  %660 = vst [vmem:[%s3 + $0xe0] sm:$0xf] %v532
  %661 = vst [vmem:[%s3 + $0xe4] sm:$0xf] %v533
  %662 = vst [vmem:[%s3 + $0xe8] sm:$0xf] %v534
  %663 = vst [vmem:[%s3 + $0xec] sm:$0xf] %v535
  %664 = vst [vmem:[%s3 + $0xf0] sm:$0xf] %v536
  %665 = vst [vmem:[%s3 + $0xf4] sm:$0xf] %v537
  %666 = vst [vmem:[%s3 + $0xf8] sm:$0xf] %v538
  %667 = vst [vmem:[%s3 + $0xfc] sm:$0xf] %v539
  // Predicated region
  $region14: #{conv_gener_p_forward.12} parent=0 // pred_check
    _
  $region15: #{conv_gener_p_forward.12} parent=0 // pred_check_branch
    %669 = sbr.rel (0) target = $region17
  $region16: #{conv_gener_p_forward.12} parent=0 // pred_region
    _
  $region17: #{conv_gener_p_forward.12} parent=0 // pred_fallthru
    _
  // Predicated region
  $region18: #{conv_gener_p_forward.12} parent=0 // pred_check
    _
  $region19: #{conv_gener_p_forward.12} parent=0 // pred_check_branch
    %671 = sbr.rel (0) target = $region21
  $region20: #{conv_gener_p_forward.12} parent=0 // pred_region
    _
  $region21: #{conv_gener_p_forward.12} parent=0 // pred_fallthru
    _

// kernel: conv_gener_p_forward.11
$region0: #{conv_gener_p_forward.11}
  #allocation0 [shape = 'u32[]', space=smem, size = 0x4, offset = 0x4, fixed_abs, tag = 'smem constant byte address 0x4 - core index']
  #allocation1 [shape = 'u32[144,128]{1,0:T(1,128)}', space=vmem, size = 0x12000, scoped, tag = 'internal scratch']
  %s0 = inlined_call_operand.vmem [shape: bf16[512,256], index: 0, kind: input, shape index: {}]
  %s1 = inlined_call_operand.vmem [shape: bf16[256,128], index: 1, kind: input, shape index: {}]
  %s2 = inlined_call_operand.vmem [shape: bf16[512,128], index: 2, kind: output, shape index: {0}]
  %s3 = inlined_call_operand.vmem [shape: f32[16,128], index: 3, kind: output, shape index: {1}]
  %s4 = inlined_call_operand.vmem [shape: f32[16,128], index: 4, kind: output, shape index: {2}]
  %5 = xla_tuple %s2, %s3, %s4
  %s6 = sld [smem:[#allocation0]]
  $region57: #{conv_gener_p_forward.11} parent=0
    _
  %s8 = ssub.s32 1, %s6
  %s9 = scalar_select 0, %s8, %s6
  loop: start=0, step=1, limit=4
  $region2: #{conv_gener_p_forward.11} parent=0 // loop_pre_header
    _
  $region3: #{conv_gener_p_forward.11} parent=0 // loop_header
    %s11 = sphi 0, %s15
    %p12 = scmp.ge.s32.totalorder %s11, 4
    %s18 = sphi 0, %s30
    %s19 = sphi 0, %s26
    %s20 = sphi 0, %s18
    %s21 = sphi 0, %s19
    %s22 = sphi 0, %s20
    %s23 = sphi 0, %s21
    %s33 = sphi 0, %s35
    %s36 = sphi 0, %s33
    %s37 = sphi 0, %s36
    %s53 = sphi 0, %s37
    %s59 = sphi 0, %s61
    %s62 = sphi 0, %s59
    %s63 = sphi 0, %s62
    %s79 = sphi 0, %s63
    %s87 = sphi 0, %s89
    %s90 = sphi 0, %s87
    %s91 = sphi 0, %s90
    %s107 = sphi 0, %s91
    %s115 = sphi 0, %s117
    %s118 = sphi 0, %s115
    %s119 = sphi 0, %s118
    %s135 = sphi 0, %s119
    %s143 = sphi 0, %s145
    %s146 = sphi 0, %s143
    %s147 = sphi 0, %s146
    %s163 = sphi 0, %s147
  $region4: #{conv_gener_p_forward.11} parent=0 // loop_header_branch
    %14 = sbr.rel (%p12) target = $region8
  $region5: #{conv_gener_p_forward.11} parent=0 // loop_body
    %s16 = ssub.s32 %s11, 1
    %s17 = ssub.s32 %s11, 2
    %s24 = sadd.s32 1, %s19
    %p25 = scmp.ge.s32.totalorder %s24, 2
    %s26 = scalar_select %p25, 0, %s24
    %s27 = sadd.s32 1, %s18
    %s28 = scalar_select %p25, %s27, %s18
    %p29 = scmp.ge.s32.totalorder %s28, 1
    %s30 = scalar_select %p29, 0, %s28
    %s31 = ssub.s32 %s19, %s26
    %p32 = scmp.eq.s32.totalorder %s31, 0
    %s34 = sadd.s32 %s33, 1
    %s35 = scalar_select %p32, %s33, %s34
    %p38 = pneg %p32
    %p39 = scmp.eq.s32.totalorder %s11, 1
    %p40 = por %p38, %p39
    %p41 = scmp.ne.s32.totalorder %s33, %s36
    %p42 = scmp.eq.s32.totalorder %s11, 0
    %p43 = por %p41, %p42
    %p44 = scmp.ne.s32.totalorder %s33, %s36
    %p45 = scmp.eq.s32.totalorder %s16, 1
    %p46 = por %p44, %p45
    %p47 = scmp.ne.s32.totalorder %s36, %s37
    %p48 = scmp.eq.s32.totalorder %s16, 0
    %p49 = por %p47, %p48
    %p50 = scmp.ne.s32.totalorder %s36, %s37
    %p51 = scmp.eq.s32.totalorder %s17, 1
    %p52 = por %p50, %p51
    %p54 = scmp.ne.s32.totalorder %s37, %s53
    %p55 = scmp.eq.s32.totalorder %s17, 0
    %p56 = por %p54, %p55
    %s57 = ssub.s32 %s18, %s30
    %p58 = scmp.eq.s32.totalorder %s57, 0
    %s60 = sadd.s32 %s59, 1
    %s61 = scalar_select %p58, %s59, %s60
    %p64 = pneg %p58
    %p65 = scmp.eq.s32.totalorder %s11, 1
    %p66 = por %p64, %p65
    %p67 = scmp.ne.s32.totalorder %s59, %s62
    %p68 = scmp.eq.s32.totalorder %s11, 0
    %p69 = por %p67, %p68
    %p70 = scmp.ne.s32.totalorder %s59, %s62
    %p71 = scmp.eq.s32.totalorder %s16, 1
    %p72 = por %p70, %p71
    %p73 = scmp.ne.s32.totalorder %s62, %s63
    %p74 = scmp.eq.s32.totalorder %s16, 0
    %p75 = por %p73, %p74
    %p76 = scmp.ne.s32.totalorder %s62, %s63
    %p77 = scmp.eq.s32.totalorder %s17, 1
    %p78 = por %p76, %p77
    %p80 = scmp.ne.s32.totalorder %s63, %s79
    %p81 = scmp.eq.s32.totalorder %s17, 0
    %p82 = por %p80, %p81
    %s83 = ssub.s32 %s19, %s26
    %s84 = ssub.s32 %s18, %s30
    %s85 = sor.u32 %s83, %s84
    %p86 = scmp.eq.s32.totalorder %s85, 0
    %s88 = sadd.s32 %s87, 1
    %s89 = scalar_select %p86, %s87, %s88
    %p92 = pneg %p86
    %p93 = scmp.eq.s32.totalorder %s11, 1
    %p94 = por %p92, %p93
    %p95 = scmp.ne.s32.totalorder %s87, %s90
    %p96 = scmp.eq.s32.totalorder %s11, 0
    %p97 = por %p95, %p96
    %p98 = scmp.ne.s32.totalorder %s87, %s90
    %p99 = scmp.eq.s32.totalorder %s16, 1
    %p100 = por %p98, %p99
    %p101 = scmp.ne.s32.totalorder %s90, %s91
    %p102 = scmp.eq.s32.totalorder %s16, 0
    %p103 = por %p101, %p102
    %p104 = scmp.ne.s32.totalorder %s90, %s91
    %p105 = scmp.eq.s32.totalorder %s17, 1
    %p106 = por %p104, %p105
    %p108 = scmp.ne.s32.totalorder %s91, %s107
    %p109 = scmp.eq.s32.totalorder %s17, 0
    %p110 = por %p108, %p109
    %s111 = ssub.s32 %s19, %s26
    %s112 = ssub.s32 %s18, %s30
    %s113 = sor.u32 %s111, %s112
    %p114 = scmp.eq.s32.totalorder %s113, 0
    %s116 = sadd.s32 %s115, 1
    %s117 = scalar_select %p114, %s115, %s116
    %p120 = pneg %p114
    %p121 = scmp.eq.s32.totalorder %s11, 1
    %p122 = por %p120, %p121
    %p123 = scmp.ne.s32.totalorder %s115, %s118
    %p124 = scmp.eq.s32.totalorder %s11, 0
    %p125 = por %p123, %p124
    %p126 = scmp.ne.s32.totalorder %s115, %s118
    %p127 = scmp.eq.s32.totalorder %s16, 1
    %p128 = por %p126, %p127
    %p129 = scmp.ne.s32.totalorder %s118, %s119
    %p130 = scmp.eq.s32.totalorder %s16, 0
    %p131 = por %p129, %p130
    %p132 = scmp.ne.s32.totalorder %s118, %s119
    %p133 = scmp.eq.s32.totalorder %s17, 1
    %p134 = por %p132, %p133
    %p136 = scmp.ne.s32.totalorder %s119, %s135
    %p137 = scmp.eq.s32.totalorder %s17, 0
    %p138 = por %p136, %p137
    %s139 = ssub.s32 %s19, %s26
    %s140 = ssub.s32 %s18, %s30
    %s141 = sor.u32 %s139, %s140
    %p142 = scmp.eq.s32.totalorder %s141, 0
    %s144 = sadd.s32 %s143, 1
    %s145 = scalar_select %p142, %s143, %s144
    %p148 = pneg %p142
    %p149 = scmp.eq.s32.totalorder %s11, 1
    %p150 = por %p148, %p149
    %p151 = scmp.ne.s32.totalorder %s143, %s146
    %p152 = scmp.eq.s32.totalorder %s11, 0
    %p153 = por %p151, %p152
    %p154 = scmp.ne.s32.totalorder %s143, %s146
    %p155 = scmp.eq.s32.totalorder %s16, 1
    %p156 = por %p154, %p155
    %p157 = scmp.ne.s32.totalorder %s146, %s147
    %p158 = scmp.eq.s32.totalorder %s16, 0
    %p159 = por %p157, %p158
    %p160 = scmp.ne.s32.totalorder %s146, %s147
    %p161 = scmp.eq.s32.totalorder %s17, 1
    %p162 = por %p160, %p161
    %p164 = scmp.ne.s32.totalorder %s147, %s163
    %p165 = scmp.eq.s32.totalorder %s17, 0
    %p166 = por %p164, %p165
    %p167 = scmp.le.s32.totalorder 1, %s11
    %p168 = scmp.lt.s32.totalorder %s11, 3
    %p169 = pnand %p167, %p168
    %p170 = pneg %p169
    // Predicated region
    $region9: #{conv_gener_p_forward.11} parent=5 // pred_check
      _
    $region10: #{conv_gener_p_forward.11} parent=5 // pred_check_branch
      %172 = sbr.rel (%p169) target = $region12
    $region11: #{conv_gener_p_forward.11} parent=5 // pred_region
      %s173 = ssub.s32 %s11, 1
      // Predicated region
      $region13: #{conv_gener_p_forward.11} parent=11 // pred_check
        %p174 = pneg %p75
      $region14: #{conv_gener_p_forward.11} parent=11 // pred_check_branch
        %176 = sbr.rel (%p174) target = $region16
      $region15: #{conv_gener_p_forward.11} parent=11 // pred_region
        %p177 = scmp.lt.s32.totalorder %s20, 0
        %s178 = scalar_select %p177, %s20, 0
        %s179 = smul.addr %s178, 4
        %s180 = scalar_lea.vmem %s1, %s179
      $region16: #{conv_gener_p_forward.11} parent=11 // pred_fallthru
        _
    $region12: #{conv_gener_p_forward.11} parent=5 // pred_fallthru
      _
    %p181 = scmp.lt.s32.totalorder %s11, 2
    // Predicated region
    $region17: #{conv_gener_p_forward.11} parent=5 // pred_check
      %p182 = pneg %p181
    $region18: #{conv_gener_p_forward.11} parent=5 // pred_check_branch
      %184 = sbr.rel (%p182) target = $region20
    $region19: #{conv_gener_p_forward.11} parent=5 // pred_region
      // Predicated region
      $region21: #{conv_gener_p_forward.11} parent=19 // pred_check
        %p185 = pneg %p43
      $region22: #{conv_gener_p_forward.11} parent=19 // pred_check_branch
        %187 = sbr.rel (%p185) target = $region24
      $region23: #{conv_gener_p_forward.11} parent=19 // pred_region
        %s188 = smul.u32 32, %s19
        %p189 = scmp.lt.s32.totalorder %s188, 63
        %s190 = scalar_select %p189, %s188, 63
        %s191 = smul.addr %s190, 2
        %s192 = smul.addr %s191, 4
        %s193 = scalar_lea.vmem %s0, %s192
        %s194 = smul.u32 32, %s19
      $region24: #{conv_gener_p_forward.11} parent=19 // pred_fallthru
        _
    $region20: #{conv_gener_p_forward.11} parent=5 // pred_fallthru
      _
    %p195 = scmp.le.s32.totalorder 1, %s11
    %p196 = scmp.lt.s32.totalorder %s11, 3
    %p197 = pnand %p195, %p196
    %p198 = pneg %p197
    // Predicated region
    $region25: #{conv_gener_p_forward.11} parent=5 // pred_check
      _
    $region26: #{conv_gener_p_forward.11} parent=5 // pred_check_branch
      %200 = sbr.rel (%p197) target = $region28
    $region27: #{conv_gener_p_forward.11} parent=5 // pred_region
      %s201 = ssub.s32 %s11, 1
      %s202 = smul.u32 32, %s21
      %p203 = scmp.lt.s32.totalorder %s202, 63
      %s204 = scalar_select %p203, %s202, 63
      %s205 = smul.addr %s204, 2
      %s206 = smul.addr %s205, 4
      %s207 = scalar_lea.vmem %s0, %s206
      %p208 = pneg %p49
      %p209 = pneg %p46
      %p210 = scmp.lt.s32.totalorder %s20, 0
      %s211 = scalar_select %p210, %s20, 0
      %s212 = smul.addr %s211, 4
      %s213 = scalar_lea.vmem %s1, %s212
      %p214 = pneg %p75
      %p215 = pneg %p72
      %p216 = pneg %p103
      %p217 = pneg %p100
      %s218 = smul.u32 32, %s21
      %p219 = scmp.lt.s32.totalorder %s218, 63
      %s220 = scalar_select %p219, %s218, 63
      %p221 = scmp.lt.s32.totalorder %s20, 0
      %s222 = scalar_select %p221, %s20, 0
      %s223 = sadd.s32 %s222, %s220
      %s224 = smul.addr %s223, 4
      %s225 = scalar_lea.vmem %s2, %s224
      %p226 = pneg %p131
      %p227 = pneg %p128
      %p228 = scmp.lt.s32.totalorder %s21, 1
      %s229 = scalar_select %p228, %s21, 1
      %p230 = scmp.lt.s32.totalorder %s20, 0
      %s231 = scalar_select %p230, %s20, 0
      %s232 = sadd.s32 %s231, %s229
      %s233 = smul.addr %s232, 8
      %s234 = scalar_lea.vmem %s3, %s233
      %p235 = pneg %p159
      %p236 = pneg %p156
      %p237 = scmp.lt.s32.totalorder %s21, 1
      %s238 = scalar_select %p237, %s21, 1
      %p239 = scmp.lt.s32.totalorder %s20, 0
      %s240 = scalar_select %p239, %s20, 0
      %s241 = sadd.s32 %s240, %s238
      %s242 = smul.addr %s241, 8
      %s243 = scalar_lea.vmem %s4, %s242
      %s244 = smul.u32 32, %s21
      %p245 = scmp.lt.s32.totalorder %s244, 63
      %s246 = scalar_select %p245, %s244, 63
      %s247 = smul.addr %s246, 2
      %s248 = smul.addr %s247, 4
      %s249 = scalar_lea.vmem %s0, %s248
      %s250 = smul.u32 32, %s21
      %p251 = scmp.lt.s32.totalorder %s20, 0
      %s252 = scalar_select %p251, %s20, 0
      %s253 = smul.addr %s252, 4
      %s254 = scalar_lea.vmem %s1, %s253
      %s255 = smul.u32 32, %s21
      %p256 = scmp.lt.s32.totalorder %s255, 63
      %s257 = scalar_select %p256, %s255, 63
      %p258 = scmp.lt.s32.totalorder %s20, 0
      %s259 = scalar_select %p258, %s20, 0
      %s260 = sadd.s32 %s259, %s257
      %s261 = smul.addr %s260, 4
      %s262 = scalar_lea.vmem %s2, %s261
      %s263 = smul.u32 32, %s21
      %p264 = scmp.lt.s32.totalorder %s21, 1
      %s265 = scalar_select %p264, %s21, 1
      %p266 = scmp.lt.s32.totalorder %s20, 0
      %s267 = scalar_select %p266, %s20, 0
      %s268 = sadd.s32 %s267, %s265
      %s269 = smul.addr %s268, 8
      %s270 = scalar_lea.vmem %s3, %s269
      %p271 = scmp.lt.s32.totalorder %s21, 1
      %s272 = scalar_select %p271, %s21, 1
      %p273 = scmp.lt.s32.totalorder %s20, 0
      %s274 = scalar_select %p273, %s20, 0
      %s275 = sadd.s32 %s274, %s272
      %s276 = smul.addr %s275, 8
      %s277 = scalar_lea.vmem %s4, %s276
      %v279 = vld [vmem:[%s249] sm:$0xff]
      %v280 = vld [vmem:[%s249 + $0x8] sm:$0xff]
      %v281 = vld [vmem:[%s249 + $0x10] sm:$0xff]
      %v282 = vld [vmem:[%s249 + $0x18] sm:$0xff]
      %v283 = vld [vmem:[%s249 + $0x20] sm:$0xff]
      %v284 = vld [vmem:[%s249 + $0x28] sm:$0xff]
      %v285 = vld [vmem:[%s249 + $0x30] sm:$0xff]
      %v286 = vld [vmem:[%s249 + $0x38] sm:$0xff]
      %v287 = vld [vmem:[%s249 + $0x40] sm:$0xff]
      %v288 = vld [vmem:[%s249 + $0x48] sm:$0xff]
      %v289 = vld [vmem:[%s249 + $0x50] sm:$0xff]
      %v290 = vld [vmem:[%s249 + $0x58] sm:$0xff]
      %v291 = vld [vmem:[%s249 + $0x60] sm:$0xff]
      %v292 = vld [vmem:[%s249 + $0x68] sm:$0xff]
      %v293 = vld [vmem:[%s249 + $0x70] sm:$0xff]
      %v294 = vld [vmem:[%s249 + $0x78] sm:$0xff]
      %v295 = vld [vmem:[%s249 + $0x80] sm:$0xff]
      %v296 = vld [vmem:[%s249 + $0x88] sm:$0xff]
      %v297 = vld [vmem:[%s249 + $0x90] sm:$0xff]
      %v298 = vld [vmem:[%s249 + $0x98] sm:$0xff]
      %v299 = vld [vmem:[%s249 + $0xa0] sm:$0xff]
      %v300 = vld [vmem:[%s249 + $0xa8] sm:$0xff]
      %v301 = vld [vmem:[%s249 + $0xb0] sm:$0xff]
      %v302 = vld [vmem:[%s249 + $0xb8] sm:$0xff]
      %v303 = vld [vmem:[%s249 + $0xc0] sm:$0xff]
      %v304 = vld [vmem:[%s249 + $0xc8] sm:$0xff]
      %v305 = vld [vmem:[%s249 + $0xd0] sm:$0xff]
      %v306 = vld [vmem:[%s249 + $0xd8] sm:$0xff]
      %v307 = vld [vmem:[%s249 + $0xe0] sm:$0xff]
      %v308 = vld [vmem:[%s249 + $0xe8] sm:$0xff]
      %v309 = vld [vmem:[%s249 + $0xf0] sm:$0xff]
      %v310 = vld [vmem:[%s249 + $0xf8] sm:$0xff]
      %v311 = vld [vmem:[%s254] sm:$0xf]
      %v312 = vld [vmem:[%s254 + $0x4] sm:$0xf]
      %v313 = vld [vmem:[%s254 + $0x8] sm:$0xf]
      %v314 = vld [vmem:[%s254 + $0xc] sm:$0xf]
      %v315 = vld [vmem:[%s254 + $0x10] sm:$0xf]
      %v316 = vld [vmem:[%s254 + $0x14] sm:$0xf]
      %v317 = vld [vmem:[%s254 + $0x18] sm:$0xf]
      %v318 = vld [vmem:[%s254 + $0x1c] sm:$0xf]
      %v319 = vld [vmem:[%s254 + $0x20] sm:$0xf]
      %v320 = vld [vmem:[%s254 + $0x24] sm:$0xf]
      %v321 = vld [vmem:[%s254 + $0x28] sm:$0xf]
      %v322 = vld [vmem:[%s254 + $0x2c] sm:$0xf]
      %v323 = vld [vmem:[%s254 + $0x30] sm:$0xf]
      %v324 = vld [vmem:[%s254 + $0x34] sm:$0xf]
      %v325 = vld [vmem:[%s254 + $0x38] sm:$0xf]
      %v326 = vld [vmem:[%s254 + $0x3c] sm:$0xf]
      %v327 = vld [vmem:[%s254 + $0x40] sm:$0xf]
      %v328 = vld [vmem:[%s254 + $0x44] sm:$0xf]
      %v329 = vld [vmem:[%s254 + $0x48] sm:$0xf]
      %v330 = vld [vmem:[%s254 + $0x4c] sm:$0xf]
      %v331 = vld [vmem:[%s254 + $0x50] sm:$0xf]
      %v332 = vld [vmem:[%s254 + $0x54] sm:$0xf]
      %v333 = vld [vmem:[%s254 + $0x58] sm:$0xf]
      %v334 = vld [vmem:[%s254 + $0x5c] sm:$0xf]
      %v335 = vld [vmem:[%s254 + $0x60] sm:$0xf]
      %v336 = vld [vmem:[%s254 + $0x64] sm:$0xf]
      %v337 = vld [vmem:[%s254 + $0x68] sm:$0xf]
      %v338 = vld [vmem:[%s254 + $0x6c] sm:$0xf]
      %v339 = vld [vmem:[%s254 + $0x70] sm:$0xf]
      %v340 = vld [vmem:[%s254 + $0x74] sm:$0xf]
      %v341 = vld [vmem:[%s254 + $0x78] sm:$0xf]
      %v342 = vld [vmem:[%s254 + $0x7c] sm:$0xf]
      %v375 = vunpack.c.l.b16 %v279
      %v376 = vunpack.c.h.b16 %v279
      %v377 = vunpack.c.l.b16 %v280
      %v378 = vunpack.c.h.b16 %v280
      %v379 = vunpack.c.l.b16 %v281
      %v380 = vunpack.c.h.b16 %v281
      %v381 = vunpack.c.l.b16 %v282
      %v382 = vunpack.c.h.b16 %v282
      %v383 = vunpack.c.l.b16 %v283
      %v384 = vunpack.c.h.b16 %v283
      %v385 = vunpack.c.l.b16 %v284
      %v386 = vunpack.c.h.b16 %v284
      %v387 = vunpack.c.l.b16 %v285
      %v388 = vunpack.c.h.b16 %v285
      %v389 = vunpack.c.l.b16 %v286
      %v390 = vunpack.c.h.b16 %v286
      %v391 = vunpack.c.l.b16 %v287
      %v392 = vunpack.c.h.b16 %v287
      %v393 = vunpack.c.l.b16 %v288
      %v394 = vunpack.c.h.b16 %v288
      %v395 = vunpack.c.l.b16 %v289
      %v396 = vunpack.c.h.b16 %v289
      %v397 = vunpack.c.l.b16 %v290
      %v398 = vunpack.c.h.b16 %v290
      %v399 = vunpack.c.l.b16 %v291
      %v400 = vunpack.c.h.b16 %v291
      %v401 = vunpack.c.l.b16 %v292
      %v402 = vunpack.c.h.b16 %v292
      %v403 = vunpack.c.l.b16 %v293
      %v404 = vunpack.c.h.b16 %v293
      %v405 = vunpack.c.l.b16 %v294
      %v406 = vunpack.c.h.b16 %v294
      %v407 = vunpack.c.l.b16 %v295
      %v408 = vunpack.c.h.b16 %v295
      %v409 = vunpack.c.l.b16 %v296
      %v410 = vunpack.c.h.b16 %v296
      %v411 = vunpack.c.l.b16 %v297
      %v412 = vunpack.c.h.b16 %v297
      %v413 = vunpack.c.l.b16 %v298
      %v414 = vunpack.c.h.b16 %v298
      %v415 = vunpack.c.l.b16 %v299
      %v416 = vunpack.c.h.b16 %v299
      %v417 = vunpack.c.l.b16 %v300
      %v418 = vunpack.c.h.b16 %v300
      %v419 = vunpack.c.l.b16 %v301
      %v420 = vunpack.c.h.b16 %v301
      %v421 = vunpack.c.l.b16 %v302
      %v422 = vunpack.c.h.b16 %v302
      %v423 = vunpack.c.l.b16 %v303
      %v424 = vunpack.c.h.b16 %v303
      %v425 = vunpack.c.l.b16 %v304
      %v426 = vunpack.c.h.b16 %v304
      %v427 = vunpack.c.l.b16 %v305
      %v428 = vunpack.c.h.b16 %v305
      %v429 = vunpack.c.l.b16 %v306
      %v430 = vunpack.c.h.b16 %v306
      %v431 = vunpack.c.l.b16 %v307
      %v432 = vunpack.c.h.b16 %v307
      %v433 = vunpack.c.l.b16 %v308
      %v434 = vunpack.c.h.b16 %v308
      %v435 = vunpack.c.l.b16 %v309
      %v436 = vunpack.c.h.b16 %v309
      %v437 = vunpack.c.l.b16 %v310
      %v438 = vunpack.c.h.b16 %v310
      %v439 = vpack.c.b16 %v377, %v375
      %v440 = vpack.c.b16 %v378, %v376
      %v441 = vpack.c.b16 %v381, %v379
      %v442 = vpack.c.b16 %v382, %v380
      %v443 = vpack.c.b16 %v385, %v383
      %v444 = vpack.c.b16 %v386, %v384
      %v445 = vpack.c.b16 %v389, %v387
      %v446 = vpack.c.b16 %v390, %v388
      %v447 = vpack.c.b16 %v393, %v391
      %v448 = vpack.c.b16 %v394, %v392
      %v449 = vpack.c.b16 %v397, %v395
      %v450 = vpack.c.b16 %v398, %v396
      %v451 = vpack.c.b16 %v401, %v399
      %v452 = vpack.c.b16 %v402, %v400
      %v453 = vpack.c.b16 %v405, %v403
      %v454 = vpack.c.b16 %v406, %v404
      %v455 = vpack.c.b16 %v409, %v407
      %v456 = vpack.c.b16 %v410, %v408
      %v457 = vpack.c.b16 %v413, %v411
      %v458 = vpack.c.b16 %v414, %v412
      %v459 = vpack.c.b16 %v417, %v415
      %v460 = vpack.c.b16 %v418, %v416
      %v461 = vpack.c.b16 %v421, %v419
      %v462 = vpack.c.b16 %v422, %v420
      %v463 = vpack.c.b16 %v425, %v423
      %v464 = vpack.c.b16 %v426, %v424
      %v465 = vpack.c.b16 %v429, %v427
      %v466 = vpack.c.b16 %v430, %v428
      %v467 = vpack.c.b16 %v433, %v431
      %v468 = vpack.c.b16 %v434, %v432
      %v469 = vpack.c.b16 %v437, %v435
      %v470 = vpack.c.b16 %v438, %v436
      %v535 = vunpack.c.l.b16 %v311
      %v536 = vunpack.c.l.b16 %v312
      %v537 = vunpack.c.l.b16 %v313
      %v538 = vunpack.c.l.b16 %v314
      %v539 = vunpack.c.l.b16 %v315
      %v540 = vunpack.c.l.b16 %v316
      %v541 = vunpack.c.l.b16 %v317
      %v542 = vunpack.c.l.b16 %v318
      %v543 = vunpack.c.l.b16 %v319
      %v544 = vunpack.c.l.b16 %v320
      %v545 = vunpack.c.l.b16 %v321
      %v546 = vunpack.c.l.b16 %v322
      %v547 = vunpack.c.l.b16 %v323
      %v548 = vunpack.c.l.b16 %v324
      %v549 = vunpack.c.l.b16 %v325
      %v550 = vunpack.c.l.b16 %v326
      %v551 = vunpack.c.l.b16 %v327
      %v552 = vunpack.c.l.b16 %v328
      %v553 = vunpack.c.l.b16 %v329
      %v554 = vunpack.c.l.b16 %v330
      %v555 = vunpack.c.l.b16 %v331
      %v556 = vunpack.c.l.b16 %v332
      %v557 = vunpack.c.l.b16 %v333
      %v558 = vunpack.c.l.b16 %v334
      %v559 = vunpack.c.l.b16 %v335
      %v560 = vunpack.c.l.b16 %v336
      %v561 = vunpack.c.l.b16 %v337
      %v562 = vunpack.c.l.b16 %v338
      %v563 = vunpack.c.l.b16 %v339
      %v564 = vunpack.c.l.b16 %v340
      %v565 = vunpack.c.l.b16 %v341
      %v566 = vunpack.c.l.b16 %v342
      %v567 = vpack.c.b16 %v536, %v535
      %v568 = vpack.c.b16 %v538, %v537
      %v569 = vpack.c.b16 %v540, %v539
      %v570 = vpack.c.b16 %v542, %v541
      %v571 = vpack.c.b16 %v544, %v543
      %v572 = vpack.c.b16 %v546, %v545
      %v573 = vpack.c.b16 %v548, %v547
      %v574 = vpack.c.b16 %v550, %v549
      %v575 = vpack.c.b16 %v552, %v551
      %v576 = vpack.c.b16 %v554, %v553
      %v577 = vpack.c.b16 %v556, %v555
      %v578 = vpack.c.b16 %v558, %v557
      %v579 = vpack.c.b16 %v560, %v559
      %v580 = vpack.c.b16 %v562, %v561
      %v581 = vpack.c.b16 %v564, %v563
      %v582 = vpack.c.b16 %v566, %v565
      %599 = vmatprep.subr.bf16.mxu0 0
      %600 = vmatpush1.bf16.msra.mxu0 %v574
      %601 = vmatprep.subr.bf16.mxu0 0
      %602 = vmatpush1.bf16.msra.mxu0 %v573
      %603 = vmatprep.subr.bf16.mxu0 0
      %604 = vmatpush1.bf16.msra.mxu0 %v572
      %605 = vmatprep.subr.bf16.mxu0 0
      %606 = vmatpush1.bf16.msra.mxu0 %v571
      %607 = vmatprep.subr.bf16.mxu0 0
      %608 = vmatpush1.bf16.msra.mxu0 %v570
      %609 = vmatprep.subr.bf16.mxu0 0
      %610 = vmatpush1.bf16.msra.mxu0 %v569
      %611 = vmatprep.subr.bf16.mxu0 0
      %612 = vmatpush1.bf16.msra.mxu0 %v568
      %613 = vmatprep.subr.bf16.mxu0 0
      %614 = vmatpush1.bf16.msra.mxu0 %v567
      %615 = vmatprep.subr.bf16.mxu0 0
      %616 = vmatpush2.bf16.msra.mxu0 %v582
      %617 = vmatprep.subr.bf16.mxu0 0
      %618 = vmatpush2.bf16.msra.mxu0 %v581
      %619 = vmatprep.subr.bf16.mxu0 0
      %620 = vmatpush2.bf16.msra.mxu0 %v580
      %621 = vmatprep.subr.bf16.mxu0 0
      %622 = vmatpush2.bf16.msra.mxu0 %v579
      %623 = vmatprep.subr.bf16.mxu0 0
      %624 = vmatpush2.bf16.msra.mxu0 %v578
      %625 = vmatprep.subr.bf16.mxu0 0
      %626 = vmatpush2.bf16.msra.mxu0 %v577
      %627 = vmatprep.subr.bf16.mxu0 0
      %628 = vmatpush2.bf16.msra.mxu0 %v576
      %629 = vmatprep.subr.bf16.mxu0 0
      %630 = vmatpush2.bf16.msra.mxu0 %v575
      %631 = vmatprep.mubr.bf16.mxu0 %v440
      %632 = vmatmul.mubr.bf16.gmra.mxu0 %v439
      %v633 = vpop.f32.mrf.mxu0
      %v634 = vadd.f32 0.0, %v633
      %v635 = vpop.f32.mrf.mxu0
      %v636 = vpop.f32.mrf.mxu0
      %v637 = vadd.f32 0.0, %v636
      %v638 = vpop.f32.mrf.mxu0
      %639 = vmatprep.mubr.bf16.mxu0 %v442
      %640 = vmatmul.mubr.bf16.gmra.mxu0 %v441
      %v641 = vpop.f32.mrf.mxu0
      %v642 = vadd.f32 0.0, %v641
      %v643 = vpop.f32.mrf.mxu0
      %v644 = vpop.f32.mrf.mxu0
      %v645 = vadd.f32 0.0, %v644
      %v646 = vpop.f32.mrf.mxu0
      %647 = vmatprep.mubr.bf16.mxu0 %v444
      %648 = vmatmul.mubr.bf16.gmra.mxu0 %v443
      %v649 = vpop.f32.mrf.mxu0
      %v650 = vadd.f32 0.0, %v649
      %v651 = vpop.f32.mrf.mxu0
      %v652 = vpop.f32.mrf.mxu0
      %v653 = vadd.f32 0.0, %v652
      %v654 = vpop.f32.mrf.mxu0
      %655 = vmatprep.mubr.bf16.mxu0 %v446
      %656 = vmatmul.mubr.bf16.gmra.mxu0 %v445
      %v657 = vpop.f32.mrf.mxu0
      %v658 = vadd.f32 0.0, %v657
      %v659 = vpop.f32.mrf.mxu0
      %v660 = vpop.f32.mrf.mxu0
      %v661 = vadd.f32 0.0, %v660
      %v662 = vpop.f32.mrf.mxu0
      %663 = vmatprep.mubr.bf16.mxu0 %v448
      %664 = vmatmul.mubr.bf16.gmra.mxu0 %v447
      %v665 = vpop.f32.mrf.mxu0
      %v666 = vadd.f32 0.0, %v665
      %v667 = vpop.f32.mrf.mxu0
      %v668 = vpop.f32.mrf.mxu0
      %v669 = vadd.f32 0.0, %v668
      %v670 = vpop.f32.mrf.mxu0
      %671 = vmatprep.mubr.bf16.mxu0 %v450
      %672 = vmatmul.mubr.bf16.gmra.mxu0 %v449
      %v673 = vpop.f32.mrf.mxu0
      %v674 = vadd.f32 0.0, %v673
      %v675 = vpop.f32.mrf.mxu0
      %v676 = vpop.f32.mrf.mxu0
      %v677 = vadd.f32 0.0, %v676
      %v678 = vpop.f32.mrf.mxu0
      %679 = vmatprep.mubr.bf16.mxu0 %v452
      %680 = vmatmul.mubr.bf16.gmra.mxu0 %v451
      %v681 = vpop.f32.mrf.mxu0
      %v682 = vadd.f32 0.0, %v681
      %v683 = vpop.f32.mrf.mxu0
      %v684 = vpop.f32.mrf.mxu0
      %v685 = vadd.f32 0.0, %v684
      %v686 = vpop.f32.mrf.mxu0
      %687 = vmatprep.mubr.bf16.mxu0 %v454
      %688 = vmatmul.mubr.bf16.gmra.mxu0 %v453
      %v689 = vpop.f32.mrf.mxu0
      %v690 = vadd.f32 0.0, %v689
      %v691 = vpop.f32.mrf.mxu0
      %v692 = vpop.f32.mrf.mxu0
      %v693 = vadd.f32 0.0, %v692
      %v694 = vpop.f32.mrf.mxu0
      %695 = vmatprep.mubr.bf16.mxu0 %v456
      %696 = vmatmul.mubr.bf16.gmra.mxu0 %v455
      %v697 = vpop.f32.mrf.mxu0
      %v698 = vadd.f32 0.0, %v697
      %v699 = vpop.f32.mrf.mxu0
      %v700 = vpop.f32.mrf.mxu0
      %v701 = vadd.f32 0.0, %v700
      %v702 = vpop.f32.mrf.mxu0
      %703 = vmatprep.mubr.bf16.mxu0 %v458
      %704 = vmatmul.mubr.bf16.gmra.mxu0 %v457
      %v705 = vpop.f32.mrf.mxu0
      %v706 = vadd.f32 0.0, %v705
      %v707 = vpop.f32.mrf.mxu0
      %v708 = vpop.f32.mrf.mxu0
      %v709 = vadd.f32 0.0, %v708
      %v710 = vpop.f32.mrf.mxu0
      %711 = vmatprep.mubr.bf16.mxu0 %v460
      %712 = vmatmul.mubr.bf16.gmra.mxu0 %v459
      %v713 = vpop.f32.mrf.mxu0
      %v714 = vadd.f32 0.0, %v713
      %v715 = vpop.f32.mrf.mxu0
      %v716 = vpop.f32.mrf.mxu0
      %v717 = vadd.f32 0.0, %v716
      %v718 = vpop.f32.mrf.mxu0
      %719 = vmatprep.mubr.bf16.mxu0 %v462
      %720 = vmatmul.mubr.bf16.gmra.mxu0 %v461
      %v721 = vpop.f32.mrf.mxu0
      %v722 = vadd.f32 0.0, %v721
      %v723 = vpop.f32.mrf.mxu0
      %v724 = vpop.f32.mrf.mxu0
      %v725 = vadd.f32 0.0, %v724
      %v726 = vpop.f32.mrf.mxu0
      %727 = vmatprep.mubr.bf16.mxu0 %v464
      %728 = vmatmul.mubr.bf16.gmra.mxu0 %v463
      %v729 = vpop.f32.mrf.mxu0
      %v730 = vadd.f32 0.0, %v729
      %v731 = vpop.f32.mrf.mxu0
      %v732 = vpop.f32.mrf.mxu0
      %v733 = vadd.f32 0.0, %v732
      %v734 = vpop.f32.mrf.mxu0
      %735 = vmatprep.mubr.bf16.mxu0 %v466
      %736 = vmatmul.mubr.bf16.gmra.mxu0 %v465
      %v737 = vpop.f32.mrf.mxu0
      %v738 = vadd.f32 0.0, %v737
      %v739 = vpop.f32.mrf.mxu0
      %v740 = vpop.f32.mrf.mxu0
      %v741 = vadd.f32 0.0, %v740
      %v742 = vpop.f32.mrf.mxu0
      %743 = vmatprep.mubr.bf16.mxu0 %v468
      %744 = vmatmul.mubr.bf16.gmra.mxu0 %v467
      %v745 = vpop.f32.mrf.mxu0
      %v746 = vadd.f32 0.0, %v745
      %v747 = vpop.f32.mrf.mxu0
      %v748 = vpop.f32.mrf.mxu0
      %v749 = vadd.f32 0.0, %v748
      %v750 = vpop.f32.mrf.mxu0
      %751 = vmatprep.mubr.bf16.mxu0 %v470
      %752 = vmatmul.mubr.bf16.gmra.mxu0 %v469
      %v753 = vpop.f32.mrf.mxu0
      %v754 = vadd.f32 0.0, %v753
      %v755 = vpop.f32.mrf.mxu0
      %v756 = vpop.f32.mrf.mxu0
      %v757 = vadd.f32 0.0, %v756
      %v758 = vpop.f32.mrf.mxu0
      %759 = vdwg.mxu0
      %v760 = vpack.c.bf16 %v637, %v634
      %v761 = vpack.c.bf16 %v645, %v642
      %v762 = vpack.c.bf16 %v653, %v650
      %v763 = vpack.c.bf16 %v661, %v658
      %v764 = vpack.c.bf16 %v669, %v666
      %v765 = vpack.c.bf16 %v677, %v674
      %v766 = vpack.c.bf16 %v685, %v682
      %v767 = vpack.c.bf16 %v693, %v690
      %v768 = vpack.c.bf16 %v701, %v698
      %v769 = vpack.c.bf16 %v709, %v706
      %v770 = vpack.c.bf16 %v717, %v714
      %v771 = vpack.c.bf16 %v725, %v722
      %v772 = vpack.c.bf16 %v733, %v730
      %v773 = vpack.c.bf16 %v741, %v738
      %v774 = vpack.c.bf16 %v749, %v746
      %v775 = vpack.c.bf16 %v757, %v754
      %v792 = vunpack.c.l.b16 %v760
      %v793 = vunpack.c.h.b16 %v760
      %v794 = vunpack.c.l.b16 %v761
      %v795 = vunpack.c.h.b16 %v761
      %v796 = vunpack.c.l.b16 %v762
      %v797 = vunpack.c.h.b16 %v762
      %v798 = vunpack.c.l.b16 %v763
      %v799 = vunpack.c.h.b16 %v763
      %v800 = vunpack.c.l.b16 %v764
      %v801 = vunpack.c.h.b16 %v764
      %v802 = vunpack.c.l.b16 %v765
      %v803 = vunpack.c.h.b16 %v765
      %v804 = vunpack.c.l.b16 %v766
      %v805 = vunpack.c.h.b16 %v766
      %v806 = vunpack.c.l.b16 %v767
      %v807 = vunpack.c.h.b16 %v767
      %v808 = vunpack.c.l.b16 %v768
      %v809 = vunpack.c.h.b16 %v768
      %v810 = vunpack.c.l.b16 %v769
      %v811 = vunpack.c.h.b16 %v769
      %v812 = vunpack.c.l.b16 %v770
      %v813 = vunpack.c.h.b16 %v770
      %v814 = vunpack.c.l.b16 %v771
      %v815 = vunpack.c.h.b16 %v771
      %v816 = vunpack.c.l.b16 %v772
      %v817 = vunpack.c.h.b16 %v772
      %v818 = vunpack.c.l.b16 %v773
      %v819 = vunpack.c.h.b16 %v773
      %v820 = vunpack.c.l.b16 %v774
      %v821 = vunpack.c.h.b16 %v774
      %v822 = vunpack.c.l.b16 %v775
      %v823 = vunpack.c.h.b16 %v775
      %v824 = vpack.c.b16 %v792, %v792
      %v825 = vpack.c.b16 %v793, %v793
      %v826 = vpack.c.b16 %v794, %v794
      %v827 = vpack.c.b16 %v795, %v795
      %v828 = vpack.c.b16 %v796, %v796
      %v829 = vpack.c.b16 %v797, %v797
      %v830 = vpack.c.b16 %v798, %v798
      %v831 = vpack.c.b16 %v799, %v799
      %v832 = vpack.c.b16 %v800, %v800
      %v833 = vpack.c.b16 %v801, %v801
      %v834 = vpack.c.b16 %v802, %v802
      %v835 = vpack.c.b16 %v803, %v803
      %v836 = vpack.c.b16 %v804, %v804
      %v837 = vpack.c.b16 %v805, %v805
      %v838 = vpack.c.b16 %v806, %v806
      %v839 = vpack.c.b16 %v807, %v807
      %v840 = vpack.c.b16 %v808, %v808
      %v841 = vpack.c.b16 %v809, %v809
      %v842 = vpack.c.b16 %v810, %v810
      %v843 = vpack.c.b16 %v811, %v811
      %v844 = vpack.c.b16 %v812, %v812
      %v845 = vpack.c.b16 %v813, %v813
      %v846 = vpack.c.b16 %v814, %v814
      %v847 = vpack.c.b16 %v815, %v815
      %v848 = vpack.c.b16 %v816, %v816
      %v849 = vpack.c.b16 %v817, %v817
      %v850 = vpack.c.b16 %v818, %v818
      %v851 = vpack.c.b16 %v819, %v819
      %v852 = vpack.c.b16 %v820, %v820
      %v853 = vpack.c.b16 %v821, %v821
      %v854 = vpack.c.b16 %v822, %v822
      %v855 = vpack.c.b16 %v823, %v823
      %888 = vst [vmem:[%s262] sm:$0xf] %v824
      %889 = vst [vmem:[%s262 + $0x4] sm:$0xf] %v825
      %890 = vst [vmem:[%s262 + $0x8] sm:$0xf] %v826
      %891 = vst [vmem:[%s262 + $0xc] sm:$0xf] %v827
      %892 = vst [vmem:[%s262 + $0x10] sm:$0xf] %v828
      %893 = vst [vmem:[%s262 + $0x14] sm:$0xf] %v829
      %894 = vst [vmem:[%s262 + $0x18] sm:$0xf] %v830
      %895 = vst [vmem:[%s262 + $0x1c] sm:$0xf] %v831
      %896 = vst [vmem:[%s262 + $0x20] sm:$0xf] %v832
      %897 = vst [vmem:[%s262 + $0x24] sm:$0xf] %v833
      %898 = vst [vmem:[%s262 + $0x28] sm:$0xf] %v834
      %899 = vst [vmem:[%s262 + $0x2c] sm:$0xf] %v835
      %900 = vst [vmem:[%s262 + $0x30] sm:$0xf] %v836
      %901 = vst [vmem:[%s262 + $0x34] sm:$0xf] %v837
      %902 = vst [vmem:[%s262 + $0x38] sm:$0xf] %v838
      %903 = vst [vmem:[%s262 + $0x3c] sm:$0xf] %v839
      %904 = vst [vmem:[%s262 + $0x40] sm:$0xf] %v840
      %905 = vst [vmem:[%s262 + $0x44] sm:$0xf] %v841
      %906 = vst [vmem:[%s262 + $0x48] sm:$0xf] %v842
      %907 = vst [vmem:[%s262 + $0x4c] sm:$0xf] %v843
      %908 = vst [vmem:[%s262 + $0x50] sm:$0xf] %v844
      %909 = vst [vmem:[%s262 + $0x54] sm:$0xf] %v845
      %910 = vst [vmem:[%s262 + $0x58] sm:$0xf] %v846
      %911 = vst [vmem:[%s262 + $0x5c] sm:$0xf] %v847
      %912 = vst [vmem:[%s262 + $0x60] sm:$0xf] %v848
      %913 = vst [vmem:[%s262 + $0x64] sm:$0xf] %v849
      %914 = vst [vmem:[%s262 + $0x68] sm:$0xf] %v850
      %915 = vst [vmem:[%s262 + $0x6c] sm:$0xf] %v851
      %916 = vst [vmem:[%s262 + $0x70] sm:$0xf] %v852
      %917 = vst [vmem:[%s262 + $0x74] sm:$0xf] %v853
      %918 = vst [vmem:[%s262 + $0x78] sm:$0xf] %v854
      %919 = vst [vmem:[%s262 + $0x7c] sm:$0xf] %v855
      %v920 = vadd.f32 %v634, %v637
      %v921 = vadd.f32 %v920, %v642
      %v922 = vadd.f32 %v921, %v645
      %v923 = vadd.f32 %v922, %v650
      %v924 = vadd.f32 %v923, %v653
      %v925 = vadd.f32 %v924, %v658
      %v926 = vadd.f32 %v925, %v661
      %v927 = vadd.f32 %v926, %v666
      %v928 = vadd.f32 %v927, %v669
      %v929 = vadd.f32 %v928, %v674
      %v930 = vadd.f32 %v929, %v677
      %v931 = vadd.f32 %v930, %v682
      %v932 = vadd.f32 %v931, %v685
      %v933 = vadd.f32 %v932, %v690
      %v934 = vadd.f32 %v933, %v693
      %v935 = vadd.f32 %v934, %v698
      %v936 = vadd.f32 %v935, %v701
      %v937 = vadd.f32 %v936, %v706
      %v938 = vadd.f32 %v937, %v709
      %v939 = vadd.f32 %v938, %v714
      %v940 = vadd.f32 %v939, %v717
      %v941 = vadd.f32 %v940, %v722
      %v942 = vadd.f32 %v941, %v725
      %v943 = vadd.f32 %v942, %v730
      %v944 = vadd.f32 %v943, %v733
      %v945 = vadd.f32 %v944, %v738
      %v946 = vadd.f32 %v945, %v741
      %v947 = vadd.f32 %v946, %v746
      %v948 = vadd.f32 %v947, %v749
      %v949 = vadd.f32 %v948, %v754
      %v950 = vadd.f32 %v949, %v757
      %v951 = vrot.slane %v950, 4
      %v952 = vadd.f32 %v950, %v951
      %v953 = vrot.slane %v952, 2
      %v954 = vadd.f32 %v952, %v953
      %v955 = vrot.slane %v954, 1
      %v956 = vadd.f32 %v954, %v955
      %v957 = vmul.f32 %v634, %v634
      %v958 = vmul.f32 %v637, %v637
      %v959 = vmul.f32 %v642, %v642
      %v960 = vmul.f32 %v645, %v645
      %v961 = vmul.f32 %v650, %v650
      %v962 = vmul.f32 %v653, %v653
      %v963 = vmul.f32 %v658, %v658
      %v964 = vmul.f32 %v661, %v661
      %v965 = vmul.f32 %v666, %v666
      %v966 = vmul.f32 %v669, %v669
      %v967 = vmul.f32 %v674, %v674
      %v968 = vmul.f32 %v677, %v677
      %v969 = vmul.f32 %v682, %v682
      %v970 = vmul.f32 %v685, %v685
      %v971 = vmul.f32 %v690, %v690
      %v972 = vmul.f32 %v693, %v693
      %v973 = vmul.f32 %v698, %v698
      %v974 = vmul.f32 %v701, %v701
      %v975 = vmul.f32 %v706, %v706
      %v976 = vmul.f32 %v709, %v709
      %v977 = vmul.f32 %v714, %v714
      %v978 = vmul.f32 %v717, %v717
      %v979 = vmul.f32 %v722, %v722
      %v980 = vmul.f32 %v725, %v725
      %v981 = vmul.f32 %v730, %v730
      %v982 = vmul.f32 %v733, %v733
      %v983 = vmul.f32 %v738, %v738
      %v984 = vmul.f32 %v741, %v741
      %v985 = vmul.f32 %v746, %v746
      %v986 = vmul.f32 %v749, %v749
      %v987 = vmul.f32 %v754, %v754
      %v988 = vmul.f32 %v757, %v757
      %v989 = vadd.f32 %v957, %v958
      %v990 = vadd.f32 %v989, %v959
      %v991 = vadd.f32 %v990, %v960
      %v992 = vadd.f32 %v991, %v961
      %v993 = vadd.f32 %v992, %v962
      %v994 = vadd.f32 %v993, %v963
      %v995 = vadd.f32 %v994, %v964
      %v996 = vadd.f32 %v995, %v965
      %v997 = vadd.f32 %v996, %v966
      %v998 = vadd.f32 %v997, %v967
      %v999 = vadd.f32 %v998, %v968
      %v1000 = vadd.f32 %v999, %v969
      %v1001 = vadd.f32 %v1000, %v970
      %v1002 = vadd.f32 %v1001, %v971
      %v1003 = vadd.f32 %v1002, %v972
      %v1004 = vadd.f32 %v1003, %v973
      %v1005 = vadd.f32 %v1004, %v974
      %v1006 = vadd.f32 %v1005, %v975
      %v1007 = vadd.f32 %v1006, %v976
      %v1008 = vadd.f32 %v1007, %v977
      %v1009 = vadd.f32 %v1008, %v978
      %v1010 = vadd.f32 %v1009, %v979
      %v1011 = vadd.f32 %v1010, %v980
      %v1012 = vadd.f32 %v1011, %v981
      %v1013 = vadd.f32 %v1012, %v982
      %v1014 = vadd.f32 %v1013, %v983
      %v1015 = vadd.f32 %v1014, %v984
      %v1016 = vadd.f32 %v1015, %v985
      %v1017 = vadd.f32 %v1016, %v986
      %v1018 = vadd.f32 %v1017, %v987
      %v1019 = vadd.f32 %v1018, %v988
      %v1020 = vrot.slane %v1019, 4
      %v1021 = vadd.f32 %v1019, %v1020
      %v1022 = vrot.slane %v1021, 2
      %v1023 = vadd.f32 %v1021, %v1022
      %v1024 = vrot.slane %v1023, 1
      %v1025 = vadd.f32 %v1023, %v1024
      %v1026 = vlaneseq
      %v1027 = vshrl.u32 %v1026, 7
      %vm1028 = vcmp.eq.s32.totalorder %v1027, 0
      %v1029 = vsel %vm1028, %v956, 0.0
      %1030 = vst [vmem:[%s270] sm:$0xff] %v1029
      %v1031 = vsel %vm1028, %v1025, 0.0
      %1032 = vst [vmem:[%s277] sm:$0xff] %v1031
      %s1033 = smul.u32 32, %s21
      %p1034 = scmp.lt.s32.totalorder %s1033, 63
      %s1035 = scalar_select %p1034, %s1033, 63
      %p1036 = scmp.lt.s32.totalorder %s20, 0
      %s1037 = scalar_select %p1036, %s20, 0
      %s1038 = sadd.s32 %s1037, %s1035
      %s1039 = smul.addr %s1038, 4
      %s1040 = scalar_lea.vmem %s2, %s1039
      %p1041 = scmp.lt.s32.totalorder %s21, 1
      %s1042 = scalar_select %p1041, %s21, 1
      %p1043 = scmp.lt.s32.totalorder %s20, 0
      %s1044 = scalar_select %p1043, %s20, 0
      %s1045 = sadd.s32 %s1044, %s1042
      %s1046 = smul.addr %s1045, 8
      %s1047 = scalar_lea.vmem %s3, %s1046
      %p1048 = scmp.lt.s32.totalorder %s21, 1
      %s1049 = scalar_select %p1048, %s21, 1
      %p1050 = scmp.lt.s32.totalorder %s20, 0
      %s1051 = scalar_select %p1050, %s20, 0
      %s1052 = sadd.s32 %s1051, %s1049
      %s1053 = smul.addr %s1052, 8
      %s1054 = scalar_lea.vmem %s4, %s1053
      // Predicated region
      $region29: #{conv_gener_p_forward.11} parent=27 // pred_check
        %p1055 = pneg %p100
      $region30: #{conv_gener_p_forward.11} parent=27 // pred_check_branch
        %1057 = sbr.rel (%p1055) target = $region32
      $region31: #{conv_gener_p_forward.11} parent=27 // pred_region
        %s1058 = smul.u32 32, %s21
      $region32: #{conv_gener_p_forward.11} parent=27 // pred_fallthru
        _
      // Predicated region
      $region33: #{conv_gener_p_forward.11} parent=27 // pred_check
        %p1059 = pneg %p128
      $region34: #{conv_gener_p_forward.11} parent=27 // pred_check_branch
        %1061 = sbr.rel (%p1059) target = $region36
      $region35: #{conv_gener_p_forward.11} parent=27 // pred_region
        _
      $region36: #{conv_gener_p_forward.11} parent=27 // pred_fallthru
        _
      // Predicated region
      $region37: #{conv_gener_p_forward.11} parent=27 // pred_check
        %p1062 = pneg %p156
      $region38: #{conv_gener_p_forward.11} parent=27 // pred_check_branch
        %1064 = sbr.rel (%p1062) target = $region40
      $region39: #{conv_gener_p_forward.11} parent=27 // pred_region
        _
      $region40: #{conv_gener_p_forward.11} parent=27 // pred_fallthru
        _
    $region28: #{conv_gener_p_forward.11} parent=5 // pred_fallthru
      _
    %p1065 = scmp.le.s32.totalorder 2, %s11
    // Predicated region
    $region41: #{conv_gener_p_forward.11} parent=5 // pred_check
      %p1066 = pneg %p1065
    $region42: #{conv_gener_p_forward.11} parent=5 // pred_check_branch
      %1068 = sbr.rel (%p1066) target = $region44
    $region43: #{conv_gener_p_forward.11} parent=5 // pred_region
      %s1069 = ssub.s32 %s11, 2
      // Predicated region
      $region45: #{conv_gener_p_forward.11} parent=43 // pred_check
        %p1070 = pneg %p106
      $region46: #{conv_gener_p_forward.11} parent=43 // pred_check_branch
        %1072 = sbr.rel (%p1070) target = $region48
      $region47: #{conv_gener_p_forward.11} parent=43 // pred_region
        %s1073 = smul.u32 32, %s23
        %p1074 = scmp.lt.s32.totalorder %s1073, 63
        %s1075 = scalar_select %p1074, %s1073, 63
        %p1076 = scmp.lt.s32.totalorder %s22, 0
        %s1077 = scalar_select %p1076, %s22, 0
        %s1078 = sadd.s32 %s1077, %s1075
        %s1079 = smul.addr %s1078, 4
        %s1080 = scalar_lea.vmem %s2, %s1079
      $region48: #{conv_gener_p_forward.11} parent=43 // pred_fallthru
        _
      // Predicated region
      $region49: #{conv_gener_p_forward.11} parent=43 // pred_check
        %p1081 = pneg %p134
      $region50: #{conv_gener_p_forward.11} parent=43 // pred_check_branch
        %1083 = sbr.rel (%p1081) target = $region52
      $region51: #{conv_gener_p_forward.11} parent=43 // pred_region
        %p1084 = scmp.lt.s32.totalorder %s23, 1
        %s1085 = scalar_select %p1084, %s23, 1
        %p1086 = scmp.lt.s32.totalorder %s22, 0
        %s1087 = scalar_select %p1086, %s22, 0
        %s1088 = sadd.s32 %s1087, %s1085
        %s1089 = smul.addr %s1088, 8
        %s1090 = scalar_lea.vmem %s3, %s1089
      $region52: #{conv_gener_p_forward.11} parent=43 // pred_fallthru
        _
      // Predicated region
      $region53: #{conv_gener_p_forward.11} parent=43 // pred_check
        %p1091 = pneg %p162
      $region54: #{conv_gener_p_forward.11} parent=43 // pred_check_branch
        %1093 = sbr.rel (%p1091) target = $region56
      $region55: #{conv_gener_p_forward.11} parent=43 // pred_region
        %p1094 = scmp.lt.s32.totalorder %s23, 1
        %s1095 = scalar_select %p1094, %s23, 1
        %p1096 = scmp.lt.s32.totalorder %s22, 0
        %s1097 = scalar_select %p1096, %s22, 0
        %s1098 = sadd.s32 %s1097, %s1095
        %s1099 = smul.addr %s1098, 8
        %s1100 = scalar_lea.vmem %s4, %s1099
      $region56: #{conv_gener_p_forward.11} parent=43 // pred_fallthru
        _
    $region44: #{conv_gener_p_forward.11} parent=5 // pred_fallthru
      _
  $region6: #{conv_gener_p_forward.11} parent=0 // loop_footer
    %s15 = sadd.s32 1, %s11
  $region7: #{conv_gener_p_forward.11} parent=0 // loop_footer_branch
    %10 = sbr.rel target = $region3
  $region8: #{conv_gener_p_forward.11} parent=0 // loop_exit
    _

// kernel: conv_gener_p_forward.13
$region0: #{conv_gener_p_forward.13}
  #allocation0 [shape = 'u32[]', space=smem, size = 0x4, offset = 0x4, fixed_abs, tag = 'smem constant byte address 0x4 - core index']
  #allocation1 [shape = 'u32[144,128]{1,0:T(1,128)}', space=vmem, size = 0x12000, scoped, tag = 'internal scratch']
  %s0 = inlined_call_operand.vmem [shape: bf16[2048,128], index: 0, kind: input, shape index: {}]
  %s1 = inlined_call_operand.vmem [shape: bf16[128,128], index: 1, kind: input, shape index: {}]
  %s2 = inlined_call_operand.vmem [shape: f32[1,128], index: 2, kind: input, shape index: {}]
  %s3 = inlined_call_operand.vmem [shape: f32[2048,128], index: 3, kind: output, shape index: {}]
  %s4 = sld [smem:[#allocation0]]
  $region45: #{conv_gener_p_forward.13} parent=0
    _
  %s6 = ssub.s32 1, %s4
  %s7 = scalar_select 0, %s6, %s4
  loop: start=0, step=1, limit=10
  $region2: #{conv_gener_p_forward.13} parent=0 // loop_pre_header
    _
  $region3: #{conv_gener_p_forward.13} parent=0 // loop_header
    %s9 = sphi 0, %s13
    %p10 = scmp.ge.s32.totalorder %s9, 10
    %s16 = sphi 0, %s28
    %s17 = sphi 0, %s24
    %s18 = sphi 0, %s16
    %s19 = sphi 0, %s17
    %s20 = sphi 0, %s18
    %s21 = sphi 0, %s19
    %s31 = sphi 0, %s33
    %s34 = sphi 0, %s31
    %s35 = sphi 0, %s34
    %s51 = sphi 0, %s35
    %s57 = sphi 0, %s59
    %s60 = sphi 0, %s57
    %s61 = sphi 0, %s60
    %s77 = sphi 0, %s61
    %s83 = sphi 0, %s85
    %s86 = sphi 0, %s83
    %s87 = sphi 0, %s86
    %s103 = sphi 0, %s87
    %s111 = sphi 0, %s113
    %s114 = sphi 0, %s111
    %s115 = sphi 0, %s114
    %s131 = sphi 0, %s115
  $region4: #{conv_gener_p_forward.13} parent=0 // loop_header_branch
    %12 = sbr.rel (%p10) target = $region8
  $region5: #{conv_gener_p_forward.13} parent=0 // loop_body
    %s14 = ssub.s32 %s9, 1
    %s15 = ssub.s32 %s9, 2
    %s22 = sadd.s32 1, %s17
    %p23 = scmp.ge.s32.totalorder %s22, 8
    %s24 = scalar_select %p23, 0, %s22
    %s25 = sadd.s32 1, %s16
    %s26 = scalar_select %p23, %s25, %s16
    %p27 = scmp.ge.s32.totalorder %s26, 1
    %s28 = scalar_select %p27, 0, %s26
    %s29 = ssub.s32 %s17, %s24
    %p30 = scmp.eq.s32.totalorder %s29, 0
    %s32 = sadd.s32 %s31, 1
    %s33 = scalar_select %p30, %s31, %s32
    %p36 = pneg %p30
    %p37 = scmp.eq.s32.totalorder %s9, 7
    %p38 = por %p36, %p37
    %p39 = scmp.ne.s32.totalorder %s31, %s34
    %p40 = scmp.eq.s32.totalorder %s9, 0
    %p41 = por %p39, %p40
    %p42 = scmp.ne.s32.totalorder %s31, %s34
    %p43 = scmp.eq.s32.totalorder %s14, 7
    %p44 = por %p42, %p43
    %p45 = scmp.ne.s32.totalorder %s34, %s35
    %p46 = scmp.eq.s32.totalorder %s14, 0
    %p47 = por %p45, %p46
    %p48 = scmp.ne.s32.totalorder %s34, %s35
    %p49 = scmp.eq.s32.totalorder %s15, 7
    %p50 = por %p48, %p49
    %p52 = scmp.ne.s32.totalorder %s35, %s51
    %p53 = scmp.eq.s32.totalorder %s15, 0
    %p54 = por %p52, %p53
    %s55 = ssub.s32 %s16, %s28
    %p56 = scmp.eq.s32.totalorder %s55, 0
    %s58 = sadd.s32 %s57, 1
    %s59 = scalar_select %p56, %s57, %s58
    %p62 = pneg %p56
    %p63 = scmp.eq.s32.totalorder %s9, 7
    %p64 = por %p62, %p63
    %p65 = scmp.ne.s32.totalorder %s57, %s60
    %p66 = scmp.eq.s32.totalorder %s9, 0
    %p67 = por %p65, %p66
    %p68 = scmp.ne.s32.totalorder %s57, %s60
    %p69 = scmp.eq.s32.totalorder %s14, 7
    %p70 = por %p68, %p69
    %p71 = scmp.ne.s32.totalorder %s60, %s61
    %p72 = scmp.eq.s32.totalorder %s14, 0
    %p73 = por %p71, %p72
    %p74 = scmp.ne.s32.totalorder %s60, %s61
    %p75 = scmp.eq.s32.totalorder %s15, 7
    %p76 = por %p74, %p75
    %p78 = scmp.ne.s32.totalorder %s61, %s77
    %p79 = scmp.eq.s32.totalorder %s15, 0
    %p80 = por %p78, %p79
    %s81 = ssub.s32 %s16, %s28
    %p82 = scmp.eq.s32.totalorder %s81, 0
    %s84 = sadd.s32 %s83, 1
    %s85 = scalar_select %p82, %s83, %s84
    %p88 = pneg %p82
    %p89 = scmp.eq.s32.totalorder %s9, 7
    %p90 = por %p88, %p89
    %p91 = scmp.ne.s32.totalorder %s83, %s86
    %p92 = scmp.eq.s32.totalorder %s9, 0
    %p93 = por %p91, %p92
    %p94 = scmp.ne.s32.totalorder %s83, %s86
    %p95 = scmp.eq.s32.totalorder %s14, 7
    %p96 = por %p94, %p95
    %p97 = scmp.ne.s32.totalorder %s86, %s87
    %p98 = scmp.eq.s32.totalorder %s14, 0
    %p99 = por %p97, %p98
    %p100 = scmp.ne.s32.totalorder %s86, %s87
    %p101 = scmp.eq.s32.totalorder %s15, 7
    %p102 = por %p100, %p101
    %p104 = scmp.ne.s32.totalorder %s87, %s103
    %p105 = scmp.eq.s32.totalorder %s15, 0
    %p106 = por %p104, %p105
    %s107 = ssub.s32 %s17, %s24
    %s108 = ssub.s32 %s16, %s28
    %s109 = sor.u32 %s107, %s108
    %p110 = scmp.eq.s32.totalorder %s109, 0
    %s112 = sadd.s32 %s111, 1
    %s113 = scalar_select %p110, %s111, %s112
    %p116 = pneg %p110
    %p117 = scmp.eq.s32.totalorder %s9, 7
    %p118 = por %p116, %p117
    %p119 = scmp.ne.s32.totalorder %s111, %s114
    %p120 = scmp.eq.s32.totalorder %s9, 0
    %p121 = por %p119, %p120
    %p122 = scmp.ne.s32.totalorder %s111, %s114
    %p123 = scmp.eq.s32.totalorder %s14, 7
    %p124 = por %p122, %p123
    %p125 = scmp.ne.s32.totalorder %s114, %s115
    %p126 = scmp.eq.s32.totalorder %s14, 0
    %p127 = por %p125, %p126
    %p128 = scmp.ne.s32.totalorder %s114, %s115
    %p129 = scmp.eq.s32.totalorder %s15, 7
    %p130 = por %p128, %p129
    %p132 = scmp.ne.s32.totalorder %s115, %s131
    %p133 = scmp.eq.s32.totalorder %s15, 0
    %p134 = por %p132, %p133
    %p135 = scmp.le.s32.totalorder 1, %s9
    %p136 = scmp.lt.s32.totalorder %s9, 9
    %p137 = pnand %p135, %p136
    %p138 = pneg %p137
    // Predicated region
    $region9: #{conv_gener_p_forward.13} parent=5 // pred_check
      _
    $region10: #{conv_gener_p_forward.13} parent=5 // pred_check_branch
      %140 = sbr.rel (%p137) target = $region12
    $region11: #{conv_gener_p_forward.13} parent=5 // pred_region
      %s141 = ssub.s32 %s9, 1
      // Predicated region
      $region13: #{conv_gener_p_forward.13} parent=11 // pred_check
        %p142 = pneg %p73
      $region14: #{conv_gener_p_forward.13} parent=11 // pred_check_branch
        %144 = sbr.rel (%p142) target = $region16
      $region15: #{conv_gener_p_forward.13} parent=11 // pred_region
        %p145 = scmp.lt.s32.totalorder %s18, 0
        %s146 = scalar_select %p145, %s18, 0
        %s147 = smul.addr %s146, 4
        %s148 = scalar_lea.vmem %s1, %s147
      $region16: #{conv_gener_p_forward.13} parent=11 // pred_fallthru
        _
      // Predicated region
      $region17: #{conv_gener_p_forward.13} parent=11 // pred_check
        %p149 = pneg %p99
      $region18: #{conv_gener_p_forward.13} parent=11 // pred_check_branch
        %151 = sbr.rel (%p149) target = $region20
      $region19: #{conv_gener_p_forward.13} parent=11 // pred_region
        %p152 = scmp.lt.s32.totalorder %s18, 0
        %s153 = scalar_select %p152, %s18, 0
        %s154 = scalar_lea.vmem %s2, %s153
      $region20: #{conv_gener_p_forward.13} parent=11 // pred_fallthru
        _
    $region12: #{conv_gener_p_forward.13} parent=5 // pred_fallthru
      _
    %p155 = scmp.lt.s32.totalorder %s9, 8
    // Predicated region
    $region21: #{conv_gener_p_forward.13} parent=5 // pred_check
      %p156 = pneg %p155
    $region22: #{conv_gener_p_forward.13} parent=5 // pred_check_branch
      %158 = sbr.rel (%p156) target = $region24
    $region23: #{conv_gener_p_forward.13} parent=5 // pred_region
      // Predicated region
      $region25: #{conv_gener_p_forward.13} parent=23 // pred_check
        %p159 = pneg %p41
      $region26: #{conv_gener_p_forward.13} parent=23 // pred_check_branch
        %161 = sbr.rel (%p159) target = $region28
      $region27: #{conv_gener_p_forward.13} parent=23 // pred_region
        %s162 = smul.u32 32, %s17
        %p163 = scmp.lt.s32.totalorder %s162, 255
        %s164 = scalar_select %p163, %s162, 255
        %s165 = smul.addr %s164, 4
        %s166 = scalar_lea.vmem %s0, %s165
        %s167 = smul.u32 32, %s17
      $region28: #{conv_gener_p_forward.13} parent=23 // pred_fallthru
        _
    $region24: #{conv_gener_p_forward.13} parent=5 // pred_fallthru
      _
    %p168 = scmp.le.s32.totalorder 1, %s9
    %p169 = scmp.lt.s32.totalorder %s9, 9
    %p170 = pnand %p168, %p169
    %p171 = pneg %p170
    // Predicated region
    $region29: #{conv_gener_p_forward.13} parent=5 // pred_check
      _
    $region30: #{conv_gener_p_forward.13} parent=5 // pred_check_branch
      %173 = sbr.rel (%p170) target = $region32
    $region31: #{conv_gener_p_forward.13} parent=5 // pred_region
      %s174 = ssub.s32 %s9, 1
      %s175 = smul.u32 32, %s19
      %p176 = scmp.lt.s32.totalorder %s175, 255
      %s177 = scalar_select %p176, %s175, 255
      %s178 = smul.addr %s177, 4
      %s179 = scalar_lea.vmem %s0, %s178
      %p180 = pneg %p47
      %p181 = pneg %p44
      %p182 = scmp.lt.s32.totalorder %s18, 0
      %s183 = scalar_select %p182, %s18, 0
      %s184 = smul.addr %s183, 4
      %s185 = scalar_lea.vmem %s1, %s184
      %p186 = pneg %p73
      %p187 = pneg %p70
      %p188 = scmp.lt.s32.totalorder %s18, 0
      %s189 = scalar_select %p188, %s18, 0
      %s190 = scalar_lea.vmem %s2, %s189
      %p191 = pneg %p99
      %p192 = pneg %p96
      %p193 = pneg %p127
      %p194 = pneg %p124
      %s195 = smul.u32 32, %s19
      %p196 = scmp.lt.s32.totalorder %s195, 255
      %s197 = scalar_select %p196, %s195, 255
      %p198 = scmp.lt.s32.totalorder %s18, 0
      %s199 = scalar_select %p198, %s18, 0
      %s200 = sadd.s32 %s199, %s197
      %s201 = smul.addr %s200, 8
      %s202 = scalar_lea.vmem %s3, %s201
      %s203 = smul.u32 32, %s19
      %p204 = scmp.lt.s32.totalorder %s203, 255
      %s205 = scalar_select %p204, %s203, 255
      %s206 = smul.addr %s205, 4
      %s207 = scalar_lea.vmem %s0, %s206
      %s208 = smul.u32 32, %s19
      %p209 = scmp.lt.s32.totalorder %s18, 0
      %s210 = scalar_select %p209, %s18, 0
      %s211 = smul.addr %s210, 4
      %s212 = scalar_lea.vmem %s1, %s211
      %p213 = scmp.lt.s32.totalorder %s18, 0
      %s214 = scalar_select %p213, %s18, 0
      %s215 = scalar_lea.vmem %s2, %s214
      %s216 = smul.u32 32, %s19
      %p217 = scmp.lt.s32.totalorder %s216, 255
      %s218 = scalar_select %p217, %s216, 255
      %p219 = scmp.lt.s32.totalorder %s18, 0
      %s220 = scalar_select %p219, %s18, 0
      %s221 = sadd.s32 %s220, %s218
      %s222 = smul.addr %s221, 8
      %s223 = scalar_lea.vmem %s3, %s222
      %s224 = smul.u32 32, %s19
      %v226 = vld [vmem:[%s207] sm:$0xf]
      %v227 = vld [vmem:[%s207 + $0x4] sm:$0xf]
      %v228 = vld [vmem:[%s207 + $0x8] sm:$0xf]
      %v229 = vld [vmem:[%s207 + $0xc] sm:$0xf]
      %v230 = vld [vmem:[%s207 + $0x10] sm:$0xf]
      %v231 = vld [vmem:[%s207 + $0x14] sm:$0xf]
      %v232 = vld [vmem:[%s207 + $0x18] sm:$0xf]
      %v233 = vld [vmem:[%s207 + $0x1c] sm:$0xf]
      %v234 = vld [vmem:[%s207 + $0x20] sm:$0xf]
      %v235 = vld [vmem:[%s207 + $0x24] sm:$0xf]
      %v236 = vld [vmem:[%s207 + $0x28] sm:$0xf]
      %v237 = vld [vmem:[%s207 + $0x2c] sm:$0xf]
      %v238 = vld [vmem:[%s207 + $0x30] sm:$0xf]
      %v239 = vld [vmem:[%s207 + $0x34] sm:$0xf]
      %v240 = vld [vmem:[%s207 + $0x38] sm:$0xf]
      %v241 = vld [vmem:[%s207 + $0x3c] sm:$0xf]
      %v242 = vld [vmem:[%s207 + $0x40] sm:$0xf]
      %v243 = vld [vmem:[%s207 + $0x44] sm:$0xf]
      %v244 = vld [vmem:[%s207 + $0x48] sm:$0xf]
      %v245 = vld [vmem:[%s207 + $0x4c] sm:$0xf]
      %v246 = vld [vmem:[%s207 + $0x50] sm:$0xf]
      %v247 = vld [vmem:[%s207 + $0x54] sm:$0xf]
      %v248 = vld [vmem:[%s207 + $0x58] sm:$0xf]
      %v249 = vld [vmem:[%s207 + $0x5c] sm:$0xf]
      %v250 = vld [vmem:[%s207 + $0x60] sm:$0xf]
      %v251 = vld [vmem:[%s207 + $0x64] sm:$0xf]
      %v252 = vld [vmem:[%s207 + $0x68] sm:$0xf]
      %v253 = vld [vmem:[%s207 + $0x6c] sm:$0xf]
      %v254 = vld [vmem:[%s207 + $0x70] sm:$0xf]
      %v255 = vld [vmem:[%s207 + $0x74] sm:$0xf]
      %v256 = vld [vmem:[%s207 + $0x78] sm:$0xf]
      %v257 = vld [vmem:[%s207 + $0x7c] sm:$0xf]
      %v258 = vld [vmem:[%s212] sm:$0xf]
      %v259 = vld [vmem:[%s212 + $0x4] sm:$0xf]
      %v260 = vld [vmem:[%s212 + $0x8] sm:$0xf]
      %v261 = vld [vmem:[%s212 + $0xc] sm:$0xf]
      %v262 = vld [vmem:[%s212 + $0x10] sm:$0xf]
      %v263 = vld [vmem:[%s212 + $0x14] sm:$0xf]
      %v264 = vld [vmem:[%s212 + $0x18] sm:$0xf]
      %v265 = vld [vmem:[%s212 + $0x1c] sm:$0xf]
      %v266 = vld [vmem:[%s212 + $0x20] sm:$0xf]
      %v267 = vld [vmem:[%s212 + $0x24] sm:$0xf]
      %v268 = vld [vmem:[%s212 + $0x28] sm:$0xf]
      %v269 = vld [vmem:[%s212 + $0x2c] sm:$0xf]
      %v270 = vld [vmem:[%s212 + $0x30] sm:$0xf]
      %v271 = vld [vmem:[%s212 + $0x34] sm:$0xf]
      %v272 = vld [vmem:[%s212 + $0x38] sm:$0xf]
      %v273 = vld [vmem:[%s212 + $0x3c] sm:$0xf]
      %v274 = vld [vmem:[%s215] sm:$0x1]
      %v276 = vlaneseq
      %v277 = vshrl.u32 %v276, 7
      %v278 = vsub.s32 0, %v277
      %v279 = vrot.slane %v274, %v278
      %v313 = vunpack.c.l.b16 %v226
      %v314 = vunpack.c.l.b16 %v227
      %v315 = vunpack.c.l.b16 %v228
      %v316 = vunpack.c.l.b16 %v229
      %v317 = vunpack.c.l.b16 %v230
      %v318 = vunpack.c.l.b16 %v231
      %v319 = vunpack.c.l.b16 %v232
      %v320 = vunpack.c.l.b16 %v233
      %v321 = vunpack.c.l.b16 %v234
      %v322 = vunpack.c.l.b16 %v235
      %v323 = vunpack.c.l.b16 %v236
      %v324 = vunpack.c.l.b16 %v237
      %v325 = vunpack.c.l.b16 %v238
      %v326 = vunpack.c.l.b16 %v239
      %v327 = vunpack.c.l.b16 %v240
      %v328 = vunpack.c.l.b16 %v241
      %v329 = vunpack.c.l.b16 %v242
      %v330 = vunpack.c.l.b16 %v243
      %v331 = vunpack.c.l.b16 %v244
      %v332 = vunpack.c.l.b16 %v245
      %v333 = vunpack.c.l.b16 %v246
      %v334 = vunpack.c.l.b16 %v247
      %v335 = vunpack.c.l.b16 %v248
      %v336 = vunpack.c.l.b16 %v249
      %v337 = vunpack.c.l.b16 %v250
      %v338 = vunpack.c.l.b16 %v251
      %v339 = vunpack.c.l.b16 %v252
      %v340 = vunpack.c.l.b16 %v253
      %v341 = vunpack.c.l.b16 %v254
      %v342 = vunpack.c.l.b16 %v255
      %v343 = vunpack.c.l.b16 %v256
      %v344 = vunpack.c.l.b16 %v257
      %v345 = vpack.c.b16 %v314, %v313
      %v346 = vpack.c.b16 %v316, %v315
      %v347 = vpack.c.b16 %v318, %v317
      %v348 = vpack.c.b16 %v320, %v319
      %v349 = vpack.c.b16 %v322, %v321
      %v350 = vpack.c.b16 %v324, %v323
      %v351 = vpack.c.b16 %v326, %v325
      %v352 = vpack.c.b16 %v328, %v327
      %v353 = vpack.c.b16 %v330, %v329
      %v354 = vpack.c.b16 %v332, %v331
      %v355 = vpack.c.b16 %v334, %v333
      %v356 = vpack.c.b16 %v336, %v335
      %v357 = vpack.c.b16 %v338, %v337
      %v358 = vpack.c.b16 %v340, %v339
      %v359 = vpack.c.b16 %v342, %v341
      %v360 = vpack.c.b16 %v344, %v343
      %v393 = vunpack.c.l.b16 %v258
      %v394 = vunpack.c.l.b16 %v259
      %v395 = vunpack.c.l.b16 %v260
      %v396 = vunpack.c.l.b16 %v261
      %v397 = vunpack.c.l.b16 %v262
      %v398 = vunpack.c.l.b16 %v263
      %v399 = vunpack.c.l.b16 %v264
      %v400 = vunpack.c.l.b16 %v265
      %v401 = vunpack.c.l.b16 %v266
      %v402 = vunpack.c.l.b16 %v267
      %v403 = vunpack.c.l.b16 %v268
      %v404 = vunpack.c.l.b16 %v269
      %v405 = vunpack.c.l.b16 %v270
      %v406 = vunpack.c.l.b16 %v271
      %v407 = vunpack.c.l.b16 %v272
      %v408 = vunpack.c.l.b16 %v273
      %v409 = vpack.c.b16 %v394, %v393
      %v410 = vpack.c.b16 %v396, %v395
      %v411 = vpack.c.b16 %v398, %v397
      %v412 = vpack.c.b16 %v400, %v399
      %v413 = vpack.c.b16 %v402, %v401
      %v414 = vpack.c.b16 %v404, %v403
      %v415 = vpack.c.b16 %v406, %v405
      %v416 = vpack.c.b16 %v408, %v407
      %425 = vmatprep.subr.bf16.mxu0 0
      %426 = vmatpush1.bf16.msra.mxu0 %v416
      %427 = vmatprep.subr.bf16.mxu0 0
      %428 = vmatpush1.bf16.msra.mxu0 %v415
      %429 = vmatprep.subr.bf16.mxu0 0
      %430 = vmatpush1.bf16.msra.mxu0 %v414
      %431 = vmatprep.subr.bf16.mxu0 0
      %432 = vmatpush1.bf16.msra.mxu0 %v413
      %433 = vmatprep.subr.bf16.mxu0 0
      %434 = vmatpush1.bf16.msra.mxu0 %v412
      %435 = vmatprep.subr.bf16.mxu0 0
      %436 = vmatpush1.bf16.msra.mxu0 %v411
      %437 = vmatprep.subr.bf16.mxu0 0
      %438 = vmatpush1.bf16.msra.mxu0 %v410
      %439 = vmatprep.subr.bf16.mxu0 0
      %440 = vmatpush1.bf16.msra.mxu0 %v409
      %441 = vmatprep.subr.bf16.mxu0 0
      %442 = vmatpush2.bf16.msra.mxu0 0
      %443 = vmatprep.subr.bf16.mxu0 0
      %444 = vmatpush2.bf16.msra.mxu0 0
      %445 = vmatprep.subr.bf16.mxu0 0
      %446 = vmatpush2.bf16.msra.mxu0 0
      %447 = vmatprep.subr.bf16.mxu0 0
      %448 = vmatpush2.bf16.msra.mxu0 0
      %449 = vmatprep.subr.bf16.mxu0 0
      %450 = vmatpush2.bf16.msra.mxu0 0
      %451 = vmatprep.subr.bf16.mxu0 0
      %452 = vmatpush2.bf16.msra.mxu0 0
      %453 = vmatprep.subr.bf16.mxu0 0
      %454 = vmatpush2.bf16.msra.mxu0 0
      %455 = vmatprep.subr.bf16.mxu0 0
      %456 = vmatpush2.bf16.msra.mxu0 0
      %457 = vmatprep.mubr.bf16.mxu0 0
      %458 = vmatmul.mubr.bf16.gmra.mxu0 %v345
      %v459 = vpop.f32.mrf.mxu0
      %v460 = vadd.f32 %v279, %v459
      %v461 = vpop.f32.mrf.mxu0
      %v462 = vpop.f32.mrf.mxu0
      %v463 = vadd.f32 %v279, %v462
      %v464 = vpop.f32.mrf.mxu0
      %465 = vmatprep.mubr.bf16.mxu0 0
      %466 = vmatmul.mubr.bf16.gmra.mxu0 %v346
      %v467 = vpop.f32.mrf.mxu0
      %v468 = vadd.f32 %v279, %v467
      %v469 = vpop.f32.mrf.mxu0
      %v470 = vpop.f32.mrf.mxu0
      %v471 = vadd.f32 %v279, %v470
      %v472 = vpop.f32.mrf.mxu0
      %473 = vmatprep.mubr.bf16.mxu0 0
      %474 = vmatmul.mubr.bf16.gmra.mxu0 %v347
      %v475 = vpop.f32.mrf.mxu0
      %v476 = vadd.f32 %v279, %v475
      %v477 = vpop.f32.mrf.mxu0
      %v478 = vpop.f32.mrf.mxu0
      %v479 = vadd.f32 %v279, %v478
      %v480 = vpop.f32.mrf.mxu0
      %481 = vmatprep.mubr.bf16.mxu0 0
      %482 = vmatmul.mubr.bf16.gmra.mxu0 %v348
      %v483 = vpop.f32.mrf.mxu0
      %v484 = vadd.f32 %v279, %v483
      %v485 = vpop.f32.mrf.mxu0
      %v486 = vpop.f32.mrf.mxu0
      %v487 = vadd.f32 %v279, %v486
      %v488 = vpop.f32.mrf.mxu0
      %489 = vmatprep.mubr.bf16.mxu0 0
      %490 = vmatmul.mubr.bf16.gmra.mxu0 %v349
      %v491 = vpop.f32.mrf.mxu0
      %v492 = vadd.f32 %v279, %v491
      %v493 = vpop.f32.mrf.mxu0
      %v494 = vpop.f32.mrf.mxu0
      %v495 = vadd.f32 %v279, %v494
      %v496 = vpop.f32.mrf.mxu0
      %497 = vmatprep.mubr.bf16.mxu0 0
      %498 = vmatmul.mubr.bf16.gmra.mxu0 %v350
      %v499 = vpop.f32.mrf.mxu0
      %v500 = vadd.f32 %v279, %v499
      %v501 = vpop.f32.mrf.mxu0
      %v502 = vpop.f32.mrf.mxu0
      %v503 = vadd.f32 %v279, %v502
      %v504 = vpop.f32.mrf.mxu0
      %505 = vmatprep.mubr.bf16.mxu0 0
      %506 = vmatmul.mubr.bf16.gmra.mxu0 %v351
      %v507 = vpop.f32.mrf.mxu0
      %v508 = vadd.f32 %v279, %v507
      %v509 = vpop.f32.mrf.mxu0
      %v510 = vpop.f32.mrf.mxu0
      %v511 = vadd.f32 %v279, %v510
      %v512 = vpop.f32.mrf.mxu0
      %513 = vmatprep.mubr.bf16.mxu0 0
      %514 = vmatmul.mubr.bf16.gmra.mxu0 %v352
      %v515 = vpop.f32.mrf.mxu0
      %v516 = vadd.f32 %v279, %v515
      %v517 = vpop.f32.mrf.mxu0
      %v518 = vpop.f32.mrf.mxu0
      %v519 = vadd.f32 %v279, %v518
      %v520 = vpop.f32.mrf.mxu0
      %521 = vmatprep.mubr.bf16.mxu0 0
      %522 = vmatmul.mubr.bf16.gmra.mxu0 %v353
      %v523 = vpop.f32.mrf.mxu0
      %v524 = vadd.f32 %v279, %v523
      %v525 = vpop.f32.mrf.mxu0
      %v526 = vpop.f32.mrf.mxu0
      %v527 = vadd.f32 %v279, %v526
      %v528 = vpop.f32.mrf.mxu0
      %529 = vmatprep.mubr.bf16.mxu0 0
      %530 = vmatmul.mubr.bf16.gmra.mxu0 %v354
      %v531 = vpop.f32.mrf.mxu0
      %v532 = vadd.f32 %v279, %v531
      %v533 = vpop.f32.mrf.mxu0
      %v534 = vpop.f32.mrf.mxu0
      %v535 = vadd.f32 %v279, %v534
      %v536 = vpop.f32.mrf.mxu0
      %537 = vmatprep.mubr.bf16.mxu0 0
      %538 = vmatmul.mubr.bf16.gmra.mxu0 %v355
      %v539 = vpop.f32.mrf.mxu0
      %v540 = vadd.f32 %v279, %v539
      %v541 = vpop.f32.mrf.mxu0
      %v542 = vpop.f32.mrf.mxu0
      %v543 = vadd.f32 %v279, %v542
      %v544 = vpop.f32.mrf.mxu0
      %545 = vmatprep.mubr.bf16.mxu0 0
      %546 = vmatmul.mubr.bf16.gmra.mxu0 %v356
      %v547 = vpop.f32.mrf.mxu0
      %v548 = vadd.f32 %v279, %v547
      %v549 = vpop.f32.mrf.mxu0
      %v550 = vpop.f32.mrf.mxu0
      %v551 = vadd.f32 %v279, %v550
      %v552 = vpop.f32.mrf.mxu0
      %553 = vmatprep.mubr.bf16.mxu0 0
      %554 = vmatmul.mubr.bf16.gmra.mxu0 %v357
      %v555 = vpop.f32.mrf.mxu0
      %v556 = vadd.f32 %v279, %v555
      %v557 = vpop.f32.mrf.mxu0
      %v558 = vpop.f32.mrf.mxu0
      %v559 = vadd.f32 %v279, %v558
      %v560 = vpop.f32.mrf.mxu0
      %561 = vmatprep.mubr.bf16.mxu0 0
      %562 = vmatmul.mubr.bf16.gmra.mxu0 %v358
      %v563 = vpop.f32.mrf.mxu0
      %v564 = vadd.f32 %v279, %v563
      %v565 = vpop.f32.mrf.mxu0
      %v566 = vpop.f32.mrf.mxu0
      %v567 = vadd.f32 %v279, %v566
      %v568 = vpop.f32.mrf.mxu0
      %569 = vmatprep.mubr.bf16.mxu0 0
      %570 = vmatmul.mubr.bf16.gmra.mxu0 %v359
      %v571 = vpop.f32.mrf.mxu0
      %v572 = vadd.f32 %v279, %v571
      %v573 = vpop.f32.mrf.mxu0
      %v574 = vpop.f32.mrf.mxu0
      %v575 = vadd.f32 %v279, %v574
      %v576 = vpop.f32.mrf.mxu0
      %577 = vmatprep.mubr.bf16.mxu0 0
      %578 = vmatmul.mubr.bf16.gmra.mxu0 %v360
      %v579 = vpop.f32.mrf.mxu0
      %v580 = vadd.f32 %v279, %v579
      %v581 = vpop.f32.mrf.mxu0
      %v582 = vpop.f32.mrf.mxu0
      %v583 = vadd.f32 %v279, %v582
      %v584 = vpop.f32.mrf.mxu0
      %585 = vdwg.mxu0
      %v586 = vtanh.pop %v460
      %v587 = vtanh.pop %v463
      %v588 = vtanh.pop %v468
      %v589 = vtanh.pop %v471
      %v590 = vtanh.pop %v476
      %v591 = vtanh.pop %v479
      %v592 = vtanh.pop %v484
      %v593 = vtanh.pop %v487
      %v594 = vtanh.pop %v492
      %v595 = vtanh.pop %v495
      %v596 = vtanh.pop %v500
      %v597 = vtanh.pop %v503
      %v598 = vtanh.pop %v508
      %v599 = vtanh.pop %v511
      %v600 = vtanh.pop %v516
      %v601 = vtanh.pop %v519
      %v602 = vtanh.pop %v524
      %v603 = vtanh.pop %v527
      %v604 = vtanh.pop %v532
      %v605 = vtanh.pop %v535
      %v606 = vtanh.pop %v540
      %v607 = vtanh.pop %v543
      %v608 = vtanh.pop %v548
      %v609 = vtanh.pop %v551
      %v610 = vtanh.pop %v556
      %v611 = vtanh.pop %v559
      %v612 = vtanh.pop %v564
      %v613 = vtanh.pop %v567
      %v614 = vtanh.pop %v572
      %v615 = vtanh.pop %v575
      %v616 = vtanh.pop %v580
      %v617 = vtanh.pop %v583
      %618 = vst [vmem:[%s223] sm:$0xff] %v586
      %619 = vst [vmem:[%s223 + $0x8] sm:$0xff] %v587
      %620 = vst [vmem:[%s223 + $0x10] sm:$0xff] %v588
      %621 = vst [vmem:[%s223 + $0x18] sm:$0xff] %v589
      %622 = vst [vmem:[%s223 + $0x20] sm:$0xff] %v590
      %623 = vst [vmem:[%s223 + $0x28] sm:$0xff] %v591
      %624 = vst [vmem:[%s223 + $0x30] sm:$0xff] %v592
      %625 = vst [vmem:[%s223 + $0x38] sm:$0xff] %v593
      %626 = vst [vmem:[%s223 + $0x40] sm:$0xff] %v594
      %627 = vst [vmem:[%s223 + $0x48] sm:$0xff] %v595
      %628 = vst [vmem:[%s223 + $0x50] sm:$0xff] %v596
      %629 = vst [vmem:[%s223 + $0x58] sm:$0xff] %v597
      %630 = vst [vmem:[%s223 + $0x60] sm:$0xff] %v598
      %631 = vst [vmem:[%s223 + $0x68] sm:$0xff] %v599
      %632 = vst [vmem:[%s223 + $0x70] sm:$0xff] %v600
      %633 = vst [vmem:[%s223 + $0x78] sm:$0xff] %v601
      %634 = vst [vmem:[%s223 + $0x80] sm:$0xff] %v602
      %635 = vst [vmem:[%s223 + $0x88] sm:$0xff] %v603
      %636 = vst [vmem:[%s223 + $0x90] sm:$0xff] %v604
      %637 = vst [vmem:[%s223 + $0x98] sm:$0xff] %v605
      %638 = vst [vmem:[%s223 + $0xa0] sm:$0xff] %v606
      %639 = vst [vmem:[%s223 + $0xa8] sm:$0xff] %v607
      %640 = vst [vmem:[%s223 + $0xb0] sm:$0xff] %v608
      %641 = vst [vmem:[%s223 + $0xb8] sm:$0xff] %v609
      %642 = vst [vmem:[%s223 + $0xc0] sm:$0xff] %v610
      %643 = vst [vmem:[%s223 + $0xc8] sm:$0xff] %v611
      %644 = vst [vmem:[%s223 + $0xd0] sm:$0xff] %v612
      %645 = vst [vmem:[%s223 + $0xd8] sm:$0xff] %v613
      %646 = vst [vmem:[%s223 + $0xe0] sm:$0xff] %v614
      %647 = vst [vmem:[%s223 + $0xe8] sm:$0xff] %v615
      %648 = vst [vmem:[%s223 + $0xf0] sm:$0xff] %v616
      %649 = vst [vmem:[%s223 + $0xf8] sm:$0xff] %v617
      %s650 = smul.u32 32, %s19
      %p651 = scmp.lt.s32.totalorder %s650, 255
      %s652 = scalar_select %p651, %s650, 255
      %p653 = scmp.lt.s32.totalorder %s18, 0
      %s654 = scalar_select %p653, %s18, 0
      %s655 = sadd.s32 %s654, %s652
      %s656 = smul.addr %s655, 8
      %s657 = scalar_lea.vmem %s3, %s656
      // Predicated region
      $region33: #{conv_gener_p_forward.13} parent=31 // pred_check
        %p658 = pneg %p124
      $region34: #{conv_gener_p_forward.13} parent=31 // pred_check_branch
        %660 = sbr.rel (%p658) target = $region36
      $region35: #{conv_gener_p_forward.13} parent=31 // pred_region
        %s661 = smul.u32 32, %s19
      $region36: #{conv_gener_p_forward.13} parent=31 // pred_fallthru
        _
    $region32: #{conv_gener_p_forward.13} parent=5 // pred_fallthru
      _
    %p662 = scmp.le.s32.totalorder 2, %s9
    // Predicated region
    $region37: #{conv_gener_p_forward.13} parent=5 // pred_check
      %p663 = pneg %p662
    $region38: #{conv_gener_p_forward.13} parent=5 // pred_check_branch
      %665 = sbr.rel (%p663) target = $region40
    $region39: #{conv_gener_p_forward.13} parent=5 // pred_region
      %s666 = ssub.s32 %s9, 2
      // Predicated region
      $region41: #{conv_gener_p_forward.13} parent=39 // pred_check
        %p667 = pneg %p130
      $region42: #{conv_gener_p_forward.13} parent=39 // pred_check_branch
        %669 = sbr.rel (%p667) target = $region44
      $region43: #{conv_gener_p_forward.13} parent=39 // pred_region
        %s670 = smul.u32 32, %s21
        %p671 = scmp.lt.s32.totalorder %s670, 255
        %s672 = scalar_select %p671, %s670, 255
        %p673 = scmp.lt.s32.totalorder %s20, 0
        %s674 = scalar_select %p673, %s20, 0
        %s675 = sadd.s32 %s674, %s672
        %s676 = smul.addr %s675, 8
        %s677 = scalar_lea.vmem %s3, %s676
      $region44: #{conv_gener_p_forward.13} parent=39 // pred_fallthru
        _
    $region40: #{conv_gener_p_forward.13} parent=5 // pred_fallthru
      _
  $region6: #{conv_gener_p_forward.13} parent=0 // loop_footer
    %s13 = sadd.s32 1, %s9
  $region7: #{conv_gener_p_forward.13} parent=0 // loop_footer_branch
    %8 = sbr.rel target = $region3
  $region8: #{conv_gener_p_forward.13} parent=0 // loop_exit
    _

</llo_original>
